<compile_context>
chip_gen: v7x
topology: tpu7x:2x2x1
jax: 0.10.0
libtpu: 0.0.40
codegen_flags: <defaults>
</compile_context>

<pallas_src>
import functools

import jax
import jax.numpy as jnp
from jax import lax
from jax.experimental import pallas as pl
from jax.experimental.pallas import tpu as pltpu

# Older/newer JAX naming hedge (reference name is pltpu.CompilerParams).
_CompilerParams = getattr(pltpu, "CompilerParams", None) or getattr(pltpu, "TPUCompilerParams")


# ----------------------------------------------------------------------------
# Pallas kernels
# ----------------------------------------------------------------------------
def _edge_encode_kernel(e_ref, xs_ref, xr_ref, u_ref,
                        we_ref, ws_ref, wr_ref, wu_ref, b_ref,
                        eh_ref, esum_ref):
    """EdgeBlock for both branches: relu(concat @ W + b) with the concat expressed
    as a sum of partial dots; also accumulates the column sum for the edge mean."""
    y = (jnp.dot(e_ref[...],  we_ref[...], preferred_element_type=jnp.float32)
         + jnp.dot(xs_ref[...], ws_ref[...], preferred_element_type=jnp.float32)
         + jnp.dot(xr_ref[...], wr_ref[...], preferred_element_type=jnp.float32)
         + jnp.dot(u_ref[...],  wu_ref[...], preferred_element_type=jnp.float32)
         + b_ref[...])
    e_h = jnp.maximum(y, 0.0)
    eh_ref[...] = e_h

    @pl.when(pl.program_id(0) == 0)
    def _():
        esum_ref[...] = jnp.zeros_like(esum_ref)

    esum_ref[...] += jnp.sum(e_h, axis=0, keepdims=True)


def _node_encode_kernel(rind_ref, eh_ref, x_ref, u_ref,
                        wagg_ref, wx_ref, wu_ref, b_ref,
                        nh_ref, nsum_ref, *, tile_n, num_edges):
    """NodeBlock for both branches.  scatter_add of received edges is done in-kernel:
    a (tile_n, E) one-hot is built from broadcasted_iota == rind (VPU work) and fed to
    the MXU against the VMEM-resident e_h; no [N, E] matrix ever touches HBM."""
    ni = pl.program_id(0)
    row_ids = lax.broadcasted_iota(jnp.int32, (tile_n, num_edges), 0) + ni * tile_n
    onehot = (row_ids == rind_ref[...]).astype(jnp.float32)              # (tile_n, E)
    agg = jnp.dot(onehot, eh_ref[...], preferred_element_type=jnp.float32)  # (tile_n, 2*eh)

    y = (jnp.dot(agg, wagg_ref[...], preferred_element_type=jnp.float32)
         + jnp.dot(x_ref[...], wx_ref[...], preferred_element_type=jnp.float32)
         + jnp.dot(u_ref[...], wu_ref[...], preferred_element_type=jnp.float32)
         + b_ref[...])
    n_h = jnp.maximum(y, 0.0)
    nh_ref[...] = n_h

    @pl.when(ni == 0)
    def _():
        nsum_ref[...] = jnp.zeros_like(nsum_ref)

    nsum_ref[...] += jnp.sum(n_h, axis=0, keepdims=True)


def _global_encode_kernel(esum_ref, nsum_ref, u_ref,
                          we_ref, wn_ref, wu_ref, b_ref, uh_ref, *, inv_e, inv_n):
    """GlobalBlock for both branches: scatter_mean = accumulated sums * 1/E (1/N)."""
    e_mean = esum_ref[...] * inv_e
    n_mean = nsum_ref[...] * inv_n
    y = (jnp.dot(e_mean, we_ref[...], preferred_element_type=jnp.float32)
         + jnp.dot(n_mean, wn_ref[...], preferred_element_type=jnp.float32)
         + jnp.dot(u_ref[...], wu_ref[...], preferred_element_type=jnp.float32)
         + b_ref[...])
    uh_ref[...] = jnp.maximum(y, 0.0)


def _edge_decode_combine_kernel(eh_ref, ns_ref, nr_ref, uh_ref, xrs_ref,
                                w1e_ref, w1s_ref, w1r_ref, w1u_ref, b1_ref,
                                w2_ref, b2_ref, out_ref, *, out_dim):
    """Edge decoder for both branches (dec1+ReLU+dec2) fused with the final combine
    ret = o_w1 * (x[rind,2:3] - o_w2 * x[sind,2:3]).  Hidden h never leaves VMEM."""
    h = (jnp.dot(eh_ref[...], w1e_ref[...], preferred_element_type=jnp.float32)
         + jnp.dot(ns_ref[...], w1s_ref[...], preferred_element_type=jnp.float32)
         + jnp.dot(nr_ref[...], w1r_ref[...], preferred_element_type=jnp.float32)
         + jnp.dot(uh_ref[...], w1u_ref[...], preferred_element_type=jnp.float32)
         + b1_ref[...])
    h = jnp.maximum(h, 0.0)
    o = jnp.dot(h, w2_ref[...], preferred_element_type=jnp.float32) + b2_ref[...]  # (tE, 2*out)

    o1 = o[:, :out_dim]          # branch w1 output
    o2 = o[:, out_dim:]          # branch w2 output
    xrs = xrs_ref[...]
    xr_col = xrs[:, 0:1]         # x[rind, 2:3]
    xs_col = xrs[:, 1:2]         # x[sind, 2:3]
    out_ref[...] = o1 * (xr_col - o2 * xs_col)


# ----------------------------------------------------------------------------
# Parameter init (PyTorch-Linear-style uniform) and w1/w2 weight merging
# ----------------------------------------------------------------------------
def _init_linear(key, fan_in, fan_out):
    kw, kb = jax.random.split(key)
    bound = 1.0 / float(fan_in) ** 0.5
    w = jax.random.uniform(kw, (fan_in, fan_out), jnp.float32, -bound, bound)
    b = jax.random.uniform(kb, (fan_out,), jnp.float32, -bound, bound)
    return w, b


def init_net4_params(key, node_in, edge_in, out_dim, eh, nh, gh):
    params = {}
    for branch in ("w1", "w2"):
        key, *ks = jax.random.split(key, 6)
        eb_w, eb_b = _init_linear(ks[0], edge_in + 2 * node_in + gh, eh)
        nb_w, nb_b = _init_linear(ks[1], node_in + eh + gh, nh)
        gb_w, gb_b = _init_linear(ks[2], nh + eh + gh, gh)
        d1_w, d1_b = _init_linear(ks[3], eh + 2 * nh + gh, eh)
        d2_w, d2_b = _init_linear(ks[4], eh, out_dim)
        params[branch] = dict(
            eb_w=eb_w, eb_b=eb_b, nb_w=nb_w, nb_b=nb_b, gb_w=gb_w, gb_b=gb_b,
            dec1_w=d1_w, dec1_b=d1_b, dec2_w=d2_w, dec2_b=d2_b,
        )
    return params


def _block_diag(a, b):
    ra, ca = a.shape
    rb, cb = b.shape
    top = jnp.concatenate([a, jnp.zeros((ra, cb), a.dtype)], axis=1)
    bot = jnp.concatenate([jnp.zeros((rb, ca), b.dtype), b], axis=1)
    return jnp.concatenate([top, bot], axis=0)


def _split_rows(w, sizes):
    outs, off = [], 0
    for s in sizes:
        outs.append(w[off:off + s])
        off += s
    return outs


def merge_net4_params(params, node_in, edge_in, eh, nh, gh, out_dim):
    """Merge the w1/w2 branch weights into wide matmuls:
    shared inputs -> concat along output axis, branch-local inputs -> block diagonal."""
    p1, p2 = params["w1"], params["w2"]
    mp = {}

    # EdgeBlock input order: [edge_attr, x[sind], x[rind], u]
    e1 = _split_rows(p1["eb_w"], (edge_in, node_in, node_in, gh))
    e2 = _split_rows(p2["eb_w"], (edge_in, node_in, node_in, gh))
    mp["eb_we"] = jnp.concatenate([e1[0], e2[0]], axis=1)
    mp["eb_ws"] = jnp.concatenate([e1[1], e2[1]], axis=1)
    mp["eb_wr"] = jnp.concatenate([e1[2], e2[2]], axis=1)
    mp["eb_wu"] = jnp.concatenate([e1[3], e2[3]], axis=1)
    mp["eb_b"] = jnp.concatenate([p1["eb_b"], p2["eb_b"]]).reshape(1, -1)

    # NodeBlock input order: [scatter_add(received e_h), x, u]
    n1 = _split_rows(p1["nb_w"], (eh, node_in, gh))
    n2 = _split_rows(p2["nb_w"], (eh, node_in, gh))
    mp["nb_wagg"] = _block_diag(n1[0], n2[0])
    mp["nb_wx"] = jnp.concatenate([n1[1], n2[1]], axis=1)
    mp["nb_wu"] = jnp.concatenate([n1[2], n2[2]], axis=1)
    mp["nb_b"] = jnp.concatenate([p1["nb_b"], p2["nb_b"]]).reshape(1, -1)

    # GlobalBlock input order: [mean(e_h), mean(n_h), u]
    g1 = _split_rows(p1["gb_w"], (eh, nh, gh))
    g2 = _split_rows(p2["gb_w"], (eh, nh, gh))
    mp["gb_we"] = _block_diag(g1[0], g2[0])
    mp["gb_wn"] = _block_diag(g1[1], g2[1])
    mp["gb_wu"] = jnp.concatenate([g1[2], g2[2]], axis=1)
    mp["gb_b"] = jnp.concatenate([p1["gb_b"], p2["gb_b"]]).reshape(1, -1)

    # Decoder dec1 input order: [e_h, n_h[sind], n_h[rind], u_h]
    d1 = _split_rows(p1["dec1_w"], (eh, nh, nh, gh))
    d2 = _split_rows(p2["dec1_w"], (eh, nh, nh, gh))
    mp["dec1_we"] = _block_diag(d1[0], d2[0])
    mp["dec1_ws"] = _block_diag(d1[1], d2[1])
    mp["dec1_wr"] = _block_diag(d1[2], d2[2])
    mp["dec1_wu"] = _block_diag(d1[3], d2[3])
    mp["dec1_b"] = jnp.concatenate([p1["dec1_b"], p2["dec1_b"]]).reshape(1, -1)

    mp["dec2_w"] = _block_diag(p1["dec2_w"], p2["dec2_w"])
    mp["dec2_b"] = jnp.concatenate([p1["dec2_b"], p2["dec2_b"]]).reshape(1, -1)
    return mp


# ----------------------------------------------------------------------------
# Forward pass
# ----------------------------------------------------------------------------
def _pick_tile(dim, tile):
    """Row tile: multiple of 8 that divides dim, else fall back to the full dim."""
    t = min(tile, dim)
    if dim % t != 0 or t % 8 != 0:
        t = dim
    return t


_VMEM_LIMIT = 64 * 1024 * 1024


def net4_forward(mp, x, edge_index, edge_attr, u, *, tile_e=256, tile_n=256):
    sind, rind = edge_index[0], edge_index[1]
    N, Fn = x.shape
    E, Fe = edge_attr.shape
    GH = u.shape[1]
    EH2 = mp["eb_b"].shape[1]
    NH2 = mp["nb_b"].shape[1]
    GH2 = mp["gb_b"].shape[1]
    OUT2 = mp["dec2_b"].shape[1]
    OUT = OUT2 // 2

    te = _pick_tile(E, tile_e)
    tn = _pick_tile(N, tile_n)

    # Cheap XLA glue: row gathers + index row for the in-kernel scatter.
    xs = x[sind]
    xr = x[rind]
    rind_row = rind.astype(jnp.int32).reshape(1, E)

    # ---- Kernel 1: fused EdgeBlock (both branches) + edge column-sum accumulator
    e_h, e_sum = pl.pallas_call(
        _edge_encode_kernel,
        grid=(E // te,),
        out_shape=(jax.ShapeDtypeStruct((E, EH2), jnp.float32),
                   jax.ShapeDtypeStruct((1, EH2), jnp.float32)),
        in_specs=[
            pl.BlockSpec((te, Fe), lambda i: (i, 0)),
            pl.BlockSpec((te, Fn), lambda i: (i, 0)),
            pl.BlockSpec((te, Fn), lambda i: (i, 0)),
            pl.BlockSpec((1, GH), lambda i: (0, 0)),
            pl.BlockSpec((Fe, EH2), lambda i: (0, 0)),
            pl.BlockSpec((Fn, EH2), lambda i: (0, 0)),
            pl.BlockSpec((Fn, EH2), lambda i: (0, 0)),
            pl.BlockSpec((GH, EH2), lambda i: (0, 0)),
            pl.BlockSpec((1, EH2), lambda i: (0, 0)),
        ],
        out_specs=(pl.BlockSpec((te, EH2), lambda i: (i, 0)),
                   pl.BlockSpec((1, EH2), lambda i: (0, 0))),
        compiler_params=_CompilerParams(dimension_semantics=("arbitrary",),
                                        vmem_limit_bytes=_VMEM_LIMIT),
    )(edge_attr, xs, xr, u,
      mp["eb_we"], mp["eb_ws"], mp["eb_wr"], mp["eb_wu"], mp["eb_b"])

    # ---- Kernel 2: fused NodeBlock (both branches) with in-kernel scatter_add
    n_h, n_sum = pl.pallas_call(
        functools.partial(_node_encode_kernel, tile_n=tn, num_edges=E),
        grid=(N // tn,),
        out_shape=(jax.ShapeDtypeStruct((N, NH2), jnp.float32),
                   jax.ShapeDtypeStruct((1, NH2), jnp.float32)),
        in_specs=[
            pl.BlockSpec((1, E), lambda i: (0, 0)),      # receiver indices
            pl.BlockSpec((E, EH2), lambda i: (0, 0)),    # e_h stays resident in VMEM
            pl.BlockSpec((tn, Fn), lambda i: (i, 0)),
            pl.BlockSpec((1, GH), lambda i: (0, 0)),
            pl.BlockSpec((EH2, NH2), lambda i: (0, 0)),
            pl.BlockSpec((Fn, NH2), lambda i: (0, 0)),
            pl.BlockSpec((GH, NH2), lambda i: (0, 0)),
            pl.BlockSpec((1, NH2), lambda i: (0, 0)),
        ],
        out_specs=(pl.BlockSpec((tn, NH2), lambda i: (i, 0)),
                   pl.BlockSpec((1, NH2), lambda i: (0, 0))),
        compiler_params=_CompilerParams(dimension_semantics=("arbitrary",),
                                        vmem_limit_bytes=_VMEM_LIMIT),
    )(rind_row, e_h, x, u,
      mp["nb_wagg"], mp["nb_wx"], mp["nb_wu"], mp["nb_b"])

    # ---- Kernel 3: fused GlobalBlock (both branches)
    u_h = pl.pallas_call(
        functools.partial(_global_encode_kernel, inv_e=1.0 / E, inv_n=1.0 / N),
        out_shape=jax.ShapeDtypeStruct((1, GH2), jnp.float32),
        in_specs=[
            pl.BlockSpec((1, EH2), lambda: (0, 0)),
            pl.BlockSpec((1, NH2), lambda: (0, 0)),
            pl.BlockSpec((1, GH), lambda: (0, 0)),
            pl.BlockSpec((EH2, GH2), lambda: (0, 0)),
            pl.BlockSpec((NH2, GH2), lambda: (0, 0)),
            pl.BlockSpec((GH, GH2), lambda: (0, 0)),
            pl.BlockSpec((1, GH2), lambda: (0, 0)),
        ],
        out_specs=pl.BlockSpec((1, GH2), lambda: (0, 0)),
    )(e_sum, n_sum, u, mp["gb_we"], mp["gb_wn"], mp["gb_wu"], mp["gb_b"])

    # ---- Kernel 4: fused edge decoder (both branches) + final combine
    n_s = n_h[sind]
    n_r = n_h[rind]
    xrs = jnp.concatenate([x[rind, 2:3], x[sind, 2:3]], axis=1)  # (E, 2)

    out = pl.pallas_call(
        functools.partial(_edge_decode_combine_kernel, out_dim=OUT),
        grid=(E // te,),
        out_shape=jax.ShapeDtypeStruct((E, OUT), jnp.float32),
        in_specs=[
            pl.BlockSpec((te, EH2), lambda i: (i, 0)),
            pl.BlockSpec((te, NH2), lambda i: (i, 0)),
            pl.BlockSpec((te, NH2), lambda i: (i, 0)),
            pl.BlockSpec((1, GH2), lambda i: (0, 0)),
            pl.BlockSpec((te, 2), lambda i: (i, 0)),
            pl.BlockSpec((EH2, EH2), lambda i: (0, 0)),
            pl.BlockSpec((NH2, EH2), lambda i: (0, 0)),
            pl.BlockSpec((NH2, EH2), lambda i: (0, 0)),
            pl.BlockSpec((GH2, EH2), lambda i: (0, 0)),
            pl.BlockSpec((1, EH2), lambda i: (0, 0)),
            pl.BlockSpec((EH2, OUT2), lambda i: (0, 0)),
            pl.BlockSpec((1, OUT2), lambda i: (0, 0)),
        ],
        out_specs=pl.BlockSpec((te, OUT), lambda i: (i, 0)),
        compiler_params=_CompilerParams(dimension_semantics=("parallel",),
                                        vmem_limit_bytes=_VMEM_LIMIT),
    )(e_h, n_s, n_r, u_h, xrs,
      mp["dec1_we"], mp["dec1_ws"], mp["dec1_wr"], mp["dec1_wu"], mp["dec1_b"],
      mp["dec2_w"], mp["dec2_b"])

    return out


# ----------------------------------------------------------------------------
# Pure-JAX reference (correctness self-check, uses the raw per-branch params)
# ----------------------------------------------------------------------------
def _ref_forward(params, x, edge_index, edge_attr, u):
    sind, rind = edge_index[0], edge_index[1]
    N, E = x.shape[0], edge_attr.shape[0]

    def gn(p):
        u_e = jnp.broadcast_to(u, (E, u.shape[1]))
        e_h = jax.nn.relu(
            jnp.concatenate([edge_attr, x[sind], x[rind], u_e], 1) @ p["eb_w"] + p["eb_b"])
        agg = jax.ops.segment_sum(e_h, rind, num_segments=N)
        u_n = jnp.broadcast_to(u, (N, u.shape[1]))
        n_h = jax.nn.relu(jnp.concatenate([agg, x, u_n], 1) @ p["nb_w"] + p["nb_b"])
        u_h = jax.nn.relu(
            jnp.concatenate([e_h.mean(0, keepdims=True), n_h.mean(0, keepdims=True), u], 1)
            @ p["gb_w"] + p["gb_b"])
        u_eh = jnp.broadcast_to(u_h, (E, u_h.shape[1]))
        h = jax.nn.relu(
            jnp.concatenate([e_h, n_h[sind], n_h[rind], u_eh], 1) @ p["dec1_w"] + p["dec1_b"])
        return h @ p["dec2_w"] + p["dec2_b"]

    o1 = gn(params["w1"])
    o2 = gn(params["w2"])
    return o1 * (x[rind, 2:3] - o2 * x[sind, 2:3])


# ----------------------------------------------------------------------------
if __name__ == "__main__":
    NODE_ATTR, EDGE_ATTR, OUT = 4, 6, 3          # node_attr_size >= 3 (x[:, 2:3] used)
    EH = NH = GH = 32
    N, E = 16, 32

    key = jax.random.PRNGKey(0)
    k_p, k_x, k_e, k_u, k_idx = jax.random.split(key, 5)

    params = init_net4_params(k_p, NODE_ATTR, EDGE_ATTR, OUT, EH, NH, GH)
    merged = merge_net4_params(params, NODE_ATTR, EDGE_ATTR, EH, NH, GH, OUT)

    x = jax.random.normal(k_x, (N, NODE_ATTR), jnp.float32)
    edge_attr = jax.random.normal(k_e, (E, EDGE_ATTR), jnp.float32)
    u = jax.random.normal(k_u, (1, GH), jnp.float32)
    edge_index = jax.random.randint(k_idx, (2, E), 0, N, jnp.int32)

    # Small row tiles here so the accumulator / pipelined grid paths are exercised
    # even at demo sizes; defaults (256) are for large graphs.
    fwd = jax.jit(functools.partial(net4_forward, tile_e=8, tile_n=8))
    out = jax.block_until_ready(fwd(merged, x, edge_index, edge_attr, u))

    ref = _ref_forward(params, x, edge_index, edge_attr, u)
    assert out.shape == (E, OUT)
    assert jnp.allclose(out, ref, atol=1e-4, rtol=1e-4), "mismatch vs JAX reference"

    print("KERNEL_OK")
</pallas_src>

<mosaic_0001>
module attributes {stable_mosaic.version = 11 : i64} {
  func.func @_edge_encode_kernel(%arg0: i32, %arg1: memref<8x6xf32, #tpu.memory_space<vmem>>, %arg2: memref<8x4xf32, #tpu.memory_space<vmem>>, %arg3: memref<8x4xf32, #tpu.memory_space<vmem>>, %arg4: memref<1x32xf32, #tpu.memory_space<vmem>>, %arg5: memref<6x64xf32, #tpu.memory_space<vmem>>, %arg6: memref<4x64xf32, #tpu.memory_space<vmem>>, %arg7: memref<4x64xf32, #tpu.memory_space<vmem>>, %arg8: memref<32x64xf32, #tpu.memory_space<vmem>>, %arg9: memref<1x64xf32, #tpu.memory_space<vmem>>, %arg10: memref<8x64xf32, #tpu.memory_space<vmem>>, %arg11: memref<1x64xf32, #tpu.memory_space<vmem>>) attributes {dimension_semantics = [#tpu.dimension_semantics<arbitrary>], iteration_bounds = array<i64: 4>, scalar_prefetch = 0 : i64, scratch_operands = 0 : i64, tpu.core_type = #tpu.core_type<tc>, window_params = [{transform_indices = @transform_0, window_bounds = array<i64: 8, 6>}, {transform_indices = @transform_1, window_bounds = array<i64: 8, 4>}, {transform_indices = @transform_2, window_bounds = array<i64: 8, 4>}, {pipeline_mode = #tpu.pipeline_mode<synchronous>, transform_indices = @transform_3, window_bounds = array<i64: 1, 32>}, {pipeline_mode = #tpu.pipeline_mode<synchronous>, transform_indices = @transform_4, window_bounds = array<i64: 6, 64>}, {pipeline_mode = #tpu.pipeline_mode<synchronous>, transform_indices = @transform_5, window_bounds = array<i64: 4, 64>}, {pipeline_mode = #tpu.pipeline_mode<synchronous>, transform_indices = @transform_6, window_bounds = array<i64: 4, 64>}, {pipeline_mode = #tpu.pipeline_mode<synchronous>, transform_indices = @transform_7, window_bounds = array<i64: 32, 64>}, {pipeline_mode = #tpu.pipeline_mode<synchronous>, transform_indices = @transform_8, window_bounds = array<i64: 1, 64>}, {transform_indices = @transform_9, window_bounds = array<i64: 8, 64>}, {pipeline_mode = #tpu.pipeline_mode<synchronous>, transform_indices = @transform_10, window_bounds = array<i64: 1, 64>}]} {
    %c0 = arith.constant 0 : index
    %c0_0 = arith.constant 0 : index
    %0 = vector.load %arg1[%c0, %c0_0] : memref<8x6xf32, #tpu.memory_space<vmem>>, vector<8x6xf32>
    %c0_1 = arith.constant 0 : index
    %c0_2 = arith.constant 0 : index
    %1 = vector.load %arg5[%c0_1, %c0_2] : memref<6x64xf32, #tpu.memory_space<vmem>>, vector<6x64xf32>
    %cst = arith.constant dense<0.000000e+00> : vector<8x64xf32>
    %2 = tpu.matmul %0, %1, %cst {dimension_numbers = #tpu.dot_dimension_numbers<[1], [0], [0], [1], [0, 0, 1, 1], [], []>} : vector<8x6xf32>, vector<6x64xf32>, vector<8x64xf32> -> vector<8x64xf32>
    %c0_3 = arith.constant 0 : index
    %c0_4 = arith.constant 0 : index
    %3 = vector.load %arg2[%c0_3, %c0_4] : memref<8x4xf32, #tpu.memory_space<vmem>>, vector<8x4xf32>
    %c0_5 = arith.constant 0 : index
    %c0_6 = arith.constant 0 : index
    %4 = vector.load %arg6[%c0_5, %c0_6] : memref<4x64xf32, #tpu.memory_space<vmem>>, vector<4x64xf32>
    %cst_7 = arith.constant dense<0.000000e+00> : vector<8x64xf32>
    %5 = tpu.matmul %3, %4, %cst_7 {dimension_numbers = #tpu.dot_dimension_numbers<[1], [0], [0], [1], [0, 0, 1, 1], [], []>} : vector<8x4xf32>, vector<4x64xf32>, vector<8x64xf32> -> vector<8x64xf32>
    %6 = arith.addf %2, %5 : vector<8x64xf32>
    %c0_8 = arith.constant 0 : index
    %c0_9 = arith.constant 0 : index
    %7 = vector.load %arg3[%c0_8, %c0_9] : memref<8x4xf32, #tpu.memory_space<vmem>>, vector<8x4xf32>
    %c0_10 = arith.constant 0 : index
    %c0_11 = arith.constant 0 : index
    %8 = vector.load %arg7[%c0_10, %c0_11] : memref<4x64xf32, #tpu.memory_space<vmem>>, vector<4x64xf32>
    %cst_12 = arith.constant dense<0.000000e+00> : vector<8x64xf32>
    %9 = tpu.matmul %7, %8, %cst_12 {dimension_numbers = #tpu.dot_dimension_numbers<[1], [0], [0], [1], [0, 0, 1, 1], [], []>} : vector<8x4xf32>, vector<4x64xf32>, vector<8x64xf32> -> vector<8x64xf32>
    %10 = arith.addf %6, %9 : vector<8x64xf32>
    %c0_13 = arith.constant 0 : index
    %c0_14 = arith.constant 0 : index
    %11 = vector.load %arg4[%c0_13, %c0_14] : memref<1x32xf32, #tpu.memory_space<vmem>>, vector<1x32xf32>
    %c0_15 = arith.constant 0 : index
    %c0_16 = arith.constant 0 : index
    %12 = vector.load %arg8[%c0_15, %c0_16] : memref<32x64xf32, #tpu.memory_space<vmem>>, vector<32x64xf32>
    %cst_17 = arith.constant dense<0.000000e+00> : vector<1x64xf32>
    %13 = tpu.matmul %11, %12, %cst_17 {dimension_numbers = #tpu.dot_dimension_numbers<[1], [0], [0], [1], [0, 0, 1, 1], [], []>} : vector<1x32xf32>, vector<32x64xf32>, vector<1x64xf32> -> vector<1x64xf32>
    %14 = vector.broadcast %13 : vector<1x64xf32> to vector<8x64xf32>
    %15 = arith.addf %10, %14 : vector<8x64xf32>
    %c0_18 = arith.constant 0 : index
    %c0_19 = arith.constant 0 : index
    %16 = vector.load %arg9[%c0_18, %c0_19] : memref<1x64xf32, #tpu.memory_space<vmem>>, vector<1x64xf32>
    %17 = vector.broadcast %16 : vector<1x64xf32> to vector<8x64xf32>
    %18 = arith.addf %15, %17 : vector<8x64xf32>
    %cst_20 = arith.constant 0.000000e+00 : f32
    %19 = vector.broadcast %cst_20 : f32 to vector<8x64xf32>
    %20 = arith.maximumf %18, %19 : vector<8x64xf32>
    %c0_21 = arith.constant 0 : index
    %c0_22 = arith.constant 0 : index
    %21 = vector.load %arg10[%c0_21, %c0_22] : memref<8x64xf32, #tpu.memory_space<vmem>>, vector<8x64xf32>
    tpu.vector_store %arg10[%c0_21, %c0_22], %20 {strides = array<i32>} : memref<8x64xf32, #tpu.memory_space<vmem>>, vector<8x64xf32>,
    %c0_i32 = arith.constant 0 : i32
    %22 = arith.cmpi eq, %arg0, %c0_i32 : i32
    %23 = arith.extui %22 : i1 to i32
    %c0_i32_23 = arith.constant 0 : i32
    %24 = arith.cmpi ne, %23, %c0_i32_23 : i32
    scf.if %24 {
      %cst_29 = arith.constant 0.000000e+00 : f32
      %30 = vector.broadcast %cst_29 : f32 to vector<1x64xf32>
      %c0_30 = arith.constant 0 : index
      %c0_31 = arith.constant 0 : index
      %31 = vector.load %arg11[%c0_30, %c0_31] : memref<1x64xf32, #tpu.memory_space<vmem>>, vector<1x64xf32>
      tpu.vector_store %arg11[%c0_30, %c0_31], %30 {strides = array<i32>} : memref<1x64xf32, #tpu.memory_space<vmem>>, vector<1x64xf32>,
    } else {
    }
    %c0_24 = arith.constant 0 : index
    %c0_25 = arith.constant 0 : index
    %25 = vector.load %arg11[%c0_24, %c0_25] : memref<1x64xf32, #tpu.memory_space<vmem>>, vector<1x64xf32>
    %cst_26 = arith.constant dense<0.000000e+00> : vector<64xf32>
    %26 = vector.multi_reduction <add>, %20, %cst_26 [0] : vector<8x64xf32> to vector<64xf32>
    %27 = vector.shape_cast %26 : vector<64xf32> to vector<1x64xf32>
    %28 = arith.addf %25, %27 : vector<1x64xf32>
    %c0_27 = arith.constant 0 : index
    %c0_28 = arith.constant 0 : index
    %29 = vector.load %arg11[%c0_27, %c0_28] : memref<1x64xf32, #tpu.memory_space<vmem>>, vector<1x64xf32>
    tpu.vector_store %arg11[%c0_27, %c0_28], %28 {strides = array<i32>} : memref<1x64xf32, #tpu.memory_space<vmem>>, vector<1x64xf32>,
    return
  }
  func.func @transform_0(%arg0: i32) -> (i32, i32) {
    %c0_i32 = arith.constant 0 : i32
    %c0_i32_0 = arith.constant 0 : i32
    return %arg0, %c0_i32 : i32, i32
  }
  func.func @transform_1(%arg0: i32) -> (i32, i32) {
    %c0_i32 = arith.constant 0 : i32
    %c0_i32_0 = arith.constant 0 : i32
    return %arg0, %c0_i32 : i32, i32
  }
  func.func @transform_2(%arg0: i32) -> (i32, i32) {
    %c0_i32 = arith.constant 0 : i32
    %c0_i32_0 = arith.constant 0 : i32
    return %arg0, %c0_i32 : i32, i32
  }
  func.func @transform_3(%arg0: i32) -> (i32, i32) {
    %c0_i32 = arith.constant 0 : i32
    %c0_i32_0 = arith.constant 0 : i32
    %c0_i32_1 = arith.constant 0 : i32
    return %c0_i32, %c0_i32_0 : i32, i32
  }
  func.func @transform_4(%arg0: i32) -> (i32, i32) {
    %c0_i32 = arith.constant 0 : i32
    %c0_i32_0 = arith.constant 0 : i32
    %c0_i32_1 = arith.constant 0 : i32
    return %c0_i32, %c0_i32_0 : i32, i32
  }
  func.func @transform_5(%arg0: i32) -> (i32, i32) {
    %c0_i32 = arith.constant 0 : i32
    %c0_i32_0 = arith.constant 0 : i32
    %c0_i32_1 = arith.constant 0 : i32
    return %c0_i32, %c0_i32_0 : i32, i32
  }
  func.func @transform_6(%arg0: i32) -> (i32, i32) {
    %c0_i32 = arith.constant 0 : i32
    %c0_i32_0 = arith.constant 0 : i32
    %c0_i32_1 = arith.constant 0 : i32
    return %c0_i32, %c0_i32_0 : i32, i32
  }
  func.func @transform_7(%arg0: i32) -> (i32, i32) {
    %c0_i32 = arith.constant 0 : i32
    %c0_i32_0 = arith.constant 0 : i32
    %c0_i32_1 = arith.constant 0 : i32
    return %c0_i32, %c0_i32_0 : i32, i32
  }
  func.func @transform_8(%arg0: i32) -> (i32, i32) {
    %c0_i32 = arith.constant 0 : i32
    %c0_i32_0 = arith.constant 0 : i32
    %c0_i32_1 = arith.constant 0 : i32
    return %c0_i32, %c0_i32_0 : i32, i32
  }
  func.func @transform_9(%arg0: i32) -> (i32, i32) {
    %c0_i32 = arith.constant 0 : i32
    %c0_i32_0 = arith.constant 0 : i32
    return %arg0, %c0_i32 : i32, i32
  }
  func.func @transform_10(%arg0: i32) -> (i32, i32) {
    %c0_i32 = arith.constant 0 : i32
    %c0_i32_0 = arith.constant 0 : i32
    %c0_i32_1 = arith.constant 0 : i32
    return %c0_i32, %c0_i32_0 : i32, i32
  }
}

module attributes {stable_mosaic.version = 11 : i64} {
  func.func @_global_encode_kernel(%arg0: memref<1x64xf32, #tpu.memory_space<vmem>>, %arg1: memref<1x64xf32, #tpu.memory_space<vmem>>, %arg2: memref<1x32xf32, #tpu.memory_space<vmem>>, %arg3: memref<64x64xf32, #tpu.memory_space<vmem>>, %arg4: memref<64x64xf32, #tpu.memory_space<vmem>>, %arg5: memref<32x64xf32, #tpu.memory_space<vmem>>, %arg6: memref<1x64xf32, #tpu.memory_space<vmem>>, %arg7: memref<1x64xf32, #tpu.memory_space<vmem>>) attributes {dimension_semantics = [], scalar_prefetch = 0 : i64, scratch_operands = 0 : i64, tpu.core_type = #tpu.core_type<tc>} {
    %c0 = arith.constant 0 : index
    %c0_0 = arith.constant 0 : index
    %0 = vector.load %arg0[%c0, %c0_0] : memref<1x64xf32, #tpu.memory_space<vmem>>, vector<1x64xf32>
    %cst = arith.constant 3.125000e-02 : f32
    %1 = vector.broadcast %cst : f32 to vector<1x64xf32>
    %2 = arith.mulf %0, %1 : vector<1x64xf32>
    %c0_1 = arith.constant 0 : index
    %c0_2 = arith.constant 0 : index
    %3 = vector.load %arg1[%c0_1, %c0_2] : memref<1x64xf32, #tpu.memory_space<vmem>>, vector<1x64xf32>
    %cst_3 = arith.constant 6.250000e-02 : f32
    %4 = vector.broadcast %cst_3 : f32 to vector<1x64xf32>
    %5 = arith.mulf %3, %4 : vector<1x64xf32>
    %c0_4 = arith.constant 0 : index
    %c0_5 = arith.constant 0 : index
    %6 = vector.load %arg3[%c0_4, %c0_5] : memref<64x64xf32, #tpu.memory_space<vmem>>, vector<64x64xf32>
    %cst_6 = arith.constant dense<0.000000e+00> : vector<1x64xf32>
    %7 = tpu.matmul %2, %6, %cst_6 {dimension_numbers = #tpu.dot_dimension_numbers<[1], [0], [0], [1], [0, 0, 1, 1], [], []>} : vector<1x64xf32>, vector<64x64xf32>, vector<1x64xf32> -> vector<1x64xf32>
    %c0_7 = arith.constant 0 : index
    %c0_8 = arith.constant 0 : index
    %8 = vector.load %arg4[%c0_7, %c0_8] : memref<64x64xf32, #tpu.memory_space<vmem>>, vector<64x64xf32>
    %cst_9 = arith.constant dense<0.000000e+00> : vector<1x64xf32>
    %9 = tpu.matmul %5, %8, %cst_9 {dimension_numbers = #tpu.dot_dimension_numbers<[1], [0], [0], [1], [0, 0, 1, 1], [], []>} : vector<1x64xf32>, vector<64x64xf32>, vector<1x64xf32> -> vector<1x64xf32>
    %10 = arith.addf %7, %9 : vector<1x64xf32>
    %c0_10 = arith.constant 0 : index
    %c0_11 = arith.constant 0 : index
    %11 = vector.load %arg2[%c0_10, %c0_11] : memref<1x32xf32, #tpu.memory_space<vmem>>, vector<1x32xf32>
    %c0_12 = arith.constant 0 : index
    %c0_13 = arith.constant 0 : index
    %12 = vector.load %arg5[%c0_12, %c0_13] : memref<32x64xf32, #tpu.memory_space<vmem>>, vector<32x64xf32>
    %cst_14 = arith.constant dense<0.000000e+00> : vector<1x64xf32>
    %13 = tpu.matmul %11, %12, %cst_14 {dimension_numbers = #tpu.dot_dimension_numbers<[1], [0], [0], [1], [0, 0, 1, 1], [], []>} : vector<1x32xf32>, vector<32x64xf32>, vector<1x64xf32> -> vector<1x64xf32>
    %14 = arith.addf %10, %13 : vector<1x64xf32>
    %c0_15 = arith.constant 0 : index
    %c0_16 = arith.constant 0 : index
    %15 = vector.load %arg6[%c0_15, %c0_16] : memref<1x64xf32, #tpu.memory_space<vmem>>, vector<1x64xf32>
    %16 = arith.addf %14, %15 : vector<1x64xf32>
    %cst_17 = arith.constant 0.000000e+00 : f32
    %17 = vector.broadcast %cst_17 : f32 to vector<1x64xf32>
    %18 = arith.maximumf %16, %17 : vector<1x64xf32>
    %c0_18 = arith.constant 0 : index
    %c0_19 = arith.constant 0 : index
    %19 = vector.load %arg7[%c0_18, %c0_19] : memref<1x64xf32, #tpu.memory_space<vmem>>, vector<1x64xf32>
    tpu.vector_store %arg7[%c0_18, %c0_19], %18 {strides = array<i32>} : memref<1x64xf32, #tpu.memory_space<vmem>>, vector<1x64xf32>,
    return
  }
}

module attributes {stable_mosaic.version = 11 : i64} {
  func.func @_node_encode_kernel(%arg0: i32, %arg1: memref<1x32xi32, #tpu.memory_space<vmem>>, %arg2: memref<32x64xf32, #tpu.memory_space<vmem>>, %arg3: memref<8x4xf32, #tpu.memory_space<vmem>>, %arg4: memref<1x32xf32, #tpu.memory_space<vmem>>, %arg5: memref<64x64xf32, #tpu.memory_space<vmem>>, %arg6: memref<4x64xf32, #tpu.memory_space<vmem>>, %arg7: memref<32x64xf32, #tpu.memory_space<vmem>>, %arg8: memref<1x64xf32, #tpu.memory_space<vmem>>, %arg9: memref<8x64xf32, #tpu.memory_space<vmem>>, %arg10: memref<1x64xf32, #tpu.memory_space<vmem>>) attributes {dimension_semantics = [#tpu.dimension_semantics<arbitrary>], iteration_bounds = array<i64: 2>, scalar_prefetch = 0 : i64, scratch_operands = 0 : i64, tpu.core_type = #tpu.core_type<tc>, window_params = [{pipeline_mode = #tpu.pipeline_mode<synchronous>, transform_indices = @transform_0, window_bounds = array<i64: 1, 32>}, {pipeline_mode = #tpu.pipeline_mode<synchronous>, transform_indices = @transform_1, window_bounds = array<i64: 32, 64>}, {transform_indices = @transform_2, window_bounds = array<i64: 8, 4>}, {pipeline_mode = #tpu.pipeline_mode<synchronous>, transform_indices = @transform_3, window_bounds = array<i64: 1, 32>}, {pipeline_mode = #tpu.pipeline_mode<synchronous>, transform_indices = @transform_4, window_bounds = array<i64: 64, 64>}, {pipeline_mode = #tpu.pipeline_mode<synchronous>, transform_indices = @transform_5, window_bounds = array<i64: 4, 64>}, {pipeline_mode = #tpu.pipeline_mode<synchronous>, transform_indices = @transform_6, window_bounds = array<i64: 32, 64>}, {pipeline_mode = #tpu.pipeline_mode<synchronous>, transform_indices = @transform_7, window_bounds = array<i64: 1, 64>}, {transform_indices = @transform_8, window_bounds = array<i64: 8, 64>}, {pipeline_mode = #tpu.pipeline_mode<synchronous>, transform_indices = @transform_9, window_bounds = array<i64: 1, 64>}]} {
    %0 = tpu.iota {dimensions = array<i32: 0>} : vector<8x32xi32>
    %c8_i32 = arith.constant 8 : i32
    %1 = arith.muli %arg0, %c8_i32 : i32
    %2 = vector.broadcast %1 : i32 to vector<8x32xi32>
    %3 = arith.addi %0, %2 : vector<8x32xi32>
    %c0 = arith.constant 0 : index
    %c0_0 = arith.constant 0 : index
    %4 = vector.load %arg1[%c0, %c0_0] : memref<1x32xi32, #tpu.memory_space<vmem>>, vector<1x32xi32>
    %5 = vector.broadcast %4 : vector<1x32xi32> to vector<8x32xi32>
    %6 = arith.cmpi eq, %3, %5 : vector<8x32xi32>
    %7 = arith.extui %6 : vector<8x32xi1> to vector<8x32xi32>
    %8 = arith.sitofp %7 : vector<8x32xi32> to vector<8x32xf32>
    %c0_1 = arith.constant 0 : index
    %c0_2 = arith.constant 0 : index
    %9 = vector.load %arg2[%c0_1, %c0_2] : memref<32x64xf32, #tpu.memory_space<vmem>>, vector<32x64xf32>
    %cst = arith.constant dense<0.000000e+00> : vector<8x64xf32>
    %10 = tpu.matmul %8, %9, %cst {dimension_numbers = #tpu.dot_dimension_numbers<[1], [0], [0], [1], [0, 0, 1, 1], [], []>} : vector<8x32xf32>, vector<32x64xf32>, vector<8x64xf32> -> vector<8x64xf32>
    %c0_3 = arith.constant 0 : index
    %c0_4 = arith.constant 0 : index
    %11 = vector.load %arg5[%c0_3, %c0_4] : memref<64x64xf32, #tpu.memory_space<vmem>>, vector<64x64xf32>
    %cst_5 = arith.constant dense<0.000000e+00> : vector<8x64xf32>
    %12 = tpu.matmul %10, %11, %cst_5 {dimension_numbers = #tpu.dot_dimension_numbers<[1], [0], [0], [1], [0, 0, 1, 1], [], []>} : vector<8x64xf32>, vector<64x64xf32>, vector<8x64xf32> -> vector<8x64xf32>
    %c0_6 = arith.constant 0 : index
    %c0_7 = arith.constant 0 : index
    %13 = vector.load %arg3[%c0_6, %c0_7] : memref<8x4xf32, #tpu.memory_space<vmem>>, vector<8x4xf32>
    %c0_8 = arith.constant 0 : index
    %c0_9 = arith.constant 0 : index
    %14 = vector.load %arg6[%c0_8, %c0_9] : memref<4x64xf32, #tpu.memory_space<vmem>>, vector<4x64xf32>
    %cst_10 = arith.constant dense<0.000000e+00> : vector<8x64xf32>
    %15 = tpu.matmul %13, %14, %cst_10 {dimension_numbers = #tpu.dot_dimension_numbers<[1], [0], [0], [1], [0, 0, 1, 1], [], []>} : vector<8x4xf32>, vector<4x64xf32>, vector<8x64xf32> -> vector<8x64xf32>
    %16 = arith.addf %12, %15 : vector<8x64xf32>
    %c0_11 = arith.constant 0 : index
    %c0_12 = arith.constant 0 : index
    %17 = vector.load %arg4[%c0_11, %c0_12] : memref<1x32xf32, #tpu.memory_space<vmem>>, vector<1x32xf32>
    %c0_13 = arith.constant 0 : index
    %c0_14 = arith.constant 0 : index
    %18 = vector.load %arg7[%c0_13, %c0_14] : memref<32x64xf32, #tpu.memory_space<vmem>>, vector<32x64xf32>
    %cst_15 = arith.constant dense<0.000000e+00> : vector<1x64xf32>
    %19 = tpu.matmul %17, %18, %cst_15 {dimension_numbers = #tpu.dot_dimension_numbers<[1], [0], [0], [1], [0, 0, 1, 1], [], []>} : vector<1x32xf32>, vector<32x64xf32>, vector<1x64xf32> -> vector<1x64xf32>
    %20 = vector.broadcast %19 : vector<1x64xf32> to vector<8x64xf32>
    %21 = arith.addf %16, %20 : vector<8x64xf32>
    %c0_16 = arith.constant 0 : index
    %c0_17 = arith.constant 0 : index
    %22 = vector.load %arg8[%c0_16, %c0_17] : memref<1x64xf32, #tpu.memory_space<vmem>>, vector<1x64xf32>
    %23 = vector.broadcast %22 : vector<1x64xf32> to vector<8x64xf32>
    %24 = arith.addf %21, %23 : vector<8x64xf32>
    %cst_18 = arith.constant 0.000000e+00 : f32
    %25 = vector.broadcast %cst_18 : f32 to vector<8x64xf32>
    %26 = arith.maximumf %24, %25 : vector<8x64xf32>
    %c0_19 = arith.constant 0 : index
    %c0_20 = arith.constant 0 : index
    %27 = vector.load %arg9[%c0_19, %c0_20] : memref<8x64xf32, #tpu.memory_space<vmem>>, vector<8x64xf32>
    tpu.vector_store %arg9[%c0_19, %c0_20], %26 {strides = array<i32>} : memref<8x64xf32, #tpu.memory_space<vmem>>, vector<8x64xf32>,
    %c0_i32 = arith.constant 0 : i32
    %28 = arith.cmpi eq, %arg0, %c0_i32 : i32
    %29 = arith.extui %28 : i1 to i32
    %c0_i32_21 = arith.constant 0 : i32
    %30 = arith.cmpi ne, %29, %c0_i32_21 : i32
    scf.if %30 {
      %cst_27 = arith.constant 0.000000e+00 : f32
      %36 = vector.broadcast %cst_27 : f32 to vector<1x64xf32>
      %c0_28 = arith.constant 0 : index
      %c0_29 = arith.constant 0 : index
      %37 = vector.load %arg10[%c0_28, %c0_29] : memref<1x64xf32, #tpu.memory_space<vmem>>, vector<1x64xf32>
      tpu.vector_store %arg10[%c0_28, %c0_29], %36 {strides = array<i32>} : memref<1x64xf32, #tpu.memory_space<vmem>>, vector<1x64xf32>,
    } else {
    }
    %c0_22 = arith.constant 0 : index
    %c0_23 = arith.constant 0 : index
    %31 = vector.load %arg10[%c0_22, %c0_23] : memref<1x64xf32, #tpu.memory_space<vmem>>, vector<1x64xf32>
    %cst_24 = arith.constant dense<0.000000e+00> : vector<64xf32>
    %32 = vector.multi_reduction <add>, %26, %cst_24 [0] : vector<8x64xf32> to vector<64xf32>
    %33 = vector.shape_cast %32 : vector<64xf32> to vector<1x64xf32>
    %34 = arith.addf %31, %33 : vector<1x64xf32>
    %c0_25 = arith.constant 0 : index
    %c0_26 = arith.constant 0 : index
    %35 = vector.load %arg10[%c0_25, %c0_26] : memref<1x64xf32, #tpu.memory_space<vmem>>, vector<1x64xf32>
    tpu.vector_store %arg10[%c0_25, %c0_26], %34 {strides = array<i32>} : memref<1x64xf32, #tpu.memory_space<vmem>>, vector<1x64xf32>,
    return
  }
  func.func @transform_0(%arg0: i32) -> (i32, i32) {
    %c0_i32 = arith.constant 0 : i32
    %c0_i32_0 = arith.constant 0 : i32
    %c0_i32_1 = arith.constant 0 : i32
    return %c0_i32, %c0_i32_0 : i32, i32
  }
  func.func @transform_1(%arg0: i32) -> (i32, i32) {
    %c0_i32 = arith.constant 0 : i32
    %c0_i32_0 = arith.constant 0 : i32
    %c0_i32_1 = arith.constant 0 : i32
    return %c0_i32, %c0_i32_0 : i32, i32
  }
  func.func @transform_2(%arg0: i32) -> (i32, i32) {
    %c0_i32 = arith.constant 0 : i32
    %c0_i32_0 = arith.constant 0 : i32
    return %arg0, %c0_i32 : i32, i32
  }
  func.func @transform_3(%arg0: i32) -> (i32, i32) {
    %c0_i32 = arith.constant 0 : i32
    %c0_i32_0 = arith.constant 0 : i32
    %c0_i32_1 = arith.constant 0 : i32
    return %c0_i32, %c0_i32_0 : i32, i32
  }
  func.func @transform_4(%arg0: i32) -> (i32, i32) {
    %c0_i32 = arith.constant 0 : i32
    %c0_i32_0 = arith.constant 0 : i32
    %c0_i32_1 = arith.constant 0 : i32
    return %c0_i32, %c0_i32_0 : i32, i32
  }
  func.func @transform_5(%arg0: i32) -> (i32, i32) {
    %c0_i32 = arith.constant 0 : i32
    %c0_i32_0 = arith.constant 0 : i32
    %c0_i32_1 = arith.constant 0 : i32
    return %c0_i32, %c0_i32_0 : i32, i32
  }
  func.func @transform_6(%arg0: i32) -> (i32, i32) {
    %c0_i32 = arith.constant 0 : i32
    %c0_i32_0 = arith.constant 0 : i32
    %c0_i32_1 = arith.constant 0 : i32
    return %c0_i32, %c0_i32_0 : i32, i32
  }
  func.func @transform_7(%arg0: i32) -> (i32, i32) {
    %c0_i32 = arith.constant 0 : i32
    %c0_i32_0 = arith.constant 0 : i32
    %c0_i32_1 = arith.constant 0 : i32
    return %c0_i32, %c0_i32_0 : i32, i32
  }
  func.func @transform_8(%arg0: i32) -> (i32, i32) {
    %c0_i32 = arith.constant 0 : i32
    %c0_i32_0 = arith.constant 0 : i32
    return %arg0, %c0_i32 : i32, i32
  }
  func.func @transform_9(%arg0: i32) -> (i32, i32) {
    %c0_i32 = arith.constant 0 : i32
    %c0_i32_0 = arith.constant 0 : i32
    %c0_i32_1 = arith.constant 0 : i32
    return %c0_i32, %c0_i32_0 : i32, i32
  }
}

module attributes {stable_mosaic.version = 11 : i64} {
  func.func @_edge_decode_combine_kernel(%arg0: i32, %arg1: memref<8x64xf32, #tpu.memory_space<vmem>>, %arg2: memref<8x64xf32, #tpu.memory_space<vmem>>, %arg3: memref<8x64xf32, #tpu.memory_space<vmem>>, %arg4: memref<1x64xf32, #tpu.memory_space<vmem>>, %arg5: memref<8x2xf32, #tpu.memory_space<vmem>>, %arg6: memref<64x64xf32, #tpu.memory_space<vmem>>, %arg7: memref<64x64xf32, #tpu.memory_space<vmem>>, %arg8: memref<64x64xf32, #tpu.memory_space<vmem>>, %arg9: memref<64x64xf32, #tpu.memory_space<vmem>>, %arg10: memref<1x64xf32, #tpu.memory_space<vmem>>, %arg11: memref<64x6xf32, #tpu.memory_space<vmem>>, %arg12: memref<1x6xf32, #tpu.memory_space<vmem>>, %arg13: memref<8x3xf32, #tpu.memory_space<vmem>>) attributes {dimension_semantics = [#tpu.dimension_semantics<parallel>], iteration_bounds = array<i64: 4>, scalar_prefetch = 0 : i64, scratch_operands = 0 : i64, tpu.core_type = #tpu.core_type<tc>, window_params = [{transform_indices = @transform_0, window_bounds = array<i64: 8, 64>}, {transform_indices = @transform_1, window_bounds = array<i64: 8, 64>}, {transform_indices = @transform_2, window_bounds = array<i64: 8, 64>}, {pipeline_mode = #tpu.pipeline_mode<synchronous>, transform_indices = @transform_3, window_bounds = array<i64: 1, 64>}, {transform_indices = @transform_4, window_bounds = array<i64: 8, 2>}, {pipeline_mode = #tpu.pipeline_mode<synchronous>, transform_indices = @transform_5, window_bounds = array<i64: 64, 64>}, {pipeline_mode = #tpu.pipeline_mode<synchronous>, transform_indices = @transform_6, window_bounds = array<i64: 64, 64>}, {pipeline_mode = #tpu.pipeline_mode<synchronous>, transform_indices = @transform_7, window_bounds = array<i64: 64, 64>}, {pipeline_mode = #tpu.pipeline_mode<synchronous>, transform_indices = @transform_8, window_bounds = array<i64: 64, 64>}, {pipeline_mode = #tpu.pipeline_mode<synchronous>, transform_indices = @transform_9, window_bounds = array<i64: 1, 64>}, {pipeline_mode = #tpu.pipeline_mode<synchronous>, transform_indices = @transform_10, window_bounds = array<i64: 64, 6>}, {pipeline_mode = #tpu.pipeline_mode<synchronous>, transform_indices = @transform_11, window_bounds = array<i64: 1, 6>}, {transform_indices = @transform_12, window_bounds = array<i64: 8, 3>}]} {
    %c0 = arith.constant 0 : index
    %c0_0 = arith.constant 0 : index
    %0 = vector.load %arg1[%c0, %c0_0] : memref<8x64xf32, #tpu.memory_space<vmem>>, vector<8x64xf32>
    %c0_1 = arith.constant 0 : index
    %c0_2 = arith.constant 0 : index
    %1 = vector.load %arg6[%c0_1, %c0_2] : memref<64x64xf32, #tpu.memory_space<vmem>>, vector<64x64xf32>
    %cst = arith.constant dense<0.000000e+00> : vector<8x64xf32>
    %2 = tpu.matmul %0, %1, %cst {dimension_numbers = #tpu.dot_dimension_numbers<[1], [0], [0], [1], [0, 0, 1, 1], [], []>} : vector<8x64xf32>, vector<64x64xf32>, vector<8x64xf32> -> vector<8x64xf32>
    %c0_3 = arith.constant 0 : index
    %c0_4 = arith.constant 0 : index
    %3 = vector.load %arg2[%c0_3, %c0_4] : memref<8x64xf32, #tpu.memory_space<vmem>>, vector<8x64xf32>
    %c0_5 = arith.constant 0 : index
    %c0_6 = arith.constant 0 : index
    %4 = vector.load %arg7[%c0_5, %c0_6] : memref<64x64xf32, #tpu.memory_space<vmem>>, vector<64x64xf32>
    %cst_7 = arith.constant dense<0.000000e+00> : vector<8x64xf32>
    %5 = tpu.matmul %3, %4, %cst_7 {dimension_numbers = #tpu.dot_dimension_numbers<[1], [0], [0], [1], [0, 0, 1, 1], [], []>} : vector<8x64xf32>, vector<64x64xf32>, vector<8x64xf32> -> vector<8x64xf32>
    %6 = arith.addf %2, %5 : vector<8x64xf32>
    %c0_8 = arith.constant 0 : index
    %c0_9 = arith.constant 0 : index
    %7 = vector.load %arg3[%c0_8, %c0_9] : memref<8x64xf32, #tpu.memory_space<vmem>>, vector<8x64xf32>
    %c0_10 = arith.constant 0 : index
    %c0_11 = arith.constant 0 : index
    %8 = vector.load %arg8[%c0_10, %c0_11] : memref<64x64xf32, #tpu.memory_space<vmem>>, vector<64x64xf32>
    %cst_12 = arith.constant dense<0.000000e+00> : vector<8x64xf32>
    %9 = tpu.matmul %7, %8, %cst_12 {dimension_numbers = #tpu.dot_dimension_numbers<[1], [0], [0], [1], [0, 0, 1, 1], [], []>} : vector<8x64xf32>, vector<64x64xf32>, vector<8x64xf32> -> vector<8x64xf32>
    %10 = arith.addf %6, %9 : vector<8x64xf32>
    %c0_13 = arith.constant 0 : index
    %c0_14 = arith.constant 0 : index
    %11 = vector.load %arg4[%c0_13, %c0_14] : memref<1x64xf32, #tpu.memory_space<vmem>>, vector<1x64xf32>
    %c0_15 = arith.constant 0 : index
    %c0_16 = arith.constant 0 : index
    %12 = vector.load %arg9[%c0_15, %c0_16] : memref<64x64xf32, #tpu.memory_space<vmem>>, vector<64x64xf32>
    %cst_17 = arith.constant dense<0.000000e+00> : vector<1x64xf32>
    %13 = tpu.matmul %11, %12, %cst_17 {dimension_numbers = #tpu.dot_dimension_numbers<[1], [0], [0], [1], [0, 0, 1, 1], [], []>} : vector<1x64xf32>, vector<64x64xf32>, vector<1x64xf32> -> vector<1x64xf32>
    %14 = vector.broadcast %13 : vector<1x64xf32> to vector<8x64xf32>
    %15 = arith.addf %10, %14 : vector<8x64xf32>
    %c0_18 = arith.constant 0 : index
    %c0_19 = arith.constant 0 : index
    %16 = vector.load %arg10[%c0_18, %c0_19] : memref<1x64xf32, #tpu.memory_space<vmem>>, vector<1x64xf32>
    %17 = vector.broadcast %16 : vector<1x64xf32> to vector<8x64xf32>
    %18 = arith.addf %15, %17 : vector<8x64xf32>
    %cst_20 = arith.constant 0.000000e+00 : f32
    %19 = vector.broadcast %cst_20 : f32 to vector<8x64xf32>
    %20 = arith.maximumf %18, %19 : vector<8x64xf32>
    %c0_21 = arith.constant 0 : index
    %c0_22 = arith.constant 0 : index
    %21 = vector.load %arg11[%c0_21, %c0_22] : memref<64x6xf32, #tpu.memory_space<vmem>>, vector<64x6xf32>
    %cst_23 = arith.constant dense<0.000000e+00> : vector<8x6xf32>
    %22 = tpu.matmul %20, %21, %cst_23 {dimension_numbers = #tpu.dot_dimension_numbers<[1], [0], [0], [1], [0, 0, 1, 1], [], []>} : vector<8x64xf32>, vector<64x6xf32>, vector<8x6xf32> -> vector<8x6xf32>
    %c0_24 = arith.constant 0 : index
    %c0_25 = arith.constant 0 : index
    %23 = vector.load %arg12[%c0_24, %c0_25] : memref<1x6xf32, #tpu.memory_space<vmem>>, vector<1x6xf32>
    %24 = vector.broadcast %23 : vector<1x6xf32> to vector<8x6xf32>
    %25 = arith.addf %22, %24 : vector<8x6xf32>
    %26 = vector.extract_strided_slice %25 {offsets = [0, 0], sizes = [8, 3], strides = [1, 1]} : vector<8x6xf32> to vector<8x3xf32>
    %27 = vector.extract_strided_slice %25 {offsets = [0, 3], sizes = [8, 3], strides = [1, 1]} : vector<8x6xf32> to vector<8x3xf32>
    %c0_26 = arith.constant 0 : index
    %c0_27 = arith.constant 0 : index
    %28 = vector.load %arg5[%c0_26, %c0_27] : memref<8x2xf32, #tpu.memory_space<vmem>>, vector<8x2xf32>
    %29 = vector.extract_strided_slice %28 {offsets = [0, 0], sizes = [8, 1], strides = [1, 1]} : vector<8x2xf32> to vector<8x1xf32>
    %30 = vector.extract_strided_slice %28 {offsets = [0, 1], sizes = [8, 1], strides = [1, 1]} : vector<8x2xf32> to vector<8x1xf32>
    %31 = vector.broadcast %30 : vector<8x1xf32> to vector<8x3xf32>
    %32 = arith.mulf %27, %31 : vector<8x3xf32>
    %33 = vector.broadcast %29 : vector<8x1xf32> to vector<8x3xf32>
    %34 = arith.subf %33, %32 : vector<8x3xf32>
    %35 = arith.mulf %26, %34 : vector<8x3xf32>
    %c0_28 = arith.constant 0 : index
    %c0_29 = arith.constant 0 : index
    %36 = vector.load %arg13[%c0_28, %c0_29] : memref<8x3xf32, #tpu.memory_space<vmem>>, vector<8x3xf32>
    tpu.vector_store %arg13[%c0_28, %c0_29], %35 {strides = array<i32>} : memref<8x3xf32, #tpu.memory_space<vmem>>, vector<8x3xf32>,
    return
  }
  func.func @transform_0(%arg0: i32) -> (i32, i32) {
    %c0_i32 = arith.constant 0 : i32
    %c0_i32_0 = arith.constant 0 : i32
    return %arg0, %c0_i32 : i32, i32
  }
  func.func @transform_1(%arg0: i32) -> (i32, i32) {
    %c0_i32 = arith.constant 0 : i32
    %c0_i32_0 = arith.constant 0 : i32
    return %arg0, %c0_i32 : i32, i32
  }
  func.func @transform_2(%arg0: i32) -> (i32, i32) {
    %c0_i32 = arith.constant 0 : i32
    %c0_i32_0 = arith.constant 0 : i32
    return %arg0, %c0_i32 : i32, i32
  }
  func.func @transform_3(%arg0: i32) -> (i32, i32) {
    %c0_i32 = arith.constant 0 : i32
    %c0_i32_0 = arith.constant 0 : i32
    %c0_i32_1 = arith.constant 0 : i32
    return %c0_i32, %c0_i32_0 : i32, i32
  }
  func.func @transform_4(%arg0: i32) -> (i32, i32) {
    %c0_i32 = arith.constant 0 : i32
    %c0_i32_0 = arith.constant 0 : i32
    return %arg0, %c0_i32 : i32, i32
  }
  func.func @transform_5(%arg0: i32) -> (i32, i32) {
    %c0_i32 = arith.constant 0 : i32
    %c0_i32_0 = arith.constant 0 : i32
    %c0_i32_1 = arith.constant 0 : i32
    return %c0_i32, %c0_i32_0 : i32, i32
  }
  func.func @transform_6(%arg0: i32) -> (i32, i32) {
    %c0_i32 = arith.constant 0 : i32
    %c0_i32_0 = arith.constant 0 : i32
    %c0_i32_1 = arith.constant 0 : i32
    return %c0_i32, %c0_i32_0 : i32, i32
  }
  func.func @transform_7(%arg0: i32) -> (i32, i32) {
    %c0_i32 = arith.constant 0 : i32
    %c0_i32_0 = arith.constant 0 : i32
    %c0_i32_1 = arith.constant 0 : i32
    return %c0_i32, %c0_i32_0 : i32, i32
  }
  func.func @transform_8(%arg0: i32) -> (i32, i32) {
    %c0_i32 = arith.constant 0 : i32
    %c0_i32_0 = arith.constant 0 : i32
    %c0_i32_1 = arith.constant 0 : i32
    return %c0_i32, %c0_i32_0 : i32, i32
  }
  func.func @transform_9(%arg0: i32) -> (i32, i32) {
    %c0_i32 = arith.constant 0 : i32
    %c0_i32_0 = arith.constant 0 : i32
    %c0_i32_1 = arith.constant 0 : i32
    return %c0_i32, %c0_i32_0 : i32, i32
  }
  func.func @transform_10(%arg0: i32) -> (i32, i32) {
    %c0_i32 = arith.constant 0 : i32
    %c0_i32_0 = arith.constant 0 : i32
    %c0_i32_1 = arith.constant 0 : i32
    return %c0_i32, %c0_i32_0 : i32, i32
  }
  func.func @transform_11(%arg0: i32) -> (i32, i32) {
    %c0_i32 = arith.constant 0 : i32
    %c0_i32_0 = arith.constant 0 : i32
    %c0_i32_1 = arith.constant 0 : i32
    return %c0_i32, %c0_i32_0 : i32, i32
  }
  func.func @transform_12(%arg0: i32) -> (i32, i32) {
    %c0_i32 = arith.constant 0 : i32
    %c0_i32_0 = arith.constant 0 : i32
    return %arg0, %c0_i32 : i32, i32
  }
}

</mosaic_0001>

<llo_original>
// kernel: net4_forward.6
$region0: #{net4_forward.6}
  #allocation0 [shape = 'u32[]', space=smem, size = 0x4, offset = 0x4, fixed_abs, tag = 'smem constant byte address 0x4 - core index']
  #allocation1 [shape = 'u32[144,128]{1,0:T(1,128)}', space=vmem, size = 0x12000, scoped, tag = 'internal scratch']
  %s0 = inlined_call_operand.vmem [shape: f32[1,64], index: 0, kind: input, shape index: {}]
  %s1 = inlined_call_operand.vmem [shape: f32[1,64], index: 1, kind: input, shape index: {}]
  %s2 = inlined_call_operand.vmem [shape: f32[1,32], index: 2, kind: input, shape index: {}]
  %s3 = inlined_call_operand.hbm [shape: f32[64,64], index: 3, kind: input, shape index: {}]
  %s4 = inlined_call_operand.hbm [shape: f32[64,64], index: 4, kind: input, shape index: {}]
  %s5 = inlined_call_operand.hbm [shape: f32[32,64], index: 5, kind: input, shape index: {}]
  %s6 = inlined_call_operand.vmem [shape: f32[1,64], index: 6, kind: input, shape index: {}]
  %s7 = inlined_call_operand.hbm [shape: f32[1,64], index: 7, kind: output, shape index: {}]
  %s8 = sld [smem:[#allocation0]]
  $region50: #{net4_forward.6} parent=0
    _
  %s10 = ssub.s32 1, %s8
  %s11 = scalar_select 0, %s10, %s8
  $region1: #{net4_forward.6} parent=0
    #allocation2 [shape = 'u8[32768]{0}', space=vmem, size = 0x8000, scoped, tag = 'input window, operand 3, single buffered']
    #allocation3 [shape = 's32[1]{0}', space=sflag, size = 0x4, scoped, tag = 'scoped memory for net4_forward.6']
    #allocation4 [shape = 's32[1]{0}', space=sflag, size = 0x4, scoped, tag = 'scoped memory for net4_forward.6']
    #allocation5 [shape = 'u8[32768]{0}', space=vmem, size = 0x8000, scoped, tag = 'input window, operand 4, single buffered']
    #allocation6 [shape = 's32[1]{0}', space=sflag, size = 0x4, scoped, tag = 'scoped memory for net4_forward.6']
    #allocation7 [shape = 'u8[16384]{0}', space=vmem, size = 0x4000, scoped, tag = 'input window, operand 5, single buffered']
    #allocation8 [shape = 'u8[512]{0}', space=vmem, size = 0x400, scoped, tag = 'output window, operand 0, single buffered']
    %12 = vsyncpa [#allocation3], 0
    %13 = vsyncpa [#allocation6], 0
    %14 = vsyncpa [#allocation4], 0
    // Predicated region
    $region2: #{net4_forward.6} parent=1 // pred_check
      _
    $region3: #{net4_forward.6} parent=1 // pred_check_branch
      %16 = sbr.rel (0) target = $region5
    $region4: #{net4_forward.6} parent=1 // pred_region
      _
    $region5: #{net4_forward.6} parent=1 // pred_fallthru
      _
    // Predicated region
    $region6: #{net4_forward.6} parent=1 // pred_check
      _
    $region7: #{net4_forward.6} parent=1 // pred_check_branch
      %18 = sbr.rel (0) target = $region9
    $region8: #{net4_forward.6} parent=1 // pred_region
      _
    $region9: #{net4_forward.6} parent=1 // pred_fallthru
      _
    // Predicated region
    $region10: #{net4_forward.6} parent=1 // pred_check
      _
    $region11: #{net4_forward.6} parent=1 // pred_check_branch
      %20 = sbr.rel (0) target = $region13
    $region12: #{net4_forward.6} parent=1 // pred_region
      _
    $region13: #{net4_forward.6} parent=1 // pred_fallthru
      _
    // Predicated region
    $region14: #{net4_forward.6} parent=1 // pred_check
      _
    $region15: #{net4_forward.6} parent=1 // pred_check_branch
      %22 = sbr.rel (0) target = $region17
    $region16: #{net4_forward.6} parent=1 // pred_region
      %s24 = ssub.s32 1024, 1024
      %25 = vsyncadd [#allocation3], %s24
      %s26 = sshll.u32 [#allocation2], 4
      %s27 = int_to_ptr.vmem [resolvable:$true] %s26
      %32 = dma.hbm_to_vmem [thread:$0]  %s3, 1024, %s27, [#allocation3], 128, 128, 8
    $region17: #{net4_forward.6} parent=1 // pred_fallthru
      _
    // Predicated region
    $region18: #{net4_forward.6} parent=1 // pred_check
      _
    $region19: #{net4_forward.6} parent=1 // pred_check_branch
      %34 = sbr.rel (0) target = $region21
    $region20: #{net4_forward.6} parent=1 // pred_region
      %s36 = ssub.s32 1024, 1024
      %37 = vsyncadd [#allocation6], %s36
      %s38 = sshll.u32 [#allocation5], 4
      %s39 = int_to_ptr.vmem [resolvable:$true] %s38
      %44 = dma.hbm_to_vmem [thread:$0]  %s4, 1024, %s39, [#allocation6], 128, 128, 8
    $region21: #{net4_forward.6} parent=1 // pred_fallthru
      _
    // Predicated region
    $region22: #{net4_forward.6} parent=1 // pred_check
      _
    $region23: #{net4_forward.6} parent=1 // pred_check_branch
      %46 = sbr.rel (0) target = $region25
    $region24: #{net4_forward.6} parent=1 // pred_region
      %s48 = ssub.s32 512, 512
      %49 = vsyncadd [#allocation6], %s48
      %s50 = sshll.u32 [#allocation7], 4
      %s51 = int_to_ptr.vmem [resolvable:$true] %s50
      %56 = dma.hbm_to_vmem [thread:$0]  %s5, 512, %s51, [#allocation6], 128, 128, 8
    $region25: #{net4_forward.6} parent=1 // pred_fallthru
      _
    // Predicated region
    $region26: #{net4_forward.6} parent=1 // pred_check
      _
    $region27: #{net4_forward.6} parent=1 // pred_check_branch
      %58 = sbr.rel (0) target = $region29
    $region28: #{net4_forward.6} parent=1 // pred_region
      _
    $region29: #{net4_forward.6} parent=1 // pred_fallthru
      _
    // Predicated region
    $region30: #{net4_forward.6} parent=1 // pred_check
      _
    $region31: #{net4_forward.6} parent=1 // pred_check_branch
      %60 = sbr.rel (0) target = $region33
    $region32: #{net4_forward.6} parent=1 // pred_region
      %61 = dma.done [#allocation3], 1024
    $region33: #{net4_forward.6} parent=1 // pred_fallthru
      _
    // Predicated region
    $region34: #{net4_forward.6} parent=1 // pred_check
      _
    $region35: #{net4_forward.6} parent=1 // pred_check_branch
      %63 = sbr.rel (0) target = $region37
    $region36: #{net4_forward.6} parent=1 // pred_region
      %64 = dma.done [#allocation6], 1024
    $region37: #{net4_forward.6} parent=1 // pred_fallthru
      _
    // Predicated region
    $region38: #{net4_forward.6} parent=1 // pred_check
      _
    $region39: #{net4_forward.6} parent=1 // pred_check_branch
      %66 = sbr.rel (0) target = $region41
    $region40: #{net4_forward.6} parent=1 // pred_region
      %67 = dma.done [#allocation6], 512
    $region41: #{net4_forward.6} parent=1 // pred_fallthru
      _
    %v68 = vld [vmem:[%s0] sm:$0x1]
    %v69 = vmul.f32 %v68, 0.03125
    %v70 = vld [vmem:[%s1] sm:$0x1]
    %v71 = vmul.f32 %v70, 0.0625
    %v72 = vld [vmem:[#allocation2] sm:$0xff]
    %v73 = vld [vmem:[#allocation2 + $0x8] sm:$0xff]
    %v74 = vld [vmem:[#allocation2 + $0x10] sm:$0xff]
    %v75 = vld [vmem:[#allocation2 + $0x18] sm:$0xff]
    %v76 = vld [vmem:[#allocation2 + $0x20] sm:$0xff]
    %v77 = vld [vmem:[#allocation2 + $0x28] sm:$0xff]
    %v78 = vld [vmem:[#allocation2 + $0x30] sm:$0xff]
    %v79 = vld [vmem:[#allocation2 + $0x38] sm:$0xff]
    %v80 = vld [vmem:[#allocation5] sm:$0xff]
    %v81 = vld [vmem:[#allocation5 + $0x8] sm:$0xff]
    %v82 = vld [vmem:[#allocation5 + $0x10] sm:$0xff]
    %v83 = vld [vmem:[#allocation5 + $0x18] sm:$0xff]
    %v84 = vld [vmem:[#allocation5 + $0x20] sm:$0xff]
    %v85 = vld [vmem:[#allocation5 + $0x28] sm:$0xff]
    %v86 = vld [vmem:[#allocation5 + $0x30] sm:$0xff]
    %v87 = vld [vmem:[#allocation5 + $0x38] sm:$0xff]
    %vm88 = vcmask 523264
    %v90 = vsel %vm88, %v71, 0
    %92 = vmatprep.subr.mxu0 0.0
    %93 = vmatpush1.msra.mxu0 %v80
    %94 = vmatprep.subr.mxu0 0.0
    %95 = vmatpush1.msra.mxu0 %v81
    %96 = vmatprep.subr.mxu0 0.0
    %97 = vmatpush1.msra.mxu0 %v82
    %98 = vmatprep.subr.mxu0 0.0
    %99 = vmatpush1.msra.mxu0 %v83
    %100 = vmatprep.subr.mxu0 0.0
    %101 = vmatpush1.msra.mxu0 %v84
    %102 = vmatprep.subr.mxu0 0.0
    %103 = vmatpush1.msra.mxu0 %v85
    %104 = vmatprep.subr.mxu0 0.0
    %105 = vmatpush1.msra.mxu0 %v86
    %106 = vmatprep.subr.mxu0 0.0
    %107 = vmatpush1.msra.mxu0 %v87
    %108 = vmatprep.subr.mxu0 0.0
    %109 = vmatpush1.msra.mxu0 0.0
    %110 = vmatprep.subr.mxu0 0.0
    %111 = vmatpush1.msra.mxu0 0.0
    %112 = vmatprep.subr.mxu0 0.0
    %113 = vmatpush1.msra.mxu0 0.0
    %114 = vmatprep.subr.mxu0 0.0
    %115 = vmatpush1.msra.mxu0 0.0
    %116 = vmatprep.subr.mxu0 0.0
    %117 = vmatpush1.msra.mxu0 0.0
    %118 = vmatprep.subr.mxu0 0.0
    %119 = vmatpush1.msra.mxu0 0.0
    %120 = vmatprep.subr.mxu0 0.0
    %121 = vmatpush1.msra.mxu0 0.0
    %122 = vmatprep.subr.mxu0 0.0
    %123 = vmatpush1.msra.mxu0 0.0
    %124 = vmatprep.subr.mxu0 0.0
    %125 = vmatpush1.msra.mxu0 0.0
    %126 = vmatprep.subr.mxu0 0.0
    %127 = vmatpush1.msra.mxu0 0.0
    %128 = vmatprep.subr.mxu0 0.0
    %129 = vmatpush1.msra.mxu0 0.0
    %130 = vmatprep.subr.mxu0 0.0
    %131 = vmatpush1.msra.mxu0 0.0
    %132 = vmatprep.subr.mxu0 0.0
    %133 = vmatpush1.msra.mxu0 0.0
    %134 = vmatprep.subr.mxu0 0.0
    %135 = vmatpush1.msra.mxu0 0.0
    %136 = vmatprep.subr.mxu0 0.0
    %137 = vmatpush1.msra.mxu0 0.0
    %138 = vmatprep.subr.mxu0 0.0
    %139 = vmatpush1.msra.mxu0 0.0
    %140 = vmatprep.subr.mxu0 0.0
    %141 = vmatpush1.msra.mxu0 0.0
    %142 = vmatprep.subr.mxu0 0.0
    %143 = vmatpush1.msra.mxu0 0.0
    %144 = vmatprep.subr.mxu0 0.0
    %145 = vmatpush1.msra.mxu0 0.0
    %146 = vmatprep.subr.mxu0 0.0
    %147 = vmatpush1.msra.mxu0 0.0
    %148 = vmatprep.subr.mxu0 0.0
    %149 = vmatpush1.msra.mxu0 0.0
    %150 = vmatprep.subr.mxu0 0.0
    %151 = vmatpush1.msra.mxu0 0.0
    %152 = vmatprep.subr.mxu0 0.0
    %153 = vmatpush1.msra.mxu0 0.0
    %154 = vmatprep.subr.mxu0 0.0
    %155 = vmatpush1.msra.mxu0 0.0
    %156 = vmatprep.mubr.f32.mxu0 0.0
    %157 = vmatmul.mubr.f32.gmra.mrb[0].mxu0 %v90
    %v158 = vpop.f32.mrb[0].mxu0
    %v159 = vadd.f32 0.0, %v158
    %v160 = vpop.f32.mrb[0].mxu0
    %161 = vdwg.mxu0
    %v163 = vsel %vm88, %v69, 0
    %165 = vmatprep.subr.mxu0 0.0
    %166 = vmatpush1.msra.mxu0 %v72
    %167 = vmatprep.subr.mxu0 0.0
    %168 = vmatpush1.msra.mxu0 %v73
    %169 = vmatprep.subr.mxu0 0.0
    %170 = vmatpush1.msra.mxu0 %v74
    %171 = vmatprep.subr.mxu0 0.0
    %172 = vmatpush1.msra.mxu0 %v75
    %173 = vmatprep.subr.mxu0 0.0
    %174 = vmatpush1.msra.mxu0 %v76
    %175 = vmatprep.subr.mxu0 0.0
    %176 = vmatpush1.msra.mxu0 %v77
    %177 = vmatprep.subr.mxu0 0.0
    %178 = vmatpush1.msra.mxu0 %v78
    %179 = vmatprep.subr.mxu0 0.0
    %180 = vmatpush1.msra.mxu0 %v79
    %181 = vmatprep.subr.mxu0 0.0
    %182 = vmatpush1.msra.mxu0 0.0
    %183 = vmatprep.subr.mxu0 0.0
    %184 = vmatpush1.msra.mxu0 0.0
    %185 = vmatprep.subr.mxu0 0.0
    %186 = vmatpush1.msra.mxu0 0.0
    %187 = vmatprep.subr.mxu0 0.0
    %188 = vmatpush1.msra.mxu0 0.0
    %189 = vmatprep.subr.mxu0 0.0
    %190 = vmatpush1.msra.mxu0 0.0
    %191 = vmatprep.subr.mxu0 0.0
    %192 = vmatpush1.msra.mxu0 0.0
    %193 = vmatprep.subr.mxu0 0.0
    %194 = vmatpush1.msra.mxu0 0.0
    %195 = vmatprep.subr.mxu0 0.0
    %196 = vmatpush1.msra.mxu0 0.0
    %197 = vmatprep.subr.mxu0 0.0
    %198 = vmatpush1.msra.mxu0 0.0
    %199 = vmatprep.subr.mxu0 0.0
    %200 = vmatpush1.msra.mxu0 0.0
    %201 = vmatprep.subr.mxu0 0.0
    %202 = vmatpush1.msra.mxu0 0.0
    %203 = vmatprep.subr.mxu0 0.0
    %204 = vmatpush1.msra.mxu0 0.0
    %205 = vmatprep.subr.mxu0 0.0
    %206 = vmatpush1.msra.mxu0 0.0
    %207 = vmatprep.subr.mxu0 0.0
    %208 = vmatpush1.msra.mxu0 0.0
    %209 = vmatprep.subr.mxu0 0.0
    %210 = vmatpush1.msra.mxu0 0.0
    %211 = vmatprep.subr.mxu0 0.0
    %212 = vmatpush1.msra.mxu0 0.0
    %213 = vmatprep.subr.mxu0 0.0
    %214 = vmatpush1.msra.mxu0 0.0
    %215 = vmatprep.subr.mxu0 0.0
    %216 = vmatpush1.msra.mxu0 0.0
    %217 = vmatprep.subr.mxu0 0.0
    %218 = vmatpush1.msra.mxu0 0.0
    %219 = vmatprep.subr.mxu0 0.0
    %220 = vmatpush1.msra.mxu0 0.0
    %221 = vmatprep.subr.mxu0 0.0
    %222 = vmatpush1.msra.mxu0 0.0
    %223 = vmatprep.subr.mxu0 0.0
    %224 = vmatpush1.msra.mxu0 0.0
    %225 = vmatprep.subr.mxu0 0.0
    %226 = vmatpush1.msra.mxu0 0.0
    %227 = vmatprep.subr.mxu0 0.0
    %228 = vmatpush1.msra.mxu0 0.0
    %229 = vmatprep.mubr.f32.mxu0 0.0
    %230 = vmatmul.mubr.f32.gmra.mrb[0].mxu0 %v163
    %v231 = vpop.f32.mrb[0].mxu0
    %v232 = vadd.f32 %v159, %v231
    %v233 = vpop.f32.mrb[0].mxu0
    %234 = vdwg.mxu0
    %v235 = vld [vmem:[%s2] sm:$0x1]
    %v236 = vld [vmem:[#allocation7] sm:$0xff]
    %v237 = vld [vmem:[#allocation7 + $0x8] sm:$0xff]
    %v238 = vld [vmem:[#allocation7 + $0x10] sm:$0xff]
    %v239 = vld [vmem:[#allocation7 + $0x18] sm:$0xff]
    %vm240 = vcmask 261120
    %v242 = vsel %vm240, %v235, 0
    %244 = vmatprep.subr.mxu0 0.0
    %245 = vmatpush1.msra.mxu0 %v236
    %246 = vmatprep.subr.mxu0 0.0
    %247 = vmatpush1.msra.mxu0 %v237
    %248 = vmatprep.subr.mxu0 0.0
    %249 = vmatpush1.msra.mxu0 %v238
    %250 = vmatprep.subr.mxu0 0.0
    %251 = vmatpush1.msra.mxu0 %v239
    %252 = vmatprep.subr.mxu0 0.0
    %253 = vmatpush1.msra.mxu0 0.0
    %254 = vmatprep.subr.mxu0 0.0
    %255 = vmatpush1.msra.mxu0 0.0
    %256 = vmatprep.subr.mxu0 0.0
    %257 = vmatpush1.msra.mxu0 0.0
    %258 = vmatprep.subr.mxu0 0.0
    %259 = vmatpush1.msra.mxu0 0.0
    %260 = vmatprep.subr.mxu0 0.0
    %261 = vmatpush1.msra.mxu0 0.0
    %262 = vmatprep.subr.mxu0 0.0
    %263 = vmatpush1.msra.mxu0 0.0
    %264 = vmatprep.subr.mxu0 0.0
    %265 = vmatpush1.msra.mxu0 0.0
    %266 = vmatprep.subr.mxu0 0.0
    %267 = vmatpush1.msra.mxu0 0.0
    %268 = vmatprep.subr.mxu0 0.0
    %269 = vmatpush1.msra.mxu0 0.0
    %270 = vmatprep.subr.mxu0 0.0
    %271 = vmatpush1.msra.mxu0 0.0
    %272 = vmatprep.subr.mxu0 0.0
    %273 = vmatpush1.msra.mxu0 0.0
    %274 = vmatprep.subr.mxu0 0.0
    %275 = vmatpush1.msra.mxu0 0.0
    %276 = vmatprep.subr.mxu0 0.0
    %277 = vmatpush1.msra.mxu0 0.0
    %278 = vmatprep.subr.mxu0 0.0
    %279 = vmatpush1.msra.mxu0 0.0
    %280 = vmatprep.subr.mxu0 0.0
    %281 = vmatpush1.msra.mxu0 0.0
    %282 = vmatprep.subr.mxu0 0.0
    %283 = vmatpush1.msra.mxu0 0.0
    %284 = vmatprep.subr.mxu0 0.0
    %285 = vmatpush1.msra.mxu0 0.0
    %286 = vmatprep.subr.mxu0 0.0
    %287 = vmatpush1.msra.mxu0 0.0
    %288 = vmatprep.subr.mxu0 0.0
    %289 = vmatpush1.msra.mxu0 0.0
    %290 = vmatprep.subr.mxu0 0.0
    %291 = vmatpush1.msra.mxu0 0.0
    %292 = vmatprep.subr.mxu0 0.0
    %293 = vmatpush1.msra.mxu0 0.0
    %294 = vmatprep.subr.mxu0 0.0
    %295 = vmatpush1.msra.mxu0 0.0
    %296 = vmatprep.subr.mxu0 0.0
    %297 = vmatpush1.msra.mxu0 0.0
    %298 = vmatprep.subr.mxu0 0.0
    %299 = vmatpush1.msra.mxu0 0.0
    %300 = vmatprep.subr.mxu0 0.0
    %301 = vmatpush1.msra.mxu0 0.0
    %302 = vmatprep.subr.mxu0 0.0
    %303 = vmatpush1.msra.mxu0 0.0
    %304 = vmatprep.subr.mxu0 0.0
    %305 = vmatpush1.msra.mxu0 0.0
    %306 = vmatprep.subr.mxu0 0.0
    %307 = vmatpush1.msra.mxu0 0.0
    %308 = vmatprep.mubr.f32.mxu0 0.0
    %309 = vmatmul.mubr.f32.gmra.mrb[0].mxu0 %v242
    %v310 = vpop.f32.mrb[0].mxu0
    %v311 = vadd.f32 0.0, %v310
    %v312 = vpop.f32.mrb[0].mxu0
    %313 = vdwg.mxu0
    %v314 = vadd.f32 %v232, %v311
    %v315 = vld [vmem:[%s6] sm:$0x1]
    %v316 = vadd.f32 %v314, %v315
    %v317 = vmax.f32 %v316, 0.0
    %vm318 = vcmask 516096
    %319 = vst.msk [vmem:[#allocation8] sm:$0x1] %vm318, %v317
    // Predicated region
    $region42: #{net4_forward.6} parent=1 // pred_check
      _
    $region43: #{net4_forward.6} parent=1 // pred_check_branch
      %321 = sbr.rel (0) target = $region45
    $region44: #{net4_forward.6} parent=1 // pred_region
      %s323 = ssub.s32 16, 16
      %324 = vsyncadd [#allocation4], %s323
      %s326 = sshll.u32 [#allocation8], 4
      %s327 = int_to_ptr.vmem [resolvable:$true] %s326
      %329 = dma.vmem_to_hbm [thread:$0]  %s327, 16, %s7, [#allocation4]
    $region45: #{net4_forward.6} parent=1 // pred_fallthru
      _
    // Predicated region
    $region46: #{net4_forward.6} parent=1 // pred_check
      _
    $region47: #{net4_forward.6} parent=1 // pred_check_branch
      %331 = sbr.rel (0) target = $region49
    $region48: #{net4_forward.6} parent=1 // pred_region
      %332 = dma.done [#allocation4], 16
    $region49: #{net4_forward.6} parent=1 // pred_fallthru
      _
    %333 = vsyncpa [#allocation3], 1
    %334 = vsyncpa [#allocation6], 1
    %335 = vsyncpa [#allocation4], 1

// kernel: net4_forward.4
$region0: #{net4_forward.4}
  #allocation0 [shape = 'u32[]', space=smem, size = 0x4, offset = 0x4, fixed_abs, tag = 'smem constant byte address 0x4 - core index']
  #allocation1 [shape = 'u32[144,128]{1,0:T(1,128)}', space=vmem, size = 0x12000, scoped, tag = 'internal scratch']
  %s0 = inlined_call_operand.hbm [shape: f32[32,6], index: 0, kind: input, shape index: {}]
  %s1 = inlined_call_operand.hbm [shape: f32[32,4], index: 1, kind: input, shape index: {}]
  %s2 = inlined_call_operand.hbm [shape: f32[32,4], index: 2, kind: input, shape index: {}]
  %s3 = inlined_call_operand.hbm [shape: f32[1,32], index: 3, kind: input, shape index: {}]
  %s4 = inlined_call_operand.hbm [shape: f32[6,64], index: 4, kind: input, shape index: {}]
  %s5 = inlined_call_operand.hbm [shape: f32[4,64], index: 5, kind: input, shape index: {}]
  %s6 = inlined_call_operand.hbm [shape: f32[4,64], index: 6, kind: input, shape index: {}]
  %s7 = inlined_call_operand.hbm [shape: f32[32,64], index: 7, kind: input, shape index: {}]
  %s8 = inlined_call_operand.hbm [shape: f32[1,64], index: 8, kind: input, shape index: {}]
  %s9 = inlined_call_operand.hbm [shape: f32[32,64], index: 9, kind: output, shape index: {0}]
  %s10 = inlined_call_operand.hbm [shape: f32[1,64], index: 10, kind: output, shape index: {1}]
  %11 = xla_tuple %s9, %s10
  %s12 = sld [smem:[#allocation0]]
  $region117: #{net4_forward.4} parent=0
    _
  %s14 = ssub.s32 1, %s12
  %s15 = scalar_select 0, %s14, %s12
  $region1: #{net4_forward.4} parent=0
    #allocation2 [shape = 'u8[8192]{0}', space=vmem, size = 0x2000, scoped, tag = 'input window, operand 0']
    #allocation3 [shape = 's32[2]{0}', space=sflag, size = 0x8, scoped, tag = 'scoped memory for net4_forward.4']
    #allocation4 [shape = 's32[2]{0}', space=sflag, size = 0x8, scoped, tag = 'scoped memory for net4_forward.4']
    #allocation5 [shape = 'u8[8192]{0}', space=vmem, size = 0x2000, scoped, tag = 'input window, operand 1']
    #allocation6 [shape = 's32[2]{0}', space=sflag, size = 0x8, scoped, tag = 'scoped memory for net4_forward.4']
    #allocation7 [shape = 'u8[8192]{0}', space=vmem, size = 0x2000, scoped, tag = 'input window, operand 2']
    #allocation8 [shape = 'u8[512]{0}', space=vmem, size = 0x400, scoped, tag = 'input window, operand 3, single buffered']
    #allocation9 [shape = 's32[1]{0}', space=sflag, size = 0x4, scoped, tag = 'scoped memory for net4_forward.4']
    #allocation10 [shape = 'u8[4096]{0}', space=vmem, size = 0x1000, scoped, tag = 'input window, operand 4, single buffered']
    #allocation11 [shape = 'u8[2048]{0}', space=vmem, size = 0x800, scoped, tag = 'input window, operand 5, single buffered']
    #allocation12 [shape = 's32[1]{0}', space=sflag, size = 0x4, scoped, tag = 'scoped memory for net4_forward.4']
    #allocation13 [shape = 'u8[2048]{0}', space=vmem, size = 0x800, scoped, tag = 'input window, operand 6, single buffered']
    #allocation14 [shape = 'u8[16384]{0}', space=vmem, size = 0x4000, scoped, tag = 'input window, operand 7, single buffered']
    #allocation15 [shape = 's32[1]{0}', space=sflag, size = 0x4, scoped, tag = 'scoped memory for net4_forward.4']
    #allocation16 [shape = 'u8[512]{0}', space=vmem, size = 0x400, scoped, tag = 'input window, operand 8, single buffered']
    #allocation17 [shape = 'u8[8192]{0}', space=vmem, size = 0x2000, scoped, tag = 'output window, operand 0']
    #allocation18 [shape = 'u8[512]{0}', space=vmem, size = 0x400, scoped, tag = 'output window, operand 1, single buffered']
    #allocation19 [shape = 's32[1]{0}', space=sflag, size = 0x4, scoped, tag = 'scoped memory for net4_forward.4']
    %16 = vsyncpa [#allocation3], 0
    %s17 = scalar_lea.sflag [#allocation3], 1
    %18 = vsyncpa %s17, 0
    %19 = vsyncpa [#allocation6], 0
    %s20 = scalar_lea.sflag [#allocation6], 1
    %21 = vsyncpa %s20, 0
    %22 = vsyncpa [#allocation9], 0
    %23 = vsyncpa [#allocation12], 0
    %24 = vsyncpa [#allocation15], 0
    %25 = vsyncpa [#allocation4], 0
    %s26 = scalar_lea.sflag [#allocation4], 1
    %27 = vsyncpa %s26, 0
    %28 = vsyncpa [#allocation19], 0
    loop: start=0, step=1, limit=6
    $region2: #{net4_forward.4} parent=1 // loop_pre_header
      _
    $region3: #{net4_forward.4} parent=1 // loop_header
      %s30 = sphi 0, %s34
      %p31 = scmp.ge.s32.totalorder %s30, 6
      %s40 = sphi 0, %s42
      %s43 = sphi 0, %s40
      %s44 = sphi 0, %s43
      %s60 = sphi 0, %s44
      %s66 = sphi 0, %s68
      %s69 = sphi 0, %s66
      %s70 = sphi 0, %s69
      %s86 = sphi 0, %s70
      %s92 = sphi 0, %s94
      %s95 = sphi 0, %s92
      %s96 = sphi 0, %s95
      %s112 = sphi 0, %s96
      %s116 = sphi 0, %s116
      %s118 = sphi 0, %s116
      %s119 = sphi 0, %s118
      %s133 = sphi 0, %s119
      %s137 = sphi 0, %s137
      %s139 = sphi 0, %s137
      %s140 = sphi 0, %s139
      %s154 = sphi 0, %s140
      %s158 = sphi 0, %s158
      %s160 = sphi 0, %s158
      %s161 = sphi 0, %s160
      %s175 = sphi 0, %s161
      %s179 = sphi 0, %s179
      %s181 = sphi 0, %s179
      %s182 = sphi 0, %s181
      %s196 = sphi 0, %s182
      %s200 = sphi 0, %s200
      %s202 = sphi 0, %s200
      %s203 = sphi 0, %s202
      %s217 = sphi 0, %s203
      %s221 = sphi 0, %s221
      %s223 = sphi 0, %s221
      %s224 = sphi 0, %s223
      %s238 = sphi 0, %s224
      %s244 = sphi 0, %s246
      %s247 = sphi 0, %s244
      %s248 = sphi 0, %s247
      %s264 = sphi 0, %s248
      %s268 = sphi 0, %s268
      %s270 = sphi 0, %s268
      %s271 = sphi 0, %s270
      %s285 = sphi 0, %s271
    $region4: #{net4_forward.4} parent=1 // loop_header_branch
      %33 = sbr.rel (%p31) target = $region8
    $region5: #{net4_forward.4} parent=1 // loop_body
      %s35 = ssub.s32 %s30, 1
      %s36 = ssub.s32 %s30, 2
      %s37 = sadd.s32 %s30, 1
      %s38 = ssub.s32 %s30, %s37
      %p39 = scmp.eq.s32.totalorder %s38, 0
      %s41 = sadd.s32 %s40, 1
      %s42 = scalar_select %p39, %s40, %s41
      %p45 = pneg %p39
      %p46 = scmp.eq.s32.totalorder %s30, 3
      %p47 = por %p45, %p46
      %p48 = scmp.ne.s32.totalorder %s40, %s43
      %p49 = scmp.eq.s32.totalorder %s30, 0
      %p50 = por %p48, %p49
      %p51 = scmp.ne.s32.totalorder %s40, %s43
      %p52 = scmp.eq.s32.totalorder %s35, 3
      %p53 = por %p51, %p52
      %p54 = scmp.ne.s32.totalorder %s43, %s44
      %p55 = scmp.eq.s32.totalorder %s35, 0
      %p56 = por %p54, %p55
      %p57 = scmp.ne.s32.totalorder %s43, %s44
      %p58 = scmp.eq.s32.totalorder %s36, 3
      %p59 = por %p57, %p58
      %p61 = scmp.ne.s32.totalorder %s44, %s60
      %p62 = scmp.eq.s32.totalorder %s36, 0
      %p63 = por %p61, %p62
      %s64 = ssub.s32 %s30, %s37
      %p65 = scmp.eq.s32.totalorder %s64, 0
      %s67 = sadd.s32 %s66, 1
      %s68 = scalar_select %p65, %s66, %s67
      %p71 = pneg %p65
      %p72 = scmp.eq.s32.totalorder %s30, 3
      %p73 = por %p71, %p72
      %p74 = scmp.ne.s32.totalorder %s66, %s69
      %p75 = scmp.eq.s32.totalorder %s30, 0
      %p76 = por %p74, %p75
      %p77 = scmp.ne.s32.totalorder %s66, %s69
      %p78 = scmp.eq.s32.totalorder %s35, 3
      %p79 = por %p77, %p78
      %p80 = scmp.ne.s32.totalorder %s69, %s70
      %p81 = scmp.eq.s32.totalorder %s35, 0
      %p82 = por %p80, %p81
      %p83 = scmp.ne.s32.totalorder %s69, %s70
      %p84 = scmp.eq.s32.totalorder %s36, 3
      %p85 = por %p83, %p84
      %p87 = scmp.ne.s32.totalorder %s70, %s86
      %p88 = scmp.eq.s32.totalorder %s36, 0
      %p89 = por %p87, %p88
      %s90 = ssub.s32 %s30, %s37
      %p91 = scmp.eq.s32.totalorder %s90, 0
      %s93 = sadd.s32 %s92, 1
      %s94 = scalar_select %p91, %s92, %s93
      %p97 = pneg %p91
      %p98 = scmp.eq.s32.totalorder %s30, 3
      %p99 = por %p97, %p98
      %p100 = scmp.ne.s32.totalorder %s92, %s95
      %p101 = scmp.eq.s32.totalorder %s30, 0
      %p102 = por %p100, %p101
      %p103 = scmp.ne.s32.totalorder %s92, %s95
      %p104 = scmp.eq.s32.totalorder %s35, 3
      %p105 = por %p103, %p104
      %p106 = scmp.ne.s32.totalorder %s95, %s96
      %p107 = scmp.eq.s32.totalorder %s35, 0
      %p108 = por %p106, %p107
      %p109 = scmp.ne.s32.totalorder %s95, %s96
      %p110 = scmp.eq.s32.totalorder %s36, 3
      %p111 = por %p109, %p110
      %p113 = scmp.ne.s32.totalorder %s96, %s112
      %p114 = scmp.eq.s32.totalorder %s36, 0
      %p115 = por %p113, %p114
      %s117 = sadd.s32 %s116, 1
      %p120 = scmp.eq.s32.totalorder %s30, 3
      %p121 = scmp.ne.s32.totalorder %s116, %s118
      %p122 = scmp.eq.s32.totalorder %s30, 0
      %p123 = por %p121, %p122
      %p124 = scmp.ne.s32.totalorder %s116, %s118
      %p125 = scmp.eq.s32.totalorder %s35, 3
      %p126 = por %p124, %p125
      %p127 = scmp.ne.s32.totalorder %s118, %s119
      %p128 = scmp.eq.s32.totalorder %s35, 0
      %p129 = por %p127, %p128
      %p130 = scmp.ne.s32.totalorder %s118, %s119
      %p131 = scmp.eq.s32.totalorder %s36, 3
      %p132 = por %p130, %p131
      %p134 = scmp.ne.s32.totalorder %s119, %s133
      %p135 = scmp.eq.s32.totalorder %s36, 0
      %p136 = por %p134, %p135
      %s138 = sadd.s32 %s137, 1
      %p141 = scmp.eq.s32.totalorder %s30, 3
      %p142 = scmp.ne.s32.totalorder %s137, %s139
      %p143 = scmp.eq.s32.totalorder %s30, 0
      %p144 = por %p142, %p143
      %p145 = scmp.ne.s32.totalorder %s137, %s139
      %p146 = scmp.eq.s32.totalorder %s35, 3
      %p147 = por %p145, %p146
      %p148 = scmp.ne.s32.totalorder %s139, %s140
      %p149 = scmp.eq.s32.totalorder %s35, 0
      %p150 = por %p148, %p149
      %p151 = scmp.ne.s32.totalorder %s139, %s140
      %p152 = scmp.eq.s32.totalorder %s36, 3
      %p153 = por %p151, %p152
      %p155 = scmp.ne.s32.totalorder %s140, %s154
      %p156 = scmp.eq.s32.totalorder %s36, 0
      %p157 = por %p155, %p156
      %s159 = sadd.s32 %s158, 1
      %p162 = scmp.eq.s32.totalorder %s30, 3
      %p163 = scmp.ne.s32.totalorder %s158, %s160
      %p164 = scmp.eq.s32.totalorder %s30, 0
      %p165 = por %p163, %p164
      %p166 = scmp.ne.s32.totalorder %s158, %s160
      %p167 = scmp.eq.s32.totalorder %s35, 3
      %p168 = por %p166, %p167
      %p169 = scmp.ne.s32.totalorder %s160, %s161
      %p170 = scmp.eq.s32.totalorder %s35, 0
      %p171 = por %p169, %p170
      %p172 = scmp.ne.s32.totalorder %s160, %s161
      %p173 = scmp.eq.s32.totalorder %s36, 3
      %p174 = por %p172, %p173
      %p176 = scmp.ne.s32.totalorder %s161, %s175
      %p177 = scmp.eq.s32.totalorder %s36, 0
      %p178 = por %p176, %p177
      %s180 = sadd.s32 %s179, 1
      %p183 = scmp.eq.s32.totalorder %s30, 3
      %p184 = scmp.ne.s32.totalorder %s179, %s181
      %p185 = scmp.eq.s32.totalorder %s30, 0
      %p186 = por %p184, %p185
      %p187 = scmp.ne.s32.totalorder %s179, %s181
      %p188 = scmp.eq.s32.totalorder %s35, 3
      %p189 = por %p187, %p188
      %p190 = scmp.ne.s32.totalorder %s181, %s182
      %p191 = scmp.eq.s32.totalorder %s35, 0
      %p192 = por %p190, %p191
      %p193 = scmp.ne.s32.totalorder %s181, %s182
      %p194 = scmp.eq.s32.totalorder %s36, 3
      %p195 = por %p193, %p194
      %p197 = scmp.ne.s32.totalorder %s182, %s196
      %p198 = scmp.eq.s32.totalorder %s36, 0
      %p199 = por %p197, %p198
      %s201 = sadd.s32 %s200, 1
      %p204 = scmp.eq.s32.totalorder %s30, 3
      %p205 = scmp.ne.s32.totalorder %s200, %s202
      %p206 = scmp.eq.s32.totalorder %s30, 0
      %p207 = por %p205, %p206
      %p208 = scmp.ne.s32.totalorder %s200, %s202
      %p209 = scmp.eq.s32.totalorder %s35, 3
      %p210 = por %p208, %p209
      %p211 = scmp.ne.s32.totalorder %s202, %s203
      %p212 = scmp.eq.s32.totalorder %s35, 0
      %p213 = por %p211, %p212
      %p214 = scmp.ne.s32.totalorder %s202, %s203
      %p215 = scmp.eq.s32.totalorder %s36, 3
      %p216 = por %p214, %p215
      %p218 = scmp.ne.s32.totalorder %s203, %s217
      %p219 = scmp.eq.s32.totalorder %s36, 0
      %p220 = por %p218, %p219
      %s222 = sadd.s32 %s221, 1
      %p225 = scmp.eq.s32.totalorder %s30, 3
      %p226 = scmp.ne.s32.totalorder %s221, %s223
      %p227 = scmp.eq.s32.totalorder %s30, 0
      %p228 = por %p226, %p227
      %p229 = scmp.ne.s32.totalorder %s221, %s223
      %p230 = scmp.eq.s32.totalorder %s35, 3
      %p231 = por %p229, %p230
      %p232 = scmp.ne.s32.totalorder %s223, %s224
      %p233 = scmp.eq.s32.totalorder %s35, 0
      %p234 = por %p232, %p233
      %p235 = scmp.ne.s32.totalorder %s223, %s224
      %p236 = scmp.eq.s32.totalorder %s36, 3
      %p237 = por %p235, %p236
      %p239 = scmp.ne.s32.totalorder %s224, %s238
      %p240 = scmp.eq.s32.totalorder %s36, 0
      %p241 = por %p239, %p240
      %s242 = ssub.s32 %s30, %s37
      %p243 = scmp.eq.s32.totalorder %s242, 0
      %s245 = sadd.s32 %s244, 1
      %s246 = scalar_select %p243, %s244, %s245
      %p249 = pneg %p243
      %p250 = scmp.eq.s32.totalorder %s30, 3
      %p251 = por %p249, %p250
      %p252 = scmp.ne.s32.totalorder %s244, %s247
      %p253 = scmp.eq.s32.totalorder %s30, 0
      %p254 = por %p252, %p253
      %p255 = scmp.ne.s32.totalorder %s244, %s247
      %p256 = scmp.eq.s32.totalorder %s35, 3
      %p257 = por %p255, %p256
      %p258 = scmp.ne.s32.totalorder %s247, %s248
      %p259 = scmp.eq.s32.totalorder %s35, 0
      %p260 = por %p258, %p259
      %p261 = scmp.ne.s32.totalorder %s247, %s248
      %p262 = scmp.eq.s32.totalorder %s36, 3
      %p263 = por %p261, %p262
      %p265 = scmp.ne.s32.totalorder %s248, %s264
      %p266 = scmp.eq.s32.totalorder %s36, 0
      %p267 = por %p265, %p266
      %s269 = sadd.s32 %s268, 1
      %p272 = scmp.eq.s32.totalorder %s30, 3
      %p273 = scmp.ne.s32.totalorder %s268, %s270
      %p274 = scmp.eq.s32.totalorder %s30, 0
      %p275 = por %p273, %p274
      %p276 = scmp.ne.s32.totalorder %s268, %s270
      %p277 = scmp.eq.s32.totalorder %s35, 3
      %p278 = por %p276, %p277
      %p279 = scmp.ne.s32.totalorder %s270, %s271
      %p280 = scmp.eq.s32.totalorder %s35, 0
      %p281 = por %p279, %p280
      %p282 = scmp.ne.s32.totalorder %s270, %s271
      %p283 = scmp.eq.s32.totalorder %s36, 3
      %p284 = por %p282, %p283
      %p286 = scmp.ne.s32.totalorder %s271, %s285
      %p287 = scmp.eq.s32.totalorder %s36, 0
      %p288 = por %p286, %p287
      %p289 = scmp.le.s32.totalorder 1, %s30
      %p290 = scmp.lt.s32.totalorder %s30, 5
      %p291 = pnand %p289, %p290
      %p292 = pneg %p291
      // Predicated region
      $region9: #{net4_forward.4} parent=5 // pred_check
        _
      $region10: #{net4_forward.4} parent=5 // pred_check_branch
        %294 = sbr.rel (%p291) target = $region12
      $region11: #{net4_forward.4} parent=5 // pred_region
        %s295 = ssub.s32 %s30, 1
        // Predicated region
        $region13: #{net4_forward.4} parent=11 // pred_check
          %p296 = pneg %p129
        $region14: #{net4_forward.4} parent=11 // pred_check_branch
          %298 = sbr.rel (%p296) target = $region16
        $region15: #{net4_forward.4} parent=11 // pred_region
          %s300 = ssub.s32 16, 16
          %301 = vsyncadd [#allocation9], %s300
          %s303 = sshll.u32 [#allocation8], 4
          %s304 = int_to_ptr.vmem [resolvable:$true] %s303
          %306 = dma.hbm_to_vmem [thread:$0]  %s3, 16, %s304, [#allocation9]
        $region16: #{net4_forward.4} parent=11 // pred_fallthru
          _
        // Predicated region
        $region17: #{net4_forward.4} parent=11 // pred_check
          %p307 = pneg %p150
        $region18: #{net4_forward.4} parent=11 // pred_check_branch
          %309 = sbr.rel (%p307) target = $region20
        $region19: #{net4_forward.4} parent=11 // pred_region
          %s311 = ssub.s32 128, 128
          %312 = vsyncadd [#allocation9], %s311
          %s314 = sshll.u32 [#allocation10], 4
          %s315 = int_to_ptr.vmem [resolvable:$true] %s314
          %317 = dma.hbm_to_vmem [thread:$0]  %s4, 128, %s315, [#allocation9]
        $region20: #{net4_forward.4} parent=11 // pred_fallthru
          _
        // Predicated region
        $region21: #{net4_forward.4} parent=11 // pred_check
          %p318 = pneg %p171
        $region22: #{net4_forward.4} parent=11 // pred_check_branch
          %320 = sbr.rel (%p318) target = $region24
        $region23: #{net4_forward.4} parent=11 // pred_region
          %s322 = ssub.s32 64, 64
          %323 = vsyncadd [#allocation12], %s322
          %s325 = sshll.u32 [#allocation11], 4
          %s326 = int_to_ptr.vmem [resolvable:$true] %s325
          %328 = dma.hbm_to_vmem [thread:$0]  %s5, 64, %s326, [#allocation12]
        $region24: #{net4_forward.4} parent=11 // pred_fallthru
          _
        // Predicated region
        $region25: #{net4_forward.4} parent=11 // pred_check
          %p329 = pneg %p192
        $region26: #{net4_forward.4} parent=11 // pred_check_branch
          %331 = sbr.rel (%p329) target = $region28
        $region27: #{net4_forward.4} parent=11 // pred_region
          %s333 = ssub.s32 64, 64
          %334 = vsyncadd [#allocation12], %s333
          %s336 = sshll.u32 [#allocation13], 4
          %s337 = int_to_ptr.vmem [resolvable:$true] %s336
          %339 = dma.hbm_to_vmem [thread:$0]  %s6, 64, %s337, [#allocation12]
        $region28: #{net4_forward.4} parent=11 // pred_fallthru
          _
        // Predicated region
        $region29: #{net4_forward.4} parent=11 // pred_check
          %p340 = pneg %p213
        $region30: #{net4_forward.4} parent=11 // pred_check_branch
          %342 = sbr.rel (%p340) target = $region32
        $region31: #{net4_forward.4} parent=11 // pred_region
          %s344 = ssub.s32 512, 512
          %345 = vsyncadd [#allocation15], %s344
          %s346 = sshll.u32 [#allocation14], 4
          %s347 = int_to_ptr.vmem [resolvable:$true] %s346
          %352 = dma.hbm_to_vmem [thread:$0]  %s7, 512, %s347, [#allocation15], 128, 128, 8
        $region32: #{net4_forward.4} parent=11 // pred_fallthru
          _
        // Predicated region
        $region33: #{net4_forward.4} parent=11 // pred_check
          %p353 = pneg %p234
        $region34: #{net4_forward.4} parent=11 // pred_check_branch
          %355 = sbr.rel (%p353) target = $region36
        $region35: #{net4_forward.4} parent=11 // pred_region
          %s357 = ssub.s32 16, 16
          %358 = vsyncadd [#allocation15], %s357
          %s360 = sshll.u32 [#allocation16], 4
          %s361 = int_to_ptr.vmem [resolvable:$true] %s360
          %363 = dma.hbm_to_vmem [thread:$0]  %s8, 16, %s361, [#allocation15]
        $region36: #{net4_forward.4} parent=11 // pred_fallthru
          _
      $region12: #{net4_forward.4} parent=5 // pred_fallthru
        _
      %p364 = scmp.lt.s32.totalorder %s30, 4
      // Predicated region
      $region37: #{net4_forward.4} parent=5 // pred_check
        %p365 = pneg %p364
      $region38: #{net4_forward.4} parent=5 // pred_check_branch
        %367 = sbr.rel (%p365) target = $region40
      $region39: #{net4_forward.4} parent=5 // pred_region
        // Predicated region
        $region41: #{net4_forward.4} parent=39 // pred_check
          %p368 = pneg %p50
        $region42: #{net4_forward.4} parent=39 // pred_check_branch
          %370 = sbr.rel (%p368) target = $region44
        $region43: #{net4_forward.4} parent=39 // pred_region
          %s371 = sand.u32 %s40, 1
          %s372 = scalar_lea.sflag [#allocation3], %s371
          %s373 = sand.u32 %s40, 1
          %s374 = smul.addr %s373, 8
          %s375 = scalar_lea.vmem [#allocation2], %s374
          %s377 = ssub.s32 128, 128
          %378 = vsyncadd %s372, %s377
          %s379 = smul.addr %s30, 128
          %s380 = scalar_lea.hbm %s0, %s379
          %s382 = sshll.u32 %s375, 4
          %s383 = int_to_ptr.vmem [resolvable:$true] %s382
          %385 = dma.hbm_to_vmem [thread:$0]  %s380, 128, %s383, %s372
        $region44: #{net4_forward.4} parent=39 // pred_fallthru
          _
        // Predicated region
        $region45: #{net4_forward.4} parent=39 // pred_check
          %p386 = pneg %p76
        $region46: #{net4_forward.4} parent=39 // pred_check_branch
          %388 = sbr.rel (%p386) target = $region48
        $region47: #{net4_forward.4} parent=39 // pred_region
          %s389 = sand.u32 %s30, 1
          %s390 = scalar_lea.sflag [#allocation6], %s389
          %s391 = sand.u32 %s66, 1
          %s392 = smul.addr %s391, 8
          %s393 = scalar_lea.vmem [#allocation5], %s392
          %s395 = ssub.s32 128, 128
          %396 = vsyncadd %s390, %s395
          %s397 = smul.addr %s30, 128
          %s398 = scalar_lea.hbm %s1, %s397
          %s400 = sshll.u32 %s393, 4
          %s401 = int_to_ptr.vmem [resolvable:$true] %s400
          %403 = dma.hbm_to_vmem [thread:$0]  %s398, 128, %s401, %s390
        $region48: #{net4_forward.4} parent=39 // pred_fallthru
          _
        // Predicated region
        $region49: #{net4_forward.4} parent=39 // pred_check
          %p404 = pneg %p102
        $region50: #{net4_forward.4} parent=39 // pred_check_branch
          %406 = sbr.rel (%p404) target = $region52
        $region51: #{net4_forward.4} parent=39 // pred_region
          %s407 = sand.u32 %s30, 1
          %s408 = scalar_lea.sflag [#allocation6], %s407
          %s409 = sand.u32 %s92, 1
          %s410 = smul.addr %s409, 8
          %s411 = scalar_lea.vmem [#allocation7], %s410
          %s413 = ssub.s32 128, 128
          %414 = vsyncadd %s408, %s413
          %s415 = smul.addr %s30, 128
          %s416 = scalar_lea.hbm %s2, %s415
          %s418 = sshll.u32 %s411, 4
          %s419 = int_to_ptr.vmem [resolvable:$true] %s418
          %421 = dma.hbm_to_vmem [thread:$0]  %s416, 128, %s419, %s408
        $region52: #{net4_forward.4} parent=39 // pred_fallthru
          _
      $region40: #{net4_forward.4} parent=5 // pred_fallthru
        _
      %p422 = scmp.le.s32.totalorder 1, %s30
      %p423 = scmp.lt.s32.totalorder %s30, 5
      %p424 = pnand %p422, %p423
      %p425 = pneg %p424
      // Predicated region
      $region53: #{net4_forward.4} parent=5 // pred_check
        _
      $region54: #{net4_forward.4} parent=5 // pred_check_branch
        %427 = sbr.rel (%p424) target = $region56
      $region55: #{net4_forward.4} parent=5 // pred_region
        %s428 = ssub.s32 %s30, 1
        %s429 = sand.u32 %s43, 1
        %s430 = scalar_lea.sflag [#allocation3], %s429
        %s431 = sand.u32 %s43, 1
        %s432 = smul.addr %s431, 8
        %s433 = scalar_lea.vmem [#allocation2], %s432
        // Predicated region
        $region57: #{net4_forward.4} parent=55 // pred_check
          %p434 = pneg %p56
        $region58: #{net4_forward.4} parent=55 // pred_check_branch
          %436 = sbr.rel (%p434) target = $region60
        $region59: #{net4_forward.4} parent=55 // pred_region
          %437 = dma.done %s430, 128
        $region60: #{net4_forward.4} parent=55 // pred_fallthru
          _
        %s438 = sand.u32 %s35, 1
        %s439 = scalar_lea.sflag [#allocation6], %s438
        %s440 = sand.u32 %s69, 1
        %s441 = smul.addr %s440, 8
        %s442 = scalar_lea.vmem [#allocation5], %s441
        // Predicated region
        $region61: #{net4_forward.4} parent=55 // pred_check
          %p443 = pneg %p82
        $region62: #{net4_forward.4} parent=55 // pred_check_branch
          %445 = sbr.rel (%p443) target = $region64
        $region63: #{net4_forward.4} parent=55 // pred_region
          %446 = dma.done %s439, 128
        $region64: #{net4_forward.4} parent=55 // pred_fallthru
          _
        %s447 = sand.u32 %s35, 1
        %s448 = scalar_lea.sflag [#allocation6], %s447
        %s449 = sand.u32 %s95, 1
        %s450 = smul.addr %s449, 8
        %s451 = scalar_lea.vmem [#allocation7], %s450
        // Predicated region
        $region65: #{net4_forward.4} parent=55 // pred_check
          %p452 = pneg %p108
        $region66: #{net4_forward.4} parent=55 // pred_check_branch
          %454 = sbr.rel (%p452) target = $region68
        $region67: #{net4_forward.4} parent=55 // pred_region
          %455 = dma.done %s448, 128
        $region68: #{net4_forward.4} parent=55 // pred_fallthru
          _
        // Predicated region
        $region69: #{net4_forward.4} parent=55 // pred_check
          %p456 = pneg %p129
        $region70: #{net4_forward.4} parent=55 // pred_check_branch
          %458 = sbr.rel (%p456) target = $region72
        $region71: #{net4_forward.4} parent=55 // pred_region
          %459 = dma.done [#allocation9], 16
        $region72: #{net4_forward.4} parent=55 // pred_fallthru
          _
        // Predicated region
        $region73: #{net4_forward.4} parent=55 // pred_check
          %p460 = pneg %p150
        $region74: #{net4_forward.4} parent=55 // pred_check_branch
          %462 = sbr.rel (%p460) target = $region76
        $region75: #{net4_forward.4} parent=55 // pred_region
          %463 = dma.done [#allocation9], 128
        $region76: #{net4_forward.4} parent=55 // pred_fallthru
          _
        // Predicated region
        $region77: #{net4_forward.4} parent=55 // pred_check
          %p464 = pneg %p171
        $region78: #{net4_forward.4} parent=55 // pred_check_branch
          %466 = sbr.rel (%p464) target = $region80
        $region79: #{net4_forward.4} parent=55 // pred_region
          %467 = dma.done [#allocation12], 64
        $region80: #{net4_forward.4} parent=55 // pred_fallthru
          _
        // Predicated region
        $region81: #{net4_forward.4} parent=55 // pred_check
          %p468 = pneg %p192
        $region82: #{net4_forward.4} parent=55 // pred_check_branch
          %470 = sbr.rel (%p468) target = $region84
        $region83: #{net4_forward.4} parent=55 // pred_region
          %471 = dma.done [#allocation12], 64
        $region84: #{net4_forward.4} parent=55 // pred_fallthru
          _
        // Predicated region
        $region85: #{net4_forward.4} parent=55 // pred_check
          %p472 = pneg %p213
        $region86: #{net4_forward.4} parent=55 // pred_check_branch
          %474 = sbr.rel (%p472) target = $region88
        $region87: #{net4_forward.4} parent=55 // pred_region
          %475 = dma.done [#allocation15], 512
        $region88: #{net4_forward.4} parent=55 // pred_fallthru
          _
        // Predicated region
        $region89: #{net4_forward.4} parent=55 // pred_check
          %p476 = pneg %p234
        $region90: #{net4_forward.4} parent=55 // pred_check_branch
          %478 = sbr.rel (%p476) target = $region92
        $region91: #{net4_forward.4} parent=55 // pred_region
          %479 = dma.done [#allocation15], 16
        $region92: #{net4_forward.4} parent=55 // pred_fallthru
          _
        %s480 = sand.u32 %s43, 1
        %s481 = scalar_lea.sflag [#allocation3], %s480
        %s482 = sand.u32 %s43, 1
        %s483 = smul.addr %s482, 8
        %s484 = scalar_lea.vmem [#allocation2], %s483
        %p485 = pneg %p56
        %p486 = pneg %p53
        %s487 = sand.u32 %s35, 1
        %s488 = scalar_lea.sflag [#allocation6], %s487
        %s489 = sand.u32 %s69, 1
        %s490 = smul.addr %s489, 8
        %s491 = scalar_lea.vmem [#allocation5], %s490
        %p492 = pneg %p82
        %p493 = pneg %p79
        %s494 = sand.u32 %s35, 1
        %s495 = scalar_lea.sflag [#allocation6], %s494
        %s496 = sand.u32 %s95, 1
        %s497 = smul.addr %s496, 8
        %s498 = scalar_lea.vmem [#allocation7], %s497
        %p499 = pneg %p108
        %p500 = pneg %p105
        %p501 = pneg %p129
        %p502 = pneg %p126
        %p503 = pneg %p150
        %p504 = pneg %p147
        %p505 = pneg %p171
        %p506 = pneg %p168
        %p507 = pneg %p192
        %p508 = pneg %p189
        %p509 = pneg %p213
        %p510 = pneg %p210
        %p511 = pneg %p234
        %p512 = pneg %p231
        %p513 = pneg %p260
        %p514 = pneg %p257
        %s515 = sand.u32 %s247, 1
        %s516 = scalar_lea.sflag [#allocation4], %s515
        %s517 = sand.u32 %s247, 1
        %s518 = smul.addr %s517, 8
        %s519 = scalar_lea.vmem [#allocation17], %s518
        %p520 = pneg %p281
        %p521 = pneg %p278
        %v522 = vld [vmem:[%s433] sm:$0xff]
        %v523 = vld [vmem:[#allocation10] sm:$0x3f]
        %v524 = vld [vmem:[%s442] sm:$0xff]
        %v525 = vld [vmem:[#allocation11] sm:$0xf]
        %vm526 = vcmask 31744
        %v528 = vsel %vm526, %v524, 0
        %vm530 = vcmask 1043456
        %v532 = vsel %vm530, %v525, 0
        %534 = vmatprep.subr.mxu0 0.0
        %535 = vmatpush1.msra.mxu0 %v532
        %536 = vmatprep.subr.mxu0 0.0
        %537 = vmatpush1.msra.mxu0 0.0
        %538 = vmatprep.subr.mxu0 0.0
        %539 = vmatpush1.msra.mxu0 0.0
        %540 = vmatprep.subr.mxu0 0.0
        %541 = vmatpush1.msra.mxu0 0.0
        %542 = vmatprep.subr.mxu0 0.0
        %543 = vmatpush1.msra.mxu0 0.0
        %544 = vmatprep.subr.mxu0 0.0
        %545 = vmatpush1.msra.mxu0 0.0
        %546 = vmatprep.subr.mxu0 0.0
        %547 = vmatpush1.msra.mxu0 0.0
        %548 = vmatprep.subr.mxu0 0.0
        %549 = vmatpush1.msra.mxu0 0.0
        %550 = vmatprep.subr.mxu0 0.0
        %551 = vmatpush1.msra.mxu0 0.0
        %552 = vmatprep.subr.mxu0 0.0
        %553 = vmatpush1.msra.mxu0 0.0
        %554 = vmatprep.subr.mxu0 0.0
        %555 = vmatpush1.msra.mxu0 0.0
        %556 = vmatprep.subr.mxu0 0.0
        %557 = vmatpush1.msra.mxu0 0.0
        %558 = vmatprep.subr.mxu0 0.0
        %559 = vmatpush1.msra.mxu0 0.0
        %560 = vmatprep.subr.mxu0 0.0
        %561 = vmatpush1.msra.mxu0 0.0
        %562 = vmatprep.subr.mxu0 0.0
        %563 = vmatpush1.msra.mxu0 0.0
        %564 = vmatprep.subr.mxu0 0.0
        %565 = vmatpush1.msra.mxu0 0.0
        %566 = vmatprep.subr.mxu0 0.0
        %567 = vmatpush1.msra.mxu0 0.0
        %568 = vmatprep.subr.mxu0 0.0
        %569 = vmatpush1.msra.mxu0 0.0
        %570 = vmatprep.subr.mxu0 0.0
        %571 = vmatpush1.msra.mxu0 0.0
        %572 = vmatprep.subr.mxu0 0.0
        %573 = vmatpush1.msra.mxu0 0.0
        %574 = vmatprep.subr.mxu0 0.0
        %575 = vmatpush1.msra.mxu0 0.0
        %576 = vmatprep.subr.mxu0 0.0
        %577 = vmatpush1.msra.mxu0 0.0
        %578 = vmatprep.subr.mxu0 0.0
        %579 = vmatpush1.msra.mxu0 0.0
        %580 = vmatprep.subr.mxu0 0.0
        %581 = vmatpush1.msra.mxu0 0.0
        %582 = vmatprep.subr.mxu0 0.0
        %583 = vmatpush1.msra.mxu0 0.0
        %584 = vmatprep.subr.mxu0 0.0
        %585 = vmatpush1.msra.mxu0 0.0
        %586 = vmatprep.subr.mxu0 0.0
        %587 = vmatpush1.msra.mxu0 0.0
        %588 = vmatprep.subr.mxu0 0.0
        %589 = vmatpush1.msra.mxu0 0.0
        %590 = vmatprep.subr.mxu0 0.0
        %591 = vmatpush1.msra.mxu0 0.0
        %592 = vmatprep.subr.mxu0 0.0
        %593 = vmatpush1.msra.mxu0 0.0
        %594 = vmatprep.subr.mxu0 0.0
        %595 = vmatpush1.msra.mxu0 0.0
        %596 = vmatprep.subr.mxu0 0.0
        %597 = vmatpush1.msra.mxu0 0.0
        %598 = vmatprep.mubr.f32.mxu0 0.0
        %599 = vmatmul.mubr.f32.gmra.mrb[0].mxu0 %v528
        %v600 = vpop.f32.mrb[0].mxu0
        %v601 = vadd.f32 0.0, %v600
        %v602 = vpop.f32.mrb[0].mxu0
        %603 = vdwg.mxu0
        %vm604 = vcmask 48128
        %v606 = vsel %vm604, %v522, 0
        %vm608 = vcmask 1045504
        %v610 = vsel %vm608, %v523, 0
        %612 = vmatprep.subr.mxu0 0.0
        %613 = vmatpush1.msra.mxu0 %v610
        %614 = vmatprep.subr.mxu0 0.0
        %615 = vmatpush1.msra.mxu0 0.0
        %616 = vmatprep.subr.mxu0 0.0
        %617 = vmatpush1.msra.mxu0 0.0
        %618 = vmatprep.subr.mxu0 0.0
        %619 = vmatpush1.msra.mxu0 0.0
        %620 = vmatprep.subr.mxu0 0.0
        %621 = vmatpush1.msra.mxu0 0.0
        %622 = vmatprep.subr.mxu0 0.0
        %623 = vmatpush1.msra.mxu0 0.0
        %624 = vmatprep.subr.mxu0 0.0
        %625 = vmatpush1.msra.mxu0 0.0
        %626 = vmatprep.subr.mxu0 0.0
        %627 = vmatpush1.msra.mxu0 0.0
        %628 = vmatprep.subr.mxu0 0.0
        %629 = vmatpush1.msra.mxu0 0.0
        %630 = vmatprep.subr.mxu0 0.0
        %631 = vmatpush1.msra.mxu0 0.0
        %632 = vmatprep.subr.mxu0 0.0
        %633 = vmatpush1.msra.mxu0 0.0
        %634 = vmatprep.subr.mxu0 0.0
        %635 = vmatpush1.msra.mxu0 0.0
        %636 = vmatprep.subr.mxu0 0.0
        %637 = vmatpush1.msra.mxu0 0.0
        %638 = vmatprep.subr.mxu0 0.0
        %639 = vmatpush1.msra.mxu0 0.0
        %640 = vmatprep.subr.mxu0 0.0
        %641 = vmatpush1.msra.mxu0 0.0
        %642 = vmatprep.subr.mxu0 0.0
        %643 = vmatpush1.msra.mxu0 0.0
        %644 = vmatprep.subr.mxu0 0.0
        %645 = vmatpush1.msra.mxu0 0.0
        %646 = vmatprep.subr.mxu0 0.0
        %647 = vmatpush1.msra.mxu0 0.0
        %648 = vmatprep.subr.mxu0 0.0
        %649 = vmatpush1.msra.mxu0 0.0
        %650 = vmatprep.subr.mxu0 0.0
        %651 = vmatpush1.msra.mxu0 0.0
        %652 = vmatprep.subr.mxu0 0.0
        %653 = vmatpush1.msra.mxu0 0.0
        %654 = vmatprep.subr.mxu0 0.0
        %655 = vmatpush1.msra.mxu0 0.0
        %656 = vmatprep.subr.mxu0 0.0
        %657 = vmatpush1.msra.mxu0 0.0
        %658 = vmatprep.subr.mxu0 0.0
        %659 = vmatpush1.msra.mxu0 0.0
        %660 = vmatprep.subr.mxu0 0.0
        %661 = vmatpush1.msra.mxu0 0.0
        %662 = vmatprep.subr.mxu0 0.0
        %663 = vmatpush1.msra.mxu0 0.0
        %664 = vmatprep.subr.mxu0 0.0
        %665 = vmatpush1.msra.mxu0 0.0
        %666 = vmatprep.subr.mxu0 0.0
        %667 = vmatpush1.msra.mxu0 0.0
        %668 = vmatprep.subr.mxu0 0.0
        %669 = vmatpush1.msra.mxu0 0.0
        %670 = vmatprep.subr.mxu0 0.0
        %671 = vmatpush1.msra.mxu0 0.0
        %672 = vmatprep.subr.mxu0 0.0
        %673 = vmatpush1.msra.mxu0 0.0
        %674 = vmatprep.subr.mxu0 0.0
        %675 = vmatpush1.msra.mxu0 0.0
        %676 = vmatprep.mubr.f32.mxu0 0.0
        %677 = vmatmul.mubr.f32.gmra.mrb[0].mxu0 %v606
        %v678 = vpop.f32.mrb[0].mxu0
        %v679 = vadd.f32 %v601, %v678
        %v680 = vpop.f32.mrb[0].mxu0
        %681 = vdwg.mxu0
        %v682 = vld [vmem:[%s451] sm:$0xff]
        %v683 = vld [vmem:[#allocation13] sm:$0xf]
        %v685 = vsel %vm526, %v682, 0
        %v688 = vsel %vm530, %v683, 0
        %690 = vmatprep.subr.mxu0 0.0
        %691 = vmatpush1.msra.mxu0 %v688
        %692 = vmatprep.subr.mxu0 0.0
        %693 = vmatpush1.msra.mxu0 0.0
        %694 = vmatprep.subr.mxu0 0.0
        %695 = vmatpush1.msra.mxu0 0.0
        %696 = vmatprep.subr.mxu0 0.0
        %697 = vmatpush1.msra.mxu0 0.0
        %698 = vmatprep.subr.mxu0 0.0
        %699 = vmatpush1.msra.mxu0 0.0
        %700 = vmatprep.subr.mxu0 0.0
        %701 = vmatpush1.msra.mxu0 0.0
        %702 = vmatprep.subr.mxu0 0.0
        %703 = vmatpush1.msra.mxu0 0.0
        %704 = vmatprep.subr.mxu0 0.0
        %705 = vmatpush1.msra.mxu0 0.0
        %706 = vmatprep.subr.mxu0 0.0
        %707 = vmatpush1.msra.mxu0 0.0
        %708 = vmatprep.subr.mxu0 0.0
        %709 = vmatpush1.msra.mxu0 0.0
        %710 = vmatprep.subr.mxu0 0.0
        %711 = vmatpush1.msra.mxu0 0.0
        %712 = vmatprep.subr.mxu0 0.0
        %713 = vmatpush1.msra.mxu0 0.0
        %714 = vmatprep.subr.mxu0 0.0
        %715 = vmatpush1.msra.mxu0 0.0
        %716 = vmatprep.subr.mxu0 0.0
        %717 = vmatpush1.msra.mxu0 0.0
        %718 = vmatprep.subr.mxu0 0.0
        %719 = vmatpush1.msra.mxu0 0.0
        %720 = vmatprep.subr.mxu0 0.0
        %721 = vmatpush1.msra.mxu0 0.0
        %722 = vmatprep.subr.mxu0 0.0
        %723 = vmatpush1.msra.mxu0 0.0
        %724 = vmatprep.subr.mxu0 0.0
        %725 = vmatpush1.msra.mxu0 0.0
        %726 = vmatprep.subr.mxu0 0.0
        %727 = vmatpush1.msra.mxu0 0.0
        %728 = vmatprep.subr.mxu0 0.0
        %729 = vmatpush1.msra.mxu0 0.0
        %730 = vmatprep.subr.mxu0 0.0
        %731 = vmatpush1.msra.mxu0 0.0
        %732 = vmatprep.subr.mxu0 0.0
        %733 = vmatpush1.msra.mxu0 0.0
        %734 = vmatprep.subr.mxu0 0.0
        %735 = vmatpush1.msra.mxu0 0.0
        %736 = vmatprep.subr.mxu0 0.0
        %737 = vmatpush1.msra.mxu0 0.0
        %738 = vmatprep.subr.mxu0 0.0
        %739 = vmatpush1.msra.mxu0 0.0
        %740 = vmatprep.subr.mxu0 0.0
        %741 = vmatpush1.msra.mxu0 0.0
        %742 = vmatprep.subr.mxu0 0.0
        %743 = vmatpush1.msra.mxu0 0.0
        %744 = vmatprep.subr.mxu0 0.0
        %745 = vmatpush1.msra.mxu0 0.0
        %746 = vmatprep.subr.mxu0 0.0
        %747 = vmatpush1.msra.mxu0 0.0
        %748 = vmatprep.subr.mxu0 0.0
        %749 = vmatpush1.msra.mxu0 0.0
        %750 = vmatprep.subr.mxu0 0.0
        %751 = vmatpush1.msra.mxu0 0.0
        %752 = vmatprep.subr.mxu0 0.0
        %753 = vmatpush1.msra.mxu0 0.0
        %754 = vmatprep.mubr.f32.mxu0 0.0
        %755 = vmatmul.mubr.f32.gmra.mrb[0].mxu0 %v685
        %v756 = vpop.f32.mrb[0].mxu0
        %v757 = vadd.f32 0.0, %v756
        %v758 = vpop.f32.mrb[0].mxu0
        %759 = vdwg.mxu0
        %v760 = vadd.f32 %v679, %v757
        %v761 = vld [vmem:[#allocation8] sm:$0x1]
        %v762 = vld [vmem:[#allocation14] sm:$0xff]
        %v763 = vld [vmem:[#allocation14 + $0x8] sm:$0xff]
        %v764 = vld [vmem:[#allocation14 + $0x10] sm:$0xff]
        %v765 = vld [vmem:[#allocation14 + $0x18] sm:$0xff]
        %vm766 = vcmask 261120
        %v768 = vsel %vm766, %v761, 0
        %770 = vmatprep.subr.mxu0 0.0
        %771 = vmatpush1.msra.mxu0 %v762
        %772 = vmatprep.subr.mxu0 0.0
        %773 = vmatpush1.msra.mxu0 %v763
        %774 = vmatprep.subr.mxu0 0.0
        %775 = vmatpush1.msra.mxu0 %v764
        %776 = vmatprep.subr.mxu0 0.0
        %777 = vmatpush1.msra.mxu0 %v765
        %778 = vmatprep.subr.mxu0 0.0
        %779 = vmatpush1.msra.mxu0 0.0
        %780 = vmatprep.subr.mxu0 0.0
        %781 = vmatpush1.msra.mxu0 0.0
        %782 = vmatprep.subr.mxu0 0.0
        %783 = vmatpush1.msra.mxu0 0.0
        %784 = vmatprep.subr.mxu0 0.0
        %785 = vmatpush1.msra.mxu0 0.0
        %786 = vmatprep.subr.mxu0 0.0
        %787 = vmatpush1.msra.mxu0 0.0
        %788 = vmatprep.subr.mxu0 0.0
        %789 = vmatpush1.msra.mxu0 0.0
        %790 = vmatprep.subr.mxu0 0.0
        %791 = vmatpush1.msra.mxu0 0.0
        %792 = vmatprep.subr.mxu0 0.0
        %793 = vmatpush1.msra.mxu0 0.0
        %794 = vmatprep.subr.mxu0 0.0
        %795 = vmatpush1.msra.mxu0 0.0
        %796 = vmatprep.subr.mxu0 0.0
        %797 = vmatpush1.msra.mxu0 0.0
        %798 = vmatprep.subr.mxu0 0.0
        %799 = vmatpush1.msra.mxu0 0.0
        %800 = vmatprep.subr.mxu0 0.0
        %801 = vmatpush1.msra.mxu0 0.0
        %802 = vmatprep.subr.mxu0 0.0
        %803 = vmatpush1.msra.mxu0 0.0
        %804 = vmatprep.subr.mxu0 0.0
        %805 = vmatpush1.msra.mxu0 0.0
        %806 = vmatprep.subr.mxu0 0.0
        %807 = vmatpush1.msra.mxu0 0.0
        %808 = vmatprep.subr.mxu0 0.0
        %809 = vmatpush1.msra.mxu0 0.0
        %810 = vmatprep.subr.mxu0 0.0
        %811 = vmatpush1.msra.mxu0 0.0
        %812 = vmatprep.subr.mxu0 0.0
        %813 = vmatpush1.msra.mxu0 0.0
        %814 = vmatprep.subr.mxu0 0.0
        %815 = vmatpush1.msra.mxu0 0.0
        %816 = vmatprep.subr.mxu0 0.0
        %817 = vmatpush1.msra.mxu0 0.0
        %818 = vmatprep.subr.mxu0 0.0
        %819 = vmatpush1.msra.mxu0 0.0
        %820 = vmatprep.subr.mxu0 0.0
        %821 = vmatpush1.msra.mxu0 0.0
        %822 = vmatprep.subr.mxu0 0.0
        %823 = vmatpush1.msra.mxu0 0.0
        %824 = vmatprep.subr.mxu0 0.0
        %825 = vmatpush1.msra.mxu0 0.0
        %826 = vmatprep.subr.mxu0 0.0
        %827 = vmatpush1.msra.mxu0 0.0
        %828 = vmatprep.subr.mxu0 0.0
        %829 = vmatpush1.msra.mxu0 0.0
        %830 = vmatprep.subr.mxu0 0.0
        %831 = vmatpush1.msra.mxu0 0.0
        %832 = vmatprep.subr.mxu0 0.0
        %833 = vmatpush1.msra.mxu0 0.0
        %834 = vmatprep.mubr.f32.mxu0 0.0
        %835 = vmatmul.mubr.f32.gmra.mrb[0].mxu0 %v768
        %v836 = vpop.f32.mrb[0].mxu0
        %v837 = vadd.f32 0.0, %v836
        %v838 = vpop.f32.mrb[0].mxu0
        %839 = vdwg.mxu0
        %v840 = vlaneseq
        %v841 = vshrl.u32 %v840, 7
        %v842 = vsub.s32 0, %v841
        %v843 = vrot.slane %v837, %v842
        %v844 = vadd.f32 %v760, %v843
        %v845 = vld [vmem:[#allocation16] sm:$0x1]
        %v847 = vlaneseq
        %v848 = vshrl.u32 %v847, 7
        %v849 = vsub.s32 0, %v848
        %v850 = vrot.slane %v845, %v849
        %v852 = vadd.f32 %v844, %v850
        %v853 = vmax.f32 %v852, 0.0
        %vm854 = vcmask 523264
        %855 = vst.msk [vmem:[%s519] sm:$0xff] %vm854, %v853
        %p856 = scmp.eq.s32.totalorder %s35, 0
        // Predicated region
        $region93: #{net4_forward.4} parent=55 // pred_check
          %p857 = pneg %p856
        $region94: #{net4_forward.4} parent=55 // pred_check_branch
          %859 = sbr.rel (%p857) target = $region96
        $region95: #{net4_forward.4} parent=55 // pred_region
          %vm860 = vcmask 516096
          %861 = vst.msk [vmem:[#allocation18] sm:$0x1] %vm860, 0.0
        $region96: #{net4_forward.4} parent=55 // pred_fallthru
          _
        %v862 = vld [vmem:[#allocation18] sm:$0x1]
        %v863 = vsel %vm854, %v853, 0.0
        %v864 = vrot.slane %v863, 4
        %v865 = vadd.f32 %v863, %v864
        %v866 = vrot.slane %v865, 2
        %v867 = vadd.f32 %v865, %v866
        %v868 = vrot.slane %v867, 1
        %v869 = vadd.f32 %v867, %v868
        %v870 = vadd.f32 %v862, %v869
        %vm871 = vcmask 516096
        %872 = vst.msk [vmem:[#allocation18] sm:$0x1] %vm871, %v870
        %s873 = sand.u32 %s247, 1
        %s874 = scalar_lea.sflag [#allocation4], %s873
        %s875 = sand.u32 %s247, 1
        %s876 = smul.addr %s875, 8
        %s877 = scalar_lea.vmem [#allocation17], %s876
        // Predicated region
        $region97: #{net4_forward.4} parent=55 // pred_check
          %p878 = pneg %p257
        $region98: #{net4_forward.4} parent=55 // pred_check_branch
          %880 = sbr.rel (%p878) target = $region100
        $region99: #{net4_forward.4} parent=55 // pred_region
          %s882 = ssub.s32 128, 128
          %883 = vsyncadd %s874, %s882
          %s884 = smul.addr %s35, 128
          %s885 = scalar_lea.hbm %s9, %s884
          %s887 = sshll.u32 %s877, 4
          %s888 = int_to_ptr.vmem [resolvable:$true] %s887
          %890 = dma.vmem_to_hbm [thread:$0]  %s888, 128, %s885, %s874
        $region100: #{net4_forward.4} parent=55 // pred_fallthru
          _
        // Predicated region
        $region101: #{net4_forward.4} parent=55 // pred_check
          %p891 = pneg %p278
        $region102: #{net4_forward.4} parent=55 // pred_check_branch
          %893 = sbr.rel (%p891) target = $region104
        $region103: #{net4_forward.4} parent=55 // pred_region
          %s895 = ssub.s32 16, 16
          %896 = vsyncadd [#allocation19], %s895
          %s898 = sshll.u32 [#allocation18], 4
          %s899 = int_to_ptr.vmem [resolvable:$true] %s898
          %901 = dma.vmem_to_hbm [thread:$0]  %s899, 16, %s10, [#allocation19]
        $region104: #{net4_forward.4} parent=55 // pred_fallthru
          _
        // Predicated region
        $region105: #{net4_forward.4} parent=55 // pred_check
          %p902 = pneg %p278
        $region106: #{net4_forward.4} parent=55 // pred_check_branch
          %904 = sbr.rel (%p902) target = $region108
        $region107: #{net4_forward.4} parent=55 // pred_region
          %905 = dma.done [#allocation19], 16
        $region108: #{net4_forward.4} parent=55 // pred_fallthru
          _
      $region56: #{net4_forward.4} parent=5 // pred_fallthru
        _
      %p906 = scmp.le.s32.totalorder 2, %s30
      // Predicated region
      $region109: #{net4_forward.4} parent=5 // pred_check
        %p907 = pneg %p906
      $region110: #{net4_forward.4} parent=5 // pred_check_branch
        %909 = sbr.rel (%p907) target = $region112
      $region111: #{net4_forward.4} parent=5 // pred_region
        %s910 = ssub.s32 %s30, 2
        // Predicated region
        $region113: #{net4_forward.4} parent=111 // pred_check
          %p911 = pneg %p263
        $region114: #{net4_forward.4} parent=111 // pred_check_branch
          %913 = sbr.rel (%p911) target = $region116
        $region115: #{net4_forward.4} parent=111 // pred_region
          %s914 = sand.u32 %s248, 1
          %s915 = scalar_lea.sflag [#allocation4], %s914
          %s916 = sand.u32 %s248, 1
          %s917 = smul.addr %s916, 8
          %s918 = scalar_lea.vmem [#allocation17], %s917
          %919 = dma.done %s915, 128
        $region116: #{net4_forward.4} parent=111 // pred_fallthru
          _
      $region112: #{net4_forward.4} parent=5 // pred_fallthru
        _
    $region6: #{net4_forward.4} parent=1 // loop_footer
      %s34 = sadd.s32 1, %s30
    $region7: #{net4_forward.4} parent=1 // loop_footer_branch
      %29 = sbr.rel target = $region3
    $region8: #{net4_forward.4} parent=1 // loop_exit
      _
    %920 = vsyncpa [#allocation3], 1
    %s921 = scalar_lea.sflag [#allocation3], 1
    %922 = vsyncpa %s921, 1
    %923 = vsyncpa [#allocation6], 1
    %s924 = scalar_lea.sflag [#allocation6], 1
    %925 = vsyncpa %s924, 1
    %926 = vsyncpa [#allocation9], 1
    %927 = vsyncpa [#allocation12], 1
    %928 = vsyncpa [#allocation15], 1
    %929 = vsyncpa [#allocation4], 1
    %s930 = scalar_lea.sflag [#allocation4], 1
    %931 = vsyncpa %s930, 1
    %932 = vsyncpa [#allocation19], 1

// kernel: net4_forward.5
$region0: #{net4_forward.5}
  #allocation0 [shape = 'u32[]', space=smem, size = 0x4, offset = 0x4, fixed_abs, tag = 'smem constant byte address 0x4 - core index']
  #allocation1 [shape = 'u32[144,128]{1,0:T(1,128)}', space=vmem, size = 0x12000, scoped, tag = 'internal scratch']
  %s0 = inlined_call_operand.hbm [shape: s32[1,32], index: 0, kind: input, shape index: {}]
  %s1 = inlined_call_operand.hbm [shape: f32[32,64], index: 1, kind: input, shape index: {}]
  %s2 = inlined_call_operand.hbm [shape: f32[16,4], index: 2, kind: input, shape index: {}]
  %s3 = inlined_call_operand.hbm [shape: f32[1,32], index: 3, kind: input, shape index: {}]
  %s4 = inlined_call_operand.hbm [shape: f32[64,64], index: 4, kind: input, shape index: {}]
  %s5 = inlined_call_operand.hbm [shape: f32[4,64], index: 5, kind: input, shape index: {}]
  %s6 = inlined_call_operand.hbm [shape: f32[32,64], index: 6, kind: input, shape index: {}]
  %s7 = inlined_call_operand.hbm [shape: f32[1,64], index: 7, kind: input, shape index: {}]
  %s8 = inlined_call_operand.hbm [shape: f32[16,64], index: 8, kind: output, shape index: {0}]
  %s9 = inlined_call_operand.hbm [shape: f32[1,64], index: 9, kind: output, shape index: {1}]
  %10 = xla_tuple %s8, %s9
  %s11 = sld [smem:[#allocation0]]
  $region109: #{net4_forward.5} parent=0
    _
  %s13 = ssub.s32 1, %s11
  %s14 = scalar_select 0, %s13, %s11
  $region1: #{net4_forward.5} parent=0
    #allocation2 [shape = 'u8[512]{0}', space=vmem, size = 0x400, scoped, tag = 'input window, operand 0, single buffered']
    #allocation3 [shape = 's32[2]{0}', space=sflag, size = 0x8, scoped, tag = 'scoped memory for net4_forward.5']
    #allocation4 [shape = 's32[2]{0}', space=sflag, size = 0x8, scoped, tag = 'scoped memory for net4_forward.5']
    #allocation5 [shape = 'u8[16384]{0}', space=vmem, size = 0x4000, scoped, tag = 'input window, operand 1, single buffered']
    #allocation6 [shape = 's32[1]{0}', space=sflag, size = 0x4, scoped, tag = 'scoped memory for net4_forward.5']
    #allocation7 [shape = 'u8[8192]{0}', space=vmem, size = 0x2000, scoped, tag = 'input window, operand 2']
    #allocation8 [shape = 'u8[512]{0}', space=vmem, size = 0x400, scoped, tag = 'input window, operand 3, single buffered']
    #allocation9 [shape = 'u8[32768]{0}', space=vmem, size = 0x8000, scoped, tag = 'input window, operand 4, single buffered']
    #allocation10 [shape = 's32[1]{0}', space=sflag, size = 0x4, scoped, tag = 'scoped memory for net4_forward.5']
    #allocation11 [shape = 'u8[2048]{0}', space=vmem, size = 0x800, scoped, tag = 'input window, operand 5, single buffered']
    #allocation12 [shape = 'u8[16384]{0}', space=vmem, size = 0x4000, scoped, tag = 'input window, operand 6, single buffered']
    #allocation13 [shape = 's32[1]{0}', space=sflag, size = 0x4, scoped, tag = 'scoped memory for net4_forward.5']
    #allocation14 [shape = 'u8[512]{0}', space=vmem, size = 0x400, scoped, tag = 'input window, operand 7, single buffered']
    #allocation15 [shape = 'u8[8192]{0}', space=vmem, size = 0x2000, scoped, tag = 'output window, operand 0']
    #allocation16 [shape = 'u8[512]{0}', space=vmem, size = 0x400, scoped, tag = 'output window, operand 1, single buffered']
    #allocation17 [shape = 's32[1]{0}', space=sflag, size = 0x4, scoped, tag = 'scoped memory for net4_forward.5']
    %15 = vsyncpa [#allocation3], 0
    %16 = vsyncpa [#allocation6], 0
    %17 = vsyncpa [#allocation10], 0
    %18 = vsyncpa [#allocation13], 0
    %19 = vsyncpa [#allocation4], 0
    %s20 = scalar_lea.sflag [#allocation4], 1
    %21 = vsyncpa %s20, 0
    %22 = vsyncpa [#allocation17], 0
    loop: start=0, step=1, limit=4
    $region2: #{net4_forward.5} parent=1 // loop_pre_header
      _
    $region3: #{net4_forward.5} parent=1 // loop_header
      %s24 = sphi 0, %s28
      %p25 = scmp.ge.s32.totalorder %s24, 4
      %s32 = sphi 0, %s32
      %s34 = sphi 0, %s32
      %s35 = sphi 0, %s34
      %s49 = sphi 0, %s35
      %s53 = sphi 0, %s53
      %s55 = sphi 0, %s53
      %s56 = sphi 0, %s55
      %s70 = sphi 0, %s56
      %s76 = sphi 0, %s78
      %s79 = sphi 0, %s76
      %s80 = sphi 0, %s79
      %s96 = sphi 0, %s80
      %s100 = sphi 0, %s100
      %s102 = sphi 0, %s100
      %s103 = sphi 0, %s102
      %s117 = sphi 0, %s103
      %s121 = sphi 0, %s121
      %s123 = sphi 0, %s121
      %s124 = sphi 0, %s123
      %s138 = sphi 0, %s124
      %s142 = sphi 0, %s142
      %s144 = sphi 0, %s142
      %s145 = sphi 0, %s144
      %s159 = sphi 0, %s145
      %s163 = sphi 0, %s163
      %s165 = sphi 0, %s163
      %s166 = sphi 0, %s165
      %s180 = sphi 0, %s166
      %s184 = sphi 0, %s184
      %s186 = sphi 0, %s184
      %s187 = sphi 0, %s186
      %s201 = sphi 0, %s187
      %s207 = sphi 0, %s209
      %s210 = sphi 0, %s207
      %s211 = sphi 0, %s210
      %s227 = sphi 0, %s211
      %s231 = sphi 0, %s231
      %s233 = sphi 0, %s231
      %s234 = sphi 0, %s233
      %s248 = sphi 0, %s234
    $region4: #{net4_forward.5} parent=1 // loop_header_branch
      %27 = sbr.rel (%p25) target = $region8
    $region5: #{net4_forward.5} parent=1 // loop_body
      %s29 = ssub.s32 %s24, 1
      %s30 = ssub.s32 %s24, 2
      %s31 = sadd.s32 %s24, 1
      %s33 = sadd.s32 %s32, 1
      %p36 = scmp.eq.s32.totalorder %s24, 1
      %p37 = scmp.ne.s32.totalorder %s32, %s34
      %p38 = scmp.eq.s32.totalorder %s24, 0
      %p39 = por %p37, %p38
      %p40 = scmp.ne.s32.totalorder %s32, %s34
      %p41 = scmp.eq.s32.totalorder %s29, 1
      %p42 = por %p40, %p41
      %p43 = scmp.ne.s32.totalorder %s34, %s35
      %p44 = scmp.eq.s32.totalorder %s29, 0
      %p45 = por %p43, %p44
      %p46 = scmp.ne.s32.totalorder %s34, %s35
      %p47 = scmp.eq.s32.totalorder %s30, 1
      %p48 = por %p46, %p47
      %p50 = scmp.ne.s32.totalorder %s35, %s49
      %p51 = scmp.eq.s32.totalorder %s30, 0
      %p52 = por %p50, %p51
      %s54 = sadd.s32 %s53, 1
      %p57 = scmp.eq.s32.totalorder %s24, 1
      %p58 = scmp.ne.s32.totalorder %s53, %s55
      %p59 = scmp.eq.s32.totalorder %s24, 0
      %p60 = por %p58, %p59
      %p61 = scmp.ne.s32.totalorder %s53, %s55
      %p62 = scmp.eq.s32.totalorder %s29, 1
      %p63 = por %p61, %p62
      %p64 = scmp.ne.s32.totalorder %s55, %s56
      %p65 = scmp.eq.s32.totalorder %s29, 0
      %p66 = por %p64, %p65
      %p67 = scmp.ne.s32.totalorder %s55, %s56
      %p68 = scmp.eq.s32.totalorder %s30, 1
      %p69 = por %p67, %p68
      %p71 = scmp.ne.s32.totalorder %s56, %s70
      %p72 = scmp.eq.s32.totalorder %s30, 0
      %p73 = por %p71, %p72
      %s74 = ssub.s32 %s24, %s31
      %p75 = scmp.eq.s32.totalorder %s74, 0
      %s77 = sadd.s32 %s76, 1
      %s78 = scalar_select %p75, %s76, %s77
      %p81 = pneg %p75
      %p82 = scmp.eq.s32.totalorder %s24, 1
      %p83 = por %p81, %p82
      %p84 = scmp.ne.s32.totalorder %s76, %s79
      %p85 = scmp.eq.s32.totalorder %s24, 0
      %p86 = por %p84, %p85
      %p87 = scmp.ne.s32.totalorder %s76, %s79
      %p88 = scmp.eq.s32.totalorder %s29, 1
      %p89 = por %p87, %p88
      %p90 = scmp.ne.s32.totalorder %s79, %s80
      %p91 = scmp.eq.s32.totalorder %s29, 0
      %p92 = por %p90, %p91
      %p93 = scmp.ne.s32.totalorder %s79, %s80
      %p94 = scmp.eq.s32.totalorder %s30, 1
      %p95 = por %p93, %p94
      %p97 = scmp.ne.s32.totalorder %s80, %s96
      %p98 = scmp.eq.s32.totalorder %s30, 0
      %p99 = por %p97, %p98
      %s101 = sadd.s32 %s100, 1
      %p104 = scmp.eq.s32.totalorder %s24, 1
      %p105 = scmp.ne.s32.totalorder %s100, %s102
      %p106 = scmp.eq.s32.totalorder %s24, 0
      %p107 = por %p105, %p106
      %p108 = scmp.ne.s32.totalorder %s100, %s102
      %p109 = scmp.eq.s32.totalorder %s29, 1
      %p110 = por %p108, %p109
      %p111 = scmp.ne.s32.totalorder %s102, %s103
      %p112 = scmp.eq.s32.totalorder %s29, 0
      %p113 = por %p111, %p112
      %p114 = scmp.ne.s32.totalorder %s102, %s103
      %p115 = scmp.eq.s32.totalorder %s30, 1
      %p116 = por %p114, %p115
      %p118 = scmp.ne.s32.totalorder %s103, %s117
      %p119 = scmp.eq.s32.totalorder %s30, 0
      %p120 = por %p118, %p119
      %s122 = sadd.s32 %s121, 1
      %p125 = scmp.eq.s32.totalorder %s24, 1
      %p126 = scmp.ne.s32.totalorder %s121, %s123
      %p127 = scmp.eq.s32.totalorder %s24, 0
      %p128 = por %p126, %p127
      %p129 = scmp.ne.s32.totalorder %s121, %s123
      %p130 = scmp.eq.s32.totalorder %s29, 1
      %p131 = por %p129, %p130
      %p132 = scmp.ne.s32.totalorder %s123, %s124
      %p133 = scmp.eq.s32.totalorder %s29, 0
      %p134 = por %p132, %p133
      %p135 = scmp.ne.s32.totalorder %s123, %s124
      %p136 = scmp.eq.s32.totalorder %s30, 1
      %p137 = por %p135, %p136
      %p139 = scmp.ne.s32.totalorder %s124, %s138
      %p140 = scmp.eq.s32.totalorder %s30, 0
      %p141 = por %p139, %p140
      %s143 = sadd.s32 %s142, 1
      %p146 = scmp.eq.s32.totalorder %s24, 1
      %p147 = scmp.ne.s32.totalorder %s142, %s144
      %p148 = scmp.eq.s32.totalorder %s24, 0
      %p149 = por %p147, %p148
      %p150 = scmp.ne.s32.totalorder %s142, %s144
      %p151 = scmp.eq.s32.totalorder %s29, 1
      %p152 = por %p150, %p151
      %p153 = scmp.ne.s32.totalorder %s144, %s145
      %p154 = scmp.eq.s32.totalorder %s29, 0
      %p155 = por %p153, %p154
      %p156 = scmp.ne.s32.totalorder %s144, %s145
      %p157 = scmp.eq.s32.totalorder %s30, 1
      %p158 = por %p156, %p157
      %p160 = scmp.ne.s32.totalorder %s145, %s159
      %p161 = scmp.eq.s32.totalorder %s30, 0
      %p162 = por %p160, %p161
      %s164 = sadd.s32 %s163, 1
      %p167 = scmp.eq.s32.totalorder %s24, 1
      %p168 = scmp.ne.s32.totalorder %s163, %s165
      %p169 = scmp.eq.s32.totalorder %s24, 0
      %p170 = por %p168, %p169
      %p171 = scmp.ne.s32.totalorder %s163, %s165
      %p172 = scmp.eq.s32.totalorder %s29, 1
      %p173 = por %p171, %p172
      %p174 = scmp.ne.s32.totalorder %s165, %s166
      %p175 = scmp.eq.s32.totalorder %s29, 0
      %p176 = por %p174, %p175
      %p177 = scmp.ne.s32.totalorder %s165, %s166
      %p178 = scmp.eq.s32.totalorder %s30, 1
      %p179 = por %p177, %p178
      %p181 = scmp.ne.s32.totalorder %s166, %s180
      %p182 = scmp.eq.s32.totalorder %s30, 0
      %p183 = por %p181, %p182
      %s185 = sadd.s32 %s184, 1
      %p188 = scmp.eq.s32.totalorder %s24, 1
      %p189 = scmp.ne.s32.totalorder %s184, %s186
      %p190 = scmp.eq.s32.totalorder %s24, 0
      %p191 = por %p189, %p190
      %p192 = scmp.ne.s32.totalorder %s184, %s186
      %p193 = scmp.eq.s32.totalorder %s29, 1
      %p194 = por %p192, %p193
      %p195 = scmp.ne.s32.totalorder %s186, %s187
      %p196 = scmp.eq.s32.totalorder %s29, 0
      %p197 = por %p195, %p196
      %p198 = scmp.ne.s32.totalorder %s186, %s187
      %p199 = scmp.eq.s32.totalorder %s30, 1
      %p200 = por %p198, %p199
      %p202 = scmp.ne.s32.totalorder %s187, %s201
      %p203 = scmp.eq.s32.totalorder %s30, 0
      %p204 = por %p202, %p203
      %s205 = ssub.s32 %s24, %s31
      %p206 = scmp.eq.s32.totalorder %s205, 0
      %s208 = sadd.s32 %s207, 1
      %s209 = scalar_select %p206, %s207, %s208
      %p212 = pneg %p206
      %p213 = scmp.eq.s32.totalorder %s24, 1
      %p214 = por %p212, %p213
      %p215 = scmp.ne.s32.totalorder %s207, %s210
      %p216 = scmp.eq.s32.totalorder %s24, 0
      %p217 = por %p215, %p216
      %p218 = scmp.ne.s32.totalorder %s207, %s210
      %p219 = scmp.eq.s32.totalorder %s29, 1
      %p220 = por %p218, %p219
      %p221 = scmp.ne.s32.totalorder %s210, %s211
      %p222 = scmp.eq.s32.totalorder %s29, 0
      %p223 = por %p221, %p222
      %p224 = scmp.ne.s32.totalorder %s210, %s211
      %p225 = scmp.eq.s32.totalorder %s30, 1
      %p226 = por %p224, %p225
      %p228 = scmp.ne.s32.totalorder %s211, %s227
      %p229 = scmp.eq.s32.totalorder %s30, 0
      %p230 = por %p228, %p229
      %s232 = sadd.s32 %s231, 1
      %p235 = scmp.eq.s32.totalorder %s24, 1
      %p236 = scmp.ne.s32.totalorder %s231, %s233
      %p237 = scmp.eq.s32.totalorder %s24, 0
      %p238 = por %p236, %p237
      %p239 = scmp.ne.s32.totalorder %s231, %s233
      %p240 = scmp.eq.s32.totalorder %s29, 1
      %p241 = por %p239, %p240
      %p242 = scmp.ne.s32.totalorder %s233, %s234
      %p243 = scmp.eq.s32.totalorder %s29, 0
      %p244 = por %p242, %p243
      %p245 = scmp.ne.s32.totalorder %s233, %s234
      %p246 = scmp.eq.s32.totalorder %s30, 1
      %p247 = por %p245, %p246
      %p249 = scmp.ne.s32.totalorder %s234, %s248
      %p250 = scmp.eq.s32.totalorder %s30, 0
      %p251 = por %p249, %p250
      %p252 = scmp.le.s32.totalorder 1, %s24
      %p253 = scmp.lt.s32.totalorder %s24, 3
      %p254 = pnand %p252, %p253
      %p255 = pneg %p254
      // Predicated region
      $region9: #{net4_forward.5} parent=5 // pred_check
        _
      $region10: #{net4_forward.5} parent=5 // pred_check_branch
        %257 = sbr.rel (%p254) target = $region12
      $region11: #{net4_forward.5} parent=5 // pred_region
        %s258 = ssub.s32 %s24, 1
        // Predicated region
        $region13: #{net4_forward.5} parent=11 // pred_check
          %p259 = pneg %p45
        $region14: #{net4_forward.5} parent=11 // pred_check_branch
          %261 = sbr.rel (%p259) target = $region16
        $region15: #{net4_forward.5} parent=11 // pred_region
          %s263 = ssub.s32 16, 16
          %264 = vsyncadd [#allocation3], %s263
          %s266 = sshll.u32 [#allocation2], 4
          %s267 = int_to_ptr.vmem [resolvable:$true] %s266
          %269 = dma.hbm_to_vmem [thread:$0]  %s0, 16, %s267, [#allocation3]
        $region16: #{net4_forward.5} parent=11 // pred_fallthru
          _
        // Predicated region
        $region17: #{net4_forward.5} parent=11 // pred_check
          %p270 = pneg %p66
        $region18: #{net4_forward.5} parent=11 // pred_check_branch
          %272 = sbr.rel (%p270) target = $region20
        $region19: #{net4_forward.5} parent=11 // pred_region
          %s274 = ssub.s32 512, 512
          %275 = vsyncadd [#allocation6], %s274
          %s276 = sshll.u32 [#allocation5], 4
          %s277 = int_to_ptr.vmem [resolvable:$true] %s276
          %282 = dma.hbm_to_vmem [thread:$0]  %s1, 512, %s277, [#allocation6], 128, 128, 8
        $region20: #{net4_forward.5} parent=11 // pred_fallthru
          _
        // Predicated region
        $region21: #{net4_forward.5} parent=11 // pred_check
          %p283 = pneg %p113
        $region22: #{net4_forward.5} parent=11 // pred_check_branch
          %285 = sbr.rel (%p283) target = $region24
        $region23: #{net4_forward.5} parent=11 // pred_region
          %s287 = ssub.s32 16, 16
          %288 = vsyncadd [#allocation6], %s287
          %s290 = sshll.u32 [#allocation8], 4
          %s291 = int_to_ptr.vmem [resolvable:$true] %s290
          %293 = dma.hbm_to_vmem [thread:$0]  %s3, 16, %s291, [#allocation6]
        $region24: #{net4_forward.5} parent=11 // pred_fallthru
          _
        // Predicated region
        $region25: #{net4_forward.5} parent=11 // pred_check
          %p294 = pneg %p134
        $region26: #{net4_forward.5} parent=11 // pred_check_branch
          %296 = sbr.rel (%p294) target = $region28
        $region27: #{net4_forward.5} parent=11 // pred_region
          %s298 = ssub.s32 1024, 1024
          %299 = vsyncadd [#allocation10], %s298
          %s300 = sshll.u32 [#allocation9], 4
          %s301 = int_to_ptr.vmem [resolvable:$true] %s300
          %306 = dma.hbm_to_vmem [thread:$0]  %s4, 1024, %s301, [#allocation10], 128, 128, 8
        $region28: #{net4_forward.5} parent=11 // pred_fallthru
          _
        // Predicated region
        $region29: #{net4_forward.5} parent=11 // pred_check
          %p307 = pneg %p155
        $region30: #{net4_forward.5} parent=11 // pred_check_branch
          %309 = sbr.rel (%p307) target = $region32
        $region31: #{net4_forward.5} parent=11 // pred_region
          %s311 = ssub.s32 64, 64
          %312 = vsyncadd [#allocation10], %s311
          %s314 = sshll.u32 [#allocation11], 4
          %s315 = int_to_ptr.vmem [resolvable:$true] %s314
          %317 = dma.hbm_to_vmem [thread:$0]  %s5, 64, %s315, [#allocation10]
        $region32: #{net4_forward.5} parent=11 // pred_fallthru
          _
        // Predicated region
        $region33: #{net4_forward.5} parent=11 // pred_check
          %p318 = pneg %p176
        $region34: #{net4_forward.5} parent=11 // pred_check_branch
          %320 = sbr.rel (%p318) target = $region36
        $region35: #{net4_forward.5} parent=11 // pred_region
          %s322 = ssub.s32 512, 512
          %323 = vsyncadd [#allocation13], %s322
          %s324 = sshll.u32 [#allocation12], 4
          %s325 = int_to_ptr.vmem [resolvable:$true] %s324
          %330 = dma.hbm_to_vmem [thread:$0]  %s6, 512, %s325, [#allocation13], 128, 128, 8
        $region36: #{net4_forward.5} parent=11 // pred_fallthru
          _
        // Predicated region
        $region37: #{net4_forward.5} parent=11 // pred_check
          %p331 = pneg %p197
        $region38: #{net4_forward.5} parent=11 // pred_check_branch
          %333 = sbr.rel (%p331) target = $region40
        $region39: #{net4_forward.5} parent=11 // pred_region
          %s335 = ssub.s32 16, 16
          %336 = vsyncadd [#allocation13], %s335
          %s338 = sshll.u32 [#allocation14], 4
          %s339 = int_to_ptr.vmem [resolvable:$true] %s338
          %341 = dma.hbm_to_vmem [thread:$0]  %s7, 16, %s339, [#allocation13]
        $region40: #{net4_forward.5} parent=11 // pred_fallthru
          _
      $region12: #{net4_forward.5} parent=5 // pred_fallthru
        _
      %p342 = scmp.lt.s32.totalorder %s24, 2
      // Predicated region
      $region41: #{net4_forward.5} parent=5 // pred_check
        %p343 = pneg %p342
      $region42: #{net4_forward.5} parent=5 // pred_check_branch
        %345 = sbr.rel (%p343) target = $region44
      $region43: #{net4_forward.5} parent=5 // pred_region
        // Predicated region
        $region45: #{net4_forward.5} parent=43 // pred_check
          %p346 = pneg %p86
        $region46: #{net4_forward.5} parent=43 // pred_check_branch
          %348 = sbr.rel (%p346) target = $region48
        $region47: #{net4_forward.5} parent=43 // pred_region
          %s349 = sand.u32 %s24, 1
          %s350 = scalar_lea.sflag [#allocation3], %s349
          %s351 = sand.u32 %s76, 1
          %s352 = smul.addr %s351, 8
          %s353 = scalar_lea.vmem [#allocation7], %s352
          %s355 = ssub.s32 128, 128
          %356 = vsyncadd %s350, %s355
          %s357 = smul.addr %s24, 128
          %s358 = scalar_lea.hbm %s2, %s357
          %s360 = sshll.u32 %s353, 4
          %s361 = int_to_ptr.vmem [resolvable:$true] %s360
          %363 = dma.hbm_to_vmem [thread:$0]  %s358, 128, %s361, %s350
        $region48: #{net4_forward.5} parent=43 // pred_fallthru
          _
      $region44: #{net4_forward.5} parent=5 // pred_fallthru
        _
      %p364 = scmp.le.s32.totalorder 1, %s24
      %p365 = scmp.lt.s32.totalorder %s24, 3
      %p366 = pnand %p364, %p365
      %p367 = pneg %p366
      // Predicated region
      $region49: #{net4_forward.5} parent=5 // pred_check
        _
      $region50: #{net4_forward.5} parent=5 // pred_check_branch
        %369 = sbr.rel (%p366) target = $region52
      $region51: #{net4_forward.5} parent=5 // pred_region
        %s370 = ssub.s32 %s24, 1
        // Predicated region
        $region53: #{net4_forward.5} parent=51 // pred_check
          %p371 = pneg %p45
        $region54: #{net4_forward.5} parent=51 // pred_check_branch
          %373 = sbr.rel (%p371) target = $region56
        $region55: #{net4_forward.5} parent=51 // pred_region
          %374 = dma.done [#allocation3], 16
        $region56: #{net4_forward.5} parent=51 // pred_fallthru
          _
        // Predicated region
        $region57: #{net4_forward.5} parent=51 // pred_check
          %p375 = pneg %p66
        $region58: #{net4_forward.5} parent=51 // pred_check_branch
          %377 = sbr.rel (%p375) target = $region60
        $region59: #{net4_forward.5} parent=51 // pred_region
          %378 = dma.done [#allocation6], 512
        $region60: #{net4_forward.5} parent=51 // pred_fallthru
          _
        %s379 = sand.u32 %s29, 1
        %s380 = scalar_lea.sflag [#allocation3], %s379
        %s381 = sand.u32 %s79, 1
        %s382 = smul.addr %s381, 8
        %s383 = scalar_lea.vmem [#allocation7], %s382
        // Predicated region
        $region61: #{net4_forward.5} parent=51 // pred_check
          %p384 = pneg %p92
        $region62: #{net4_forward.5} parent=51 // pred_check_branch
          %386 = sbr.rel (%p384) target = $region64
        $region63: #{net4_forward.5} parent=51 // pred_region
          %387 = dma.done %s380, 128
        $region64: #{net4_forward.5} parent=51 // pred_fallthru
          _
        // Predicated region
        $region65: #{net4_forward.5} parent=51 // pred_check
          %p388 = pneg %p113
        $region66: #{net4_forward.5} parent=51 // pred_check_branch
          %390 = sbr.rel (%p388) target = $region68
        $region67: #{net4_forward.5} parent=51 // pred_region
          %391 = dma.done [#allocation6], 16
        $region68: #{net4_forward.5} parent=51 // pred_fallthru
          _
        // Predicated region
        $region69: #{net4_forward.5} parent=51 // pred_check
          %p392 = pneg %p134
        $region70: #{net4_forward.5} parent=51 // pred_check_branch
          %394 = sbr.rel (%p392) target = $region72
        $region71: #{net4_forward.5} parent=51 // pred_region
          %395 = dma.done [#allocation10], 1024
        $region72: #{net4_forward.5} parent=51 // pred_fallthru
          _
        // Predicated region
        $region73: #{net4_forward.5} parent=51 // pred_check
          %p396 = pneg %p155
        $region74: #{net4_forward.5} parent=51 // pred_check_branch
          %398 = sbr.rel (%p396) target = $region76
        $region75: #{net4_forward.5} parent=51 // pred_region
          %399 = dma.done [#allocation10], 64
        $region76: #{net4_forward.5} parent=51 // pred_fallthru
          _
        // Predicated region
        $region77: #{net4_forward.5} parent=51 // pred_check
          %p400 = pneg %p176
        $region78: #{net4_forward.5} parent=51 // pred_check_branch
          %402 = sbr.rel (%p400) target = $region80
        $region79: #{net4_forward.5} parent=51 // pred_region
          %403 = dma.done [#allocation13], 512
        $region80: #{net4_forward.5} parent=51 // pred_fallthru
          _
        // Predicated region
        $region81: #{net4_forward.5} parent=51 // pred_check
          %p404 = pneg %p197
        $region82: #{net4_forward.5} parent=51 // pred_check_branch
          %406 = sbr.rel (%p404) target = $region84
        $region83: #{net4_forward.5} parent=51 // pred_region
          %407 = dma.done [#allocation13], 16
        $region84: #{net4_forward.5} parent=51 // pred_fallthru
          _
        %p408 = pneg %p45
        %p409 = pneg %p42
        %p410 = pneg %p66
        %p411 = pneg %p63
        %s412 = sand.u32 %s29, 1
        %s413 = scalar_lea.sflag [#allocation3], %s412
        %s414 = sand.u32 %s79, 1
        %s415 = smul.addr %s414, 8
        %s416 = scalar_lea.vmem [#allocation7], %s415
        %p417 = pneg %p92
        %p418 = pneg %p89
        %p419 = pneg %p113
        %p420 = pneg %p110
        %p421 = pneg %p134
        %p422 = pneg %p131
        %p423 = pneg %p155
        %p424 = pneg %p152
        %p425 = pneg %p176
        %p426 = pneg %p173
        %p427 = pneg %p197
        %p428 = pneg %p194
        %p429 = pneg %p223
        %p430 = pneg %p220
        %s431 = sand.u32 %s210, 1
        %s432 = scalar_lea.sflag [#allocation4], %s431
        %s433 = sand.u32 %s210, 1
        %s434 = smul.addr %s433, 8
        %s435 = scalar_lea.vmem [#allocation15], %s434
        %p436 = pneg %p244
        %p437 = pneg %p241
        %v438 = vlaneseq
        %v439 = vshrl.u32 %v438, 7
        %s440 = smul.u32 %s29, 8
        %v441 = vstv %s440
        %v442 = vadd.s32 %v439, %v441
        %v443 = vld [vmem:[#allocation2] sm:$0x1]
        %v444 = vlaneseq
        %v445 = vshrl.u32 %v444, 7
        %v446 = vsub.s32 0, %v445
        %v447 = vrot.slane %v443, %v446
        %vm448 = vcmp.eq.s32.totalorder %v442, %v447
        %v449 = vsel %vm448, 1, 0
        %v450 = vcvt.s32.f32 %v449
        %v451 = vld [vmem:[#allocation5] sm:$0xff]
        %v452 = vld [vmem:[#allocation5 + $0x8] sm:$0xff]
        %v453 = vld [vmem:[#allocation5 + $0x10] sm:$0xff]
        %v454 = vld [vmem:[#allocation5 + $0x18] sm:$0xff]
        %vm455 = vcmask 261120
        %v457 = vsel %vm455, %v450, 0
        %459 = vmatprep.subr.mxu0 0.0
        %460 = vmatpush1.msra.mxu0 %v451
        %461 = vmatprep.subr.mxu0 0.0
        %462 = vmatpush1.msra.mxu0 %v452
        %463 = vmatprep.subr.mxu0 0.0
        %464 = vmatpush1.msra.mxu0 %v453
        %465 = vmatprep.subr.mxu0 0.0
        %466 = vmatpush1.msra.mxu0 %v454
        %467 = vmatprep.subr.mxu0 0.0
        %468 = vmatpush1.msra.mxu0 0.0
        %469 = vmatprep.subr.mxu0 0.0
        %470 = vmatpush1.msra.mxu0 0.0
        %471 = vmatprep.subr.mxu0 0.0
        %472 = vmatpush1.msra.mxu0 0.0
        %473 = vmatprep.subr.mxu0 0.0
        %474 = vmatpush1.msra.mxu0 0.0
        %475 = vmatprep.subr.mxu0 0.0
        %476 = vmatpush1.msra.mxu0 0.0
        %477 = vmatprep.subr.mxu0 0.0
        %478 = vmatpush1.msra.mxu0 0.0
        %479 = vmatprep.subr.mxu0 0.0
        %480 = vmatpush1.msra.mxu0 0.0
        %481 = vmatprep.subr.mxu0 0.0
        %482 = vmatpush1.msra.mxu0 0.0
        %483 = vmatprep.subr.mxu0 0.0
        %484 = vmatpush1.msra.mxu0 0.0
        %485 = vmatprep.subr.mxu0 0.0
        %486 = vmatpush1.msra.mxu0 0.0
        %487 = vmatprep.subr.mxu0 0.0
        %488 = vmatpush1.msra.mxu0 0.0
        %489 = vmatprep.subr.mxu0 0.0
        %490 = vmatpush1.msra.mxu0 0.0
        %491 = vmatprep.subr.mxu0 0.0
        %492 = vmatpush1.msra.mxu0 0.0
        %493 = vmatprep.subr.mxu0 0.0
        %494 = vmatpush1.msra.mxu0 0.0
        %495 = vmatprep.subr.mxu0 0.0
        %496 = vmatpush1.msra.mxu0 0.0
        %497 = vmatprep.subr.mxu0 0.0
        %498 = vmatpush1.msra.mxu0 0.0
        %499 = vmatprep.subr.mxu0 0.0
        %500 = vmatpush1.msra.mxu0 0.0
        %501 = vmatprep.subr.mxu0 0.0
        %502 = vmatpush1.msra.mxu0 0.0
        %503 = vmatprep.subr.mxu0 0.0
        %504 = vmatpush1.msra.mxu0 0.0
        %505 = vmatprep.subr.mxu0 0.0
        %506 = vmatpush1.msra.mxu0 0.0
        %507 = vmatprep.subr.mxu0 0.0
        %508 = vmatpush1.msra.mxu0 0.0
        %509 = vmatprep.subr.mxu0 0.0
        %510 = vmatpush1.msra.mxu0 0.0
        %511 = vmatprep.subr.mxu0 0.0
        %512 = vmatpush1.msra.mxu0 0.0
        %513 = vmatprep.subr.mxu0 0.0
        %514 = vmatpush1.msra.mxu0 0.0
        %515 = vmatprep.subr.mxu0 0.0
        %516 = vmatpush1.msra.mxu0 0.0
        %517 = vmatprep.subr.mxu0 0.0
        %518 = vmatpush1.msra.mxu0 0.0
        %519 = vmatprep.subr.mxu0 0.0
        %520 = vmatpush1.msra.mxu0 0.0
        %521 = vmatprep.subr.mxu0 0.0
        %522 = vmatpush1.msra.mxu0 0.0
        %523 = vmatprep.mubr.f32.mxu0 0.0
        %524 = vmatmul.mubr.f32.gmra.mrb[0].mxu0 %v457
        %v525 = vpop.f32.mrb[0].mxu0
        %v526 = vadd.f32 0.0, %v525
        %v527 = vpop.f32.mrb[0].mxu0
        %528 = vdwg.mxu0
        %v529 = vld [vmem:[#allocation9] sm:$0xff]
        %v530 = vld [vmem:[#allocation9 + $0x8] sm:$0xff]
        %v531 = vld [vmem:[#allocation9 + $0x10] sm:$0xff]
        %v532 = vld [vmem:[#allocation9 + $0x18] sm:$0xff]
        %v533 = vld [vmem:[#allocation9 + $0x20] sm:$0xff]
        %v534 = vld [vmem:[#allocation9 + $0x28] sm:$0xff]
        %v535 = vld [vmem:[#allocation9 + $0x30] sm:$0xff]
        %v536 = vld [vmem:[#allocation9 + $0x38] sm:$0xff]
        %v537 = vld [vmem:[%s383] sm:$0xff]
        %v538 = vld [vmem:[#allocation11] sm:$0xf]
        %vm539 = vcmask 31744
        %v541 = vsel %vm539, %v537, 0
        %vm543 = vcmask 1043456
        %v545 = vsel %vm543, %v538, 0
        %547 = vmatprep.subr.mxu0 0.0
        %548 = vmatpush1.msra.mxu0 %v545
        %549 = vmatprep.subr.mxu0 0.0
        %550 = vmatpush1.msra.mxu0 0.0
        %551 = vmatprep.subr.mxu0 0.0
        %552 = vmatpush1.msra.mxu0 0.0
        %553 = vmatprep.subr.mxu0 0.0
        %554 = vmatpush1.msra.mxu0 0.0
        %555 = vmatprep.subr.mxu0 0.0
        %556 = vmatpush1.msra.mxu0 0.0
        %557 = vmatprep.subr.mxu0 0.0
        %558 = vmatpush1.msra.mxu0 0.0
        %559 = vmatprep.subr.mxu0 0.0
        %560 = vmatpush1.msra.mxu0 0.0
        %561 = vmatprep.subr.mxu0 0.0
        %562 = vmatpush1.msra.mxu0 0.0
        %563 = vmatprep.subr.mxu0 0.0
        %564 = vmatpush1.msra.mxu0 0.0
        %565 = vmatprep.subr.mxu0 0.0
        %566 = vmatpush1.msra.mxu0 0.0
        %567 = vmatprep.subr.mxu0 0.0
        %568 = vmatpush1.msra.mxu0 0.0
        %569 = vmatprep.subr.mxu0 0.0
        %570 = vmatpush1.msra.mxu0 0.0
        %571 = vmatprep.subr.mxu0 0.0
        %572 = vmatpush1.msra.mxu0 0.0
        %573 = vmatprep.subr.mxu0 0.0
        %574 = vmatpush1.msra.mxu0 0.0
        %575 = vmatprep.subr.mxu0 0.0
        %576 = vmatpush1.msra.mxu0 0.0
        %577 = vmatprep.subr.mxu0 0.0
        %578 = vmatpush1.msra.mxu0 0.0
        %579 = vmatprep.subr.mxu0 0.0
        %580 = vmatpush1.msra.mxu0 0.0
        %581 = vmatprep.subr.mxu0 0.0
        %582 = vmatpush1.msra.mxu0 0.0
        %583 = vmatprep.subr.mxu0 0.0
        %584 = vmatpush1.msra.mxu0 0.0
        %585 = vmatprep.subr.mxu0 0.0
        %586 = vmatpush1.msra.mxu0 0.0
        %587 = vmatprep.subr.mxu0 0.0
        %588 = vmatpush1.msra.mxu0 0.0
        %589 = vmatprep.subr.mxu0 0.0
        %590 = vmatpush1.msra.mxu0 0.0
        %591 = vmatprep.subr.mxu0 0.0
        %592 = vmatpush1.msra.mxu0 0.0
        %593 = vmatprep.subr.mxu0 0.0
        %594 = vmatpush1.msra.mxu0 0.0
        %595 = vmatprep.subr.mxu0 0.0
        %596 = vmatpush1.msra.mxu0 0.0
        %597 = vmatprep.subr.mxu0 0.0
        %598 = vmatpush1.msra.mxu0 0.0
        %599 = vmatprep.subr.mxu0 0.0
        %600 = vmatpush1.msra.mxu0 0.0
        %601 = vmatprep.subr.mxu0 0.0
        %602 = vmatpush1.msra.mxu0 0.0
        %603 = vmatprep.subr.mxu0 0.0
        %604 = vmatpush1.msra.mxu0 0.0
        %605 = vmatprep.subr.mxu0 0.0
        %606 = vmatpush1.msra.mxu0 0.0
        %607 = vmatprep.subr.mxu0 0.0
        %608 = vmatpush1.msra.mxu0 0.0
        %609 = vmatprep.subr.mxu0 0.0
        %610 = vmatpush1.msra.mxu0 0.0
        %611 = vmatprep.mubr.f32.mxu0 0.0
        %612 = vmatmul.mubr.f32.gmra.mrb[0].mxu0 %v541
        %v613 = vpop.f32.mrb[0].mxu0
        %v614 = vadd.f32 0.0, %v613
        %v615 = vpop.f32.mrb[0].mxu0
        %616 = vdwg.mxu0
        %vm617 = vcmask 523264
        %v619 = vsel %vm617, %v526, 0
        %621 = vmatprep.subr.mxu0 0.0
        %622 = vmatpush1.msra.mxu0 %v529
        %623 = vmatprep.subr.mxu0 0.0
        %624 = vmatpush1.msra.mxu0 %v530
        %625 = vmatprep.subr.mxu0 0.0
        %626 = vmatpush1.msra.mxu0 %v531
        %627 = vmatprep.subr.mxu0 0.0
        %628 = vmatpush1.msra.mxu0 %v532
        %629 = vmatprep.subr.mxu0 0.0
        %630 = vmatpush1.msra.mxu0 %v533
        %631 = vmatprep.subr.mxu0 0.0
        %632 = vmatpush1.msra.mxu0 %v534
        %633 = vmatprep.subr.mxu0 0.0
        %634 = vmatpush1.msra.mxu0 %v535
        %635 = vmatprep.subr.mxu0 0.0
        %636 = vmatpush1.msra.mxu0 %v536
        %637 = vmatprep.subr.mxu0 0.0
        %638 = vmatpush1.msra.mxu0 0.0
        %639 = vmatprep.subr.mxu0 0.0
        %640 = vmatpush1.msra.mxu0 0.0
        %641 = vmatprep.subr.mxu0 0.0
        %642 = vmatpush1.msra.mxu0 0.0
        %643 = vmatprep.subr.mxu0 0.0
        %644 = vmatpush1.msra.mxu0 0.0
        %645 = vmatprep.subr.mxu0 0.0
        %646 = vmatpush1.msra.mxu0 0.0
        %647 = vmatprep.subr.mxu0 0.0
        %648 = vmatpush1.msra.mxu0 0.0
        %649 = vmatprep.subr.mxu0 0.0
        %650 = vmatpush1.msra.mxu0 0.0
        %651 = vmatprep.subr.mxu0 0.0
        %652 = vmatpush1.msra.mxu0 0.0
        %653 = vmatprep.subr.mxu0 0.0
        %654 = vmatpush1.msra.mxu0 0.0
        %655 = vmatprep.subr.mxu0 0.0
        %656 = vmatpush1.msra.mxu0 0.0
        %657 = vmatprep.subr.mxu0 0.0
        %658 = vmatpush1.msra.mxu0 0.0
        %659 = vmatprep.subr.mxu0 0.0
        %660 = vmatpush1.msra.mxu0 0.0
        %661 = vmatprep.subr.mxu0 0.0
        %662 = vmatpush1.msra.mxu0 0.0
        %663 = vmatprep.subr.mxu0 0.0
        %664 = vmatpush1.msra.mxu0 0.0
        %665 = vmatprep.subr.mxu0 0.0
        %666 = vmatpush1.msra.mxu0 0.0
        %667 = vmatprep.subr.mxu0 0.0
        %668 = vmatpush1.msra.mxu0 0.0
        %669 = vmatprep.subr.mxu0 0.0
        %670 = vmatpush1.msra.mxu0 0.0
        %671 = vmatprep.subr.mxu0 0.0
        %672 = vmatpush1.msra.mxu0 0.0
        %673 = vmatprep.subr.mxu0 0.0
        %674 = vmatpush1.msra.mxu0 0.0
        %675 = vmatprep.subr.mxu0 0.0
        %676 = vmatpush1.msra.mxu0 0.0
        %677 = vmatprep.subr.mxu0 0.0
        %678 = vmatpush1.msra.mxu0 0.0
        %679 = vmatprep.subr.mxu0 0.0
        %680 = vmatpush1.msra.mxu0 0.0
        %681 = vmatprep.subr.mxu0 0.0
        %682 = vmatpush1.msra.mxu0 0.0
        %683 = vmatprep.subr.mxu0 0.0
        %684 = vmatpush1.msra.mxu0 0.0
        %685 = vmatprep.mubr.f32.mxu0 0.0
        %686 = vmatmul.mubr.f32.gmra.mrb[0].mxu0 %v619
        %v687 = vpop.f32.mrb[0].mxu0
        %v688 = vadd.f32 %v614, %v687
        %v689 = vpop.f32.mrb[0].mxu0
        %690 = vdwg.mxu0
        %v691 = vld [vmem:[#allocation8] sm:$0x1]
        %v692 = vld [vmem:[#allocation12] sm:$0xff]
        %v693 = vld [vmem:[#allocation12 + $0x8] sm:$0xff]
        %v694 = vld [vmem:[#allocation12 + $0x10] sm:$0xff]
        %v695 = vld [vmem:[#allocation12 + $0x18] sm:$0xff]
        %v697 = vsel %vm455, %v691, 0
        %699 = vmatprep.subr.mxu0 0.0
        %700 = vmatpush1.msra.mxu0 %v692
        %701 = vmatprep.subr.mxu0 0.0
        %702 = vmatpush1.msra.mxu0 %v693
        %703 = vmatprep.subr.mxu0 0.0
        %704 = vmatpush1.msra.mxu0 %v694
        %705 = vmatprep.subr.mxu0 0.0
        %706 = vmatpush1.msra.mxu0 %v695
        %707 = vmatprep.subr.mxu0 0.0
        %708 = vmatpush1.msra.mxu0 0.0
        %709 = vmatprep.subr.mxu0 0.0
        %710 = vmatpush1.msra.mxu0 0.0
        %711 = vmatprep.subr.mxu0 0.0
        %712 = vmatpush1.msra.mxu0 0.0
        %713 = vmatprep.subr.mxu0 0.0
        %714 = vmatpush1.msra.mxu0 0.0
        %715 = vmatprep.subr.mxu0 0.0
        %716 = vmatpush1.msra.mxu0 0.0
        %717 = vmatprep.subr.mxu0 0.0
        %718 = vmatpush1.msra.mxu0 0.0
        %719 = vmatprep.subr.mxu0 0.0
        %720 = vmatpush1.msra.mxu0 0.0
        %721 = vmatprep.subr.mxu0 0.0
        %722 = vmatpush1.msra.mxu0 0.0
        %723 = vmatprep.subr.mxu0 0.0
        %724 = vmatpush1.msra.mxu0 0.0
        %725 = vmatprep.subr.mxu0 0.0
        %726 = vmatpush1.msra.mxu0 0.0
        %727 = vmatprep.subr.mxu0 0.0
        %728 = vmatpush1.msra.mxu0 0.0
        %729 = vmatprep.subr.mxu0 0.0
        %730 = vmatpush1.msra.mxu0 0.0
        %731 = vmatprep.subr.mxu0 0.0
        %732 = vmatpush1.msra.mxu0 0.0
        %733 = vmatprep.subr.mxu0 0.0
        %734 = vmatpush1.msra.mxu0 0.0
        %735 = vmatprep.subr.mxu0 0.0
        %736 = vmatpush1.msra.mxu0 0.0
        %737 = vmatprep.subr.mxu0 0.0
        %738 = vmatpush1.msra.mxu0 0.0
        %739 = vmatprep.subr.mxu0 0.0
        %740 = vmatpush1.msra.mxu0 0.0
        %741 = vmatprep.subr.mxu0 0.0
        %742 = vmatpush1.msra.mxu0 0.0
        %743 = vmatprep.subr.mxu0 0.0
        %744 = vmatpush1.msra.mxu0 0.0
        %745 = vmatprep.subr.mxu0 0.0
        %746 = vmatpush1.msra.mxu0 0.0
        %747 = vmatprep.subr.mxu0 0.0
        %748 = vmatpush1.msra.mxu0 0.0
        %749 = vmatprep.subr.mxu0 0.0
        %750 = vmatpush1.msra.mxu0 0.0
        %751 = vmatprep.subr.mxu0 0.0
        %752 = vmatpush1.msra.mxu0 0.0
        %753 = vmatprep.subr.mxu0 0.0
        %754 = vmatpush1.msra.mxu0 0.0
        %755 = vmatprep.subr.mxu0 0.0
        %756 = vmatpush1.msra.mxu0 0.0
        %757 = vmatprep.subr.mxu0 0.0
        %758 = vmatpush1.msra.mxu0 0.0
        %759 = vmatprep.subr.mxu0 0.0
        %760 = vmatpush1.msra.mxu0 0.0
        %761 = vmatprep.subr.mxu0 0.0
        %762 = vmatpush1.msra.mxu0 0.0
        %763 = vmatprep.mubr.f32.mxu0 0.0
        %764 = vmatmul.mubr.f32.gmra.mrb[0].mxu0 %v697
        %v765 = vpop.f32.mrb[0].mxu0
        %v766 = vadd.f32 0.0, %v765
        %v767 = vpop.f32.mrb[0].mxu0
        %768 = vdwg.mxu0
        %v769 = vlaneseq
        %v770 = vshrl.u32 %v769, 7
        %v771 = vsub.s32 0, %v770
        %v772 = vrot.slane %v766, %v771
        %v773 = vadd.f32 %v688, %v772
        %v774 = vld [vmem:[#allocation14] sm:$0x1]
        %v776 = vlaneseq
        %v777 = vshrl.u32 %v776, 7
        %v778 = vsub.s32 0, %v777
        %v779 = vrot.slane %v774, %v778
        %v781 = vadd.f32 %v773, %v779
        %v782 = vmax.f32 %v781, 0.0
        %783 = vst.msk [vmem:[%s435] sm:$0xff] %vm617, %v782
        %p784 = scmp.eq.s32.totalorder %s29, 0
        // Predicated region
        $region85: #{net4_forward.5} parent=51 // pred_check
          %p785 = pneg %p784
        $region86: #{net4_forward.5} parent=51 // pred_check_branch
          %787 = sbr.rel (%p785) target = $region88
        $region87: #{net4_forward.5} parent=51 // pred_region
          %vm788 = vcmask 516096
          %789 = vst.msk [vmem:[#allocation16] sm:$0x1] %vm788, 0.0
        $region88: #{net4_forward.5} parent=51 // pred_fallthru
          _
        %v790 = vld [vmem:[#allocation16] sm:$0x1]
        %v791 = vsel %vm617, %v782, 0.0
        %v792 = vrot.slane %v791, 4
        %v793 = vadd.f32 %v791, %v792
        %v794 = vrot.slane %v793, 2
        %v795 = vadd.f32 %v793, %v794
        %v796 = vrot.slane %v795, 1
        %v797 = vadd.f32 %v795, %v796
        %v798 = vadd.f32 %v790, %v797
        %vm799 = vcmask 516096
        %800 = vst.msk [vmem:[#allocation16] sm:$0x1] %vm799, %v798
        %s801 = sand.u32 %s210, 1
        %s802 = scalar_lea.sflag [#allocation4], %s801
        %s803 = sand.u32 %s210, 1
        %s804 = smul.addr %s803, 8
        %s805 = scalar_lea.vmem [#allocation15], %s804
        // Predicated region
        $region89: #{net4_forward.5} parent=51 // pred_check
          %p806 = pneg %p220
        $region90: #{net4_forward.5} parent=51 // pred_check_branch
          %808 = sbr.rel (%p806) target = $region92
        $region91: #{net4_forward.5} parent=51 // pred_region
          %s810 = ssub.s32 128, 128
          %811 = vsyncadd %s802, %s810
          %s812 = smul.addr %s29, 128
          %s813 = scalar_lea.hbm %s8, %s812
          %s815 = sshll.u32 %s805, 4
          %s816 = int_to_ptr.vmem [resolvable:$true] %s815
          %818 = dma.vmem_to_hbm [thread:$0]  %s816, 128, %s813, %s802
        $region92: #{net4_forward.5} parent=51 // pred_fallthru
          _
        // Predicated region
        $region93: #{net4_forward.5} parent=51 // pred_check
          %p819 = pneg %p241
        $region94: #{net4_forward.5} parent=51 // pred_check_branch
          %821 = sbr.rel (%p819) target = $region96
        $region95: #{net4_forward.5} parent=51 // pred_region
          %s823 = ssub.s32 16, 16
          %824 = vsyncadd [#allocation17], %s823
          %s826 = sshll.u32 [#allocation16], 4
          %s827 = int_to_ptr.vmem [resolvable:$true] %s826
          %829 = dma.vmem_to_hbm [thread:$0]  %s827, 16, %s9, [#allocation17]
        $region96: #{net4_forward.5} parent=51 // pred_fallthru
          _
        // Predicated region
        $region97: #{net4_forward.5} parent=51 // pred_check
          %p830 = pneg %p241
        $region98: #{net4_forward.5} parent=51 // pred_check_branch
          %832 = sbr.rel (%p830) target = $region100
        $region99: #{net4_forward.5} parent=51 // pred_region
          %833 = dma.done [#allocation17], 16
        $region100: #{net4_forward.5} parent=51 // pred_fallthru
          _
      $region52: #{net4_forward.5} parent=5 // pred_fallthru
        _
      %p834 = scmp.le.s32.totalorder 2, %s24
      // Predicated region
      $region101: #{net4_forward.5} parent=5 // pred_check
        %p835 = pneg %p834
      $region102: #{net4_forward.5} parent=5 // pred_check_branch
        %837 = sbr.rel (%p835) target = $region104
      $region103: #{net4_forward.5} parent=5 // pred_region
        %s838 = ssub.s32 %s24, 2
        // Predicated region
        $region105: #{net4_forward.5} parent=103 // pred_check
          %p839 = pneg %p226
        $region106: #{net4_forward.5} parent=103 // pred_check_branch
          %841 = sbr.rel (%p839) target = $region108
        $region107: #{net4_forward.5} parent=103 // pred_region
          %s842 = sand.u32 %s211, 1
          %s843 = scalar_lea.sflag [#allocation4], %s842
          %s844 = sand.u32 %s211, 1
          %s845 = smul.addr %s844, 8
          %s846 = scalar_lea.vmem [#allocation15], %s845
          %847 = dma.done %s843, 128
        $region108: #{net4_forward.5} parent=103 // pred_fallthru
          _
      $region104: #{net4_forward.5} parent=5 // pred_fallthru
        _
    $region6: #{net4_forward.5} parent=1 // loop_footer
      %s28 = sadd.s32 1, %s24
    $region7: #{net4_forward.5} parent=1 // loop_footer_branch
      %23 = sbr.rel target = $region3
    $region8: #{net4_forward.5} parent=1 // loop_exit
      _
    %848 = vsyncpa [#allocation3], 1
    %s849 = scalar_lea.sflag [#allocation3], 1
    %850 = vsyncpa %s849, 1
    %851 = vsyncpa [#allocation6], 1
    %852 = vsyncpa [#allocation10], 1
    %853 = vsyncpa [#allocation13], 1
    %854 = vsyncpa [#allocation4], 1
    %s855 = scalar_lea.sflag [#allocation4], 1
    %856 = vsyncpa %s855, 1
    %857 = vsyncpa [#allocation17], 1

// kernel: net4_forward.7
$region0: #{net4_forward.7}
  #allocation0 [shape = 'u32[]', space=smem, size = 0x4, offset = 0x4, fixed_abs, tag = 'smem constant byte address 0x4 - core index']
  #allocation1 [shape = 'u32[144,128]{1,0:T(1,128)}', space=vmem, size = 0x12000, scoped, tag = 'internal scratch']
  %s0 = inlined_call_operand.hbm [shape: f32[32,64], index: 0, kind: input, shape index: {}]
  %s1 = inlined_call_operand.hbm [shape: f32[32,64], index: 1, kind: input, shape index: {}]
  %s2 = inlined_call_operand.hbm [shape: f32[32,64], index: 2, kind: input, shape index: {}]
  %s3 = inlined_call_operand.hbm [shape: f32[1,64], index: 3, kind: input, shape index: {}]
  %s4 = inlined_call_operand.hbm [shape: f32[32,2], index: 4, kind: input, shape index: {}]
  %s5 = inlined_call_operand.hbm [shape: f32[64,64], index: 5, kind: input, shape index: {}]
  %s6 = inlined_call_operand.hbm [shape: f32[64,64], index: 6, kind: input, shape index: {}]
  %s7 = inlined_call_operand.hbm [shape: f32[64,64], index: 7, kind: input, shape index: {}]
  %s8 = inlined_call_operand.hbm [shape: f32[64,64], index: 8, kind: input, shape index: {}]
  %s9 = inlined_call_operand.hbm [shape: f32[1,64], index: 9, kind: input, shape index: {}]
  %s10 = inlined_call_operand.hbm [shape: f32[64,6], index: 10, kind: input, shape index: {}]
  %s11 = inlined_call_operand.hbm [shape: f32[1,6], index: 11, kind: input, shape index: {}]
  %s12 = inlined_call_operand.hbm [shape: f32[32,3], index: 12, kind: output, shape index: {}]
  %s13 = sld [smem:[#allocation0]]
  $region129: #{net4_forward.7} parent=0
    _
  %s15 = ssub.s32 1, %s13
  %s16 = scalar_select 0, %s15, %s13
  $region1: #{net4_forward.7} parent=0
    #allocation2 [shape = 'u8[8192]{0}', space=vmem, size = 0x2000, scoped, tag = 'input window, operand 0']
    #allocation3 [shape = 's32[2]{0}', space=sflag, size = 0x8, scoped, tag = 'scoped memory for net4_forward.7']
    #allocation4 [shape = 's32[2]{0}', space=sflag, size = 0x8, scoped, tag = 'scoped memory for net4_forward.7']
    #allocation5 [shape = 'u8[8192]{0}', space=vmem, size = 0x2000, scoped, tag = 'input window, operand 1']
    #allocation6 [shape = 's32[2]{0}', space=sflag, size = 0x8, scoped, tag = 'scoped memory for net4_forward.7']
    #allocation7 [shape = 'u8[8192]{0}', space=vmem, size = 0x2000, scoped, tag = 'input window, operand 2']
    #allocation8 [shape = 'u8[512]{0}', space=vmem, size = 0x400, scoped, tag = 'input window, operand 3, single buffered']
    #allocation9 [shape = 's32[1]{0}', space=sflag, size = 0x4, scoped, tag = 'scoped memory for net4_forward.7']
    #allocation10 [shape = 'u8[8192]{0}', space=vmem, size = 0x2000, scoped, tag = 'input window, operand 4']
    #allocation11 [shape = 'u8[32768]{0}', space=vmem, size = 0x8000, scoped, tag = 'input window, operand 5, single buffered']
    #allocation12 [shape = 'u8[32768]{0}', space=vmem, size = 0x8000, scoped, tag = 'input window, operand 6, single buffered']
    #allocation13 [shape = 'u8[32768]{0}', space=vmem, size = 0x8000, scoped, tag = 'input window, operand 7, single buffered']
    #allocation14 [shape = 's32[1]{0}', space=sflag, size = 0x4, scoped, tag = 'scoped memory for net4_forward.7']
    #allocation15 [shape = 'u8[32768]{0}', space=vmem, size = 0x8000, scoped, tag = 'input window, operand 8, single buffered']
    #allocation16 [shape = 'u8[512]{0}', space=vmem, size = 0x400, scoped, tag = 'input window, operand 9, single buffered']
    #allocation17 [shape = 's32[1]{0}', space=sflag, size = 0x4, scoped, tag = 'scoped memory for net4_forward.7']
    #allocation18 [shape = 'u8[32768]{0}', space=vmem, size = 0x8000, scoped, tag = 'input window, operand 10, single buffered']
    #allocation19 [shape = 'u8[512]{0}', space=vmem, size = 0x400, scoped, tag = 'input window, operand 11, single buffered']
    #allocation20 [shape = 's32[1]{0}', space=sflag, size = 0x4, scoped, tag = 'scoped memory for net4_forward.7']
    #allocation21 [shape = 'u8[8192]{0}', space=vmem, size = 0x2000, scoped, tag = 'output window, operand 0']
    %17 = vsyncpa [#allocation3], 0
    %s18 = scalar_lea.sflag [#allocation3], 1
    %19 = vsyncpa %s18, 0
    %20 = vsyncpa [#allocation6], 0
    %s21 = scalar_lea.sflag [#allocation6], 1
    %22 = vsyncpa %s21, 0
    %23 = vsyncpa [#allocation9], 0
    %24 = vsyncpa [#allocation14], 0
    %25 = vsyncpa [#allocation17], 0
    %26 = vsyncpa [#allocation20], 0
    %27 = vsyncpa [#allocation4], 0
    %s28 = scalar_lea.sflag [#allocation4], 1
    %29 = vsyncpa %s28, 0
    loop: start=0, step=1, limit=6
    $region2: #{net4_forward.7} parent=1 // loop_pre_header
      _
    $region3: #{net4_forward.7} parent=1 // loop_header
      %s31 = sphi 0, %s35
      %p32 = scmp.ge.s32.totalorder %s31, 6
      %s41 = sphi 0, %s43
      %s44 = sphi 0, %s41
      %s45 = sphi 0, %s44
      %s61 = sphi 0, %s45
      %s67 = sphi 0, %s69
      %s70 = sphi 0, %s67
      %s71 = sphi 0, %s70
      %s87 = sphi 0, %s71
      %s93 = sphi 0, %s95
      %s96 = sphi 0, %s93
      %s97 = sphi 0, %s96
      %s113 = sphi 0, %s97
      %s117 = sphi 0, %s117
      %s119 = sphi 0, %s117
      %s120 = sphi 0, %s119
      %s134 = sphi 0, %s120
      %s140 = sphi 0, %s142
      %s143 = sphi 0, %s140
      %s144 = sphi 0, %s143
      %s160 = sphi 0, %s144
      %s164 = sphi 0, %s164
      %s166 = sphi 0, %s164
      %s167 = sphi 0, %s166
      %s181 = sphi 0, %s167
      %s185 = sphi 0, %s185
      %s187 = sphi 0, %s185
      %s188 = sphi 0, %s187
      %s202 = sphi 0, %s188
      %s206 = sphi 0, %s206
      %s208 = sphi 0, %s206
      %s209 = sphi 0, %s208
      %s223 = sphi 0, %s209
      %s227 = sphi 0, %s227
      %s229 = sphi 0, %s227
      %s230 = sphi 0, %s229
      %s244 = sphi 0, %s230
      %s248 = sphi 0, %s248
      %s250 = sphi 0, %s248
      %s251 = sphi 0, %s250
      %s265 = sphi 0, %s251
      %s269 = sphi 0, %s269
      %s271 = sphi 0, %s269
      %s272 = sphi 0, %s271
      %s286 = sphi 0, %s272
      %s290 = sphi 0, %s290
      %s292 = sphi 0, %s290
      %s293 = sphi 0, %s292
      %s307 = sphi 0, %s293
      %s313 = sphi 0, %s315
      %s316 = sphi 0, %s313
      %s317 = sphi 0, %s316
      %s333 = sphi 0, %s317
    $region4: #{net4_forward.7} parent=1 // loop_header_branch
      %34 = sbr.rel (%p32) target = $region8
    $region5: #{net4_forward.7} parent=1 // loop_body
      %s36 = ssub.s32 %s31, 1
      %s37 = ssub.s32 %s31, 2
      %s38 = sadd.s32 %s31, 1
      %s39 = ssub.s32 %s31, %s38
      %p40 = scmp.eq.s32.totalorder %s39, 0
      %s42 = sadd.s32 %s41, 1
      %s43 = scalar_select %p40, %s41, %s42
      %p46 = pneg %p40
      %p47 = scmp.eq.s32.totalorder %s31, 3
      %p48 = por %p46, %p47
      %p49 = scmp.ne.s32.totalorder %s41, %s44
      %p50 = scmp.eq.s32.totalorder %s31, 0
      %p51 = por %p49, %p50
      %p52 = scmp.ne.s32.totalorder %s41, %s44
      %p53 = scmp.eq.s32.totalorder %s36, 3
      %p54 = por %p52, %p53
      %p55 = scmp.ne.s32.totalorder %s44, %s45
      %p56 = scmp.eq.s32.totalorder %s36, 0
      %p57 = por %p55, %p56
      %p58 = scmp.ne.s32.totalorder %s44, %s45
      %p59 = scmp.eq.s32.totalorder %s37, 3
      %p60 = por %p58, %p59
      %p62 = scmp.ne.s32.totalorder %s45, %s61
      %p63 = scmp.eq.s32.totalorder %s37, 0
      %p64 = por %p62, %p63
      %s65 = ssub.s32 %s31, %s38
      %p66 = scmp.eq.s32.totalorder %s65, 0
      %s68 = sadd.s32 %s67, 1
      %s69 = scalar_select %p66, %s67, %s68
      %p72 = pneg %p66
      %p73 = scmp.eq.s32.totalorder %s31, 3
      %p74 = por %p72, %p73
      %p75 = scmp.ne.s32.totalorder %s67, %s70
      %p76 = scmp.eq.s32.totalorder %s31, 0
      %p77 = por %p75, %p76
      %p78 = scmp.ne.s32.totalorder %s67, %s70
      %p79 = scmp.eq.s32.totalorder %s36, 3
      %p80 = por %p78, %p79
      %p81 = scmp.ne.s32.totalorder %s70, %s71
      %p82 = scmp.eq.s32.totalorder %s36, 0
      %p83 = por %p81, %p82
      %p84 = scmp.ne.s32.totalorder %s70, %s71
      %p85 = scmp.eq.s32.totalorder %s37, 3
      %p86 = por %p84, %p85
      %p88 = scmp.ne.s32.totalorder %s71, %s87
      %p89 = scmp.eq.s32.totalorder %s37, 0
      %p90 = por %p88, %p89
      %s91 = ssub.s32 %s31, %s38
      %p92 = scmp.eq.s32.totalorder %s91, 0
      %s94 = sadd.s32 %s93, 1
      %s95 = scalar_select %p92, %s93, %s94
      %p98 = pneg %p92
      %p99 = scmp.eq.s32.totalorder %s31, 3
      %p100 = por %p98, %p99
      %p101 = scmp.ne.s32.totalorder %s93, %s96
      %p102 = scmp.eq.s32.totalorder %s31, 0
      %p103 = por %p101, %p102
      %p104 = scmp.ne.s32.totalorder %s93, %s96
      %p105 = scmp.eq.s32.totalorder %s36, 3
      %p106 = por %p104, %p105
      %p107 = scmp.ne.s32.totalorder %s96, %s97
      %p108 = scmp.eq.s32.totalorder %s36, 0
      %p109 = por %p107, %p108
      %p110 = scmp.ne.s32.totalorder %s96, %s97
      %p111 = scmp.eq.s32.totalorder %s37, 3
      %p112 = por %p110, %p111
      %p114 = scmp.ne.s32.totalorder %s97, %s113
      %p115 = scmp.eq.s32.totalorder %s37, 0
      %p116 = por %p114, %p115
      %s118 = sadd.s32 %s117, 1
      %p121 = scmp.eq.s32.totalorder %s31, 3
      %p122 = scmp.ne.s32.totalorder %s117, %s119
      %p123 = scmp.eq.s32.totalorder %s31, 0
      %p124 = por %p122, %p123
      %p125 = scmp.ne.s32.totalorder %s117, %s119
      %p126 = scmp.eq.s32.totalorder %s36, 3
      %p127 = por %p125, %p126
      %p128 = scmp.ne.s32.totalorder %s119, %s120
      %p129 = scmp.eq.s32.totalorder %s36, 0
      %p130 = por %p128, %p129
      %p131 = scmp.ne.s32.totalorder %s119, %s120
      %p132 = scmp.eq.s32.totalorder %s37, 3
      %p133 = por %p131, %p132
      %p135 = scmp.ne.s32.totalorder %s120, %s134
      %p136 = scmp.eq.s32.totalorder %s37, 0
      %p137 = por %p135, %p136
      %s138 = ssub.s32 %s31, %s38
      %p139 = scmp.eq.s32.totalorder %s138, 0
      %s141 = sadd.s32 %s140, 1
      %s142 = scalar_select %p139, %s140, %s141
      %p145 = pneg %p139
      %p146 = scmp.eq.s32.totalorder %s31, 3
      %p147 = por %p145, %p146
      %p148 = scmp.ne.s32.totalorder %s140, %s143
      %p149 = scmp.eq.s32.totalorder %s31, 0
      %p150 = por %p148, %p149
      %p151 = scmp.ne.s32.totalorder %s140, %s143
      %p152 = scmp.eq.s32.totalorder %s36, 3
      %p153 = por %p151, %p152
      %p154 = scmp.ne.s32.totalorder %s143, %s144
      %p155 = scmp.eq.s32.totalorder %s36, 0
      %p156 = por %p154, %p155
      %p157 = scmp.ne.s32.totalorder %s143, %s144
      %p158 = scmp.eq.s32.totalorder %s37, 3
      %p159 = por %p157, %p158
      %p161 = scmp.ne.s32.totalorder %s144, %s160
      %p162 = scmp.eq.s32.totalorder %s37, 0
      %p163 = por %p161, %p162
      %s165 = sadd.s32 %s164, 1
      %p168 = scmp.eq.s32.totalorder %s31, 3
      %p169 = scmp.ne.s32.totalorder %s164, %s166
      %p170 = scmp.eq.s32.totalorder %s31, 0
      %p171 = por %p169, %p170
      %p172 = scmp.ne.s32.totalorder %s164, %s166
      %p173 = scmp.eq.s32.totalorder %s36, 3
      %p174 = por %p172, %p173
      %p175 = scmp.ne.s32.totalorder %s166, %s167
      %p176 = scmp.eq.s32.totalorder %s36, 0
      %p177 = por %p175, %p176
      %p178 = scmp.ne.s32.totalorder %s166, %s167
      %p179 = scmp.eq.s32.totalorder %s37, 3
      %p180 = por %p178, %p179
      %p182 = scmp.ne.s32.totalorder %s167, %s181
      %p183 = scmp.eq.s32.totalorder %s37, 0
      %p184 = por %p182, %p183
      %s186 = sadd.s32 %s185, 1
      %p189 = scmp.eq.s32.totalorder %s31, 3
      %p190 = scmp.ne.s32.totalorder %s185, %s187
      %p191 = scmp.eq.s32.totalorder %s31, 0
      %p192 = por %p190, %p191
      %p193 = scmp.ne.s32.totalorder %s185, %s187
      %p194 = scmp.eq.s32.totalorder %s36, 3
      %p195 = por %p193, %p194
      %p196 = scmp.ne.s32.totalorder %s187, %s188
      %p197 = scmp.eq.s32.totalorder %s36, 0
      %p198 = por %p196, %p197
      %p199 = scmp.ne.s32.totalorder %s187, %s188
      %p200 = scmp.eq.s32.totalorder %s37, 3
      %p201 = por %p199, %p200
      %p203 = scmp.ne.s32.totalorder %s188, %s202
      %p204 = scmp.eq.s32.totalorder %s37, 0
      %p205 = por %p203, %p204
      %s207 = sadd.s32 %s206, 1
      %p210 = scmp.eq.s32.totalorder %s31, 3
      %p211 = scmp.ne.s32.totalorder %s206, %s208
      %p212 = scmp.eq.s32.totalorder %s31, 0
      %p213 = por %p211, %p212
      %p214 = scmp.ne.s32.totalorder %s206, %s208
      %p215 = scmp.eq.s32.totalorder %s36, 3
      %p216 = por %p214, %p215
      %p217 = scmp.ne.s32.totalorder %s208, %s209
      %p218 = scmp.eq.s32.totalorder %s36, 0
      %p219 = por %p217, %p218
      %p220 = scmp.ne.s32.totalorder %s208, %s209
      %p221 = scmp.eq.s32.totalorder %s37, 3
      %p222 = por %p220, %p221
      %p224 = scmp.ne.s32.totalorder %s209, %s223
      %p225 = scmp.eq.s32.totalorder %s37, 0
      %p226 = por %p224, %p225
      %s228 = sadd.s32 %s227, 1
      %p231 = scmp.eq.s32.totalorder %s31, 3
      %p232 = scmp.ne.s32.totalorder %s227, %s229
      %p233 = scmp.eq.s32.totalorder %s31, 0
      %p234 = por %p232, %p233
      %p235 = scmp.ne.s32.totalorder %s227, %s229
      %p236 = scmp.eq.s32.totalorder %s36, 3
      %p237 = por %p235, %p236
      %p238 = scmp.ne.s32.totalorder %s229, %s230
      %p239 = scmp.eq.s32.totalorder %s36, 0
      %p240 = por %p238, %p239
      %p241 = scmp.ne.s32.totalorder %s229, %s230
      %p242 = scmp.eq.s32.totalorder %s37, 3
      %p243 = por %p241, %p242
      %p245 = scmp.ne.s32.totalorder %s230, %s244
      %p246 = scmp.eq.s32.totalorder %s37, 0
      %p247 = por %p245, %p246
      %s249 = sadd.s32 %s248, 1
      %p252 = scmp.eq.s32.totalorder %s31, 3
      %p253 = scmp.ne.s32.totalorder %s248, %s250
      %p254 = scmp.eq.s32.totalorder %s31, 0
      %p255 = por %p253, %p254
      %p256 = scmp.ne.s32.totalorder %s248, %s250
      %p257 = scmp.eq.s32.totalorder %s36, 3
      %p258 = por %p256, %p257
      %p259 = scmp.ne.s32.totalorder %s250, %s251
      %p260 = scmp.eq.s32.totalorder %s36, 0
      %p261 = por %p259, %p260
      %p262 = scmp.ne.s32.totalorder %s250, %s251
      %p263 = scmp.eq.s32.totalorder %s37, 3
      %p264 = por %p262, %p263
      %p266 = scmp.ne.s32.totalorder %s251, %s265
      %p267 = scmp.eq.s32.totalorder %s37, 0
      %p268 = por %p266, %p267
      %s270 = sadd.s32 %s269, 1
      %p273 = scmp.eq.s32.totalorder %s31, 3
      %p274 = scmp.ne.s32.totalorder %s269, %s271
      %p275 = scmp.eq.s32.totalorder %s31, 0
      %p276 = por %p274, %p275
      %p277 = scmp.ne.s32.totalorder %s269, %s271
      %p278 = scmp.eq.s32.totalorder %s36, 3
      %p279 = por %p277, %p278
      %p280 = scmp.ne.s32.totalorder %s271, %s272
      %p281 = scmp.eq.s32.totalorder %s36, 0
      %p282 = por %p280, %p281
      %p283 = scmp.ne.s32.totalorder %s271, %s272
      %p284 = scmp.eq.s32.totalorder %s37, 3
      %p285 = por %p283, %p284
      %p287 = scmp.ne.s32.totalorder %s272, %s286
      %p288 = scmp.eq.s32.totalorder %s37, 0
      %p289 = por %p287, %p288
      %s291 = sadd.s32 %s290, 1
      %p294 = scmp.eq.s32.totalorder %s31, 3
      %p295 = scmp.ne.s32.totalorder %s290, %s292
      %p296 = scmp.eq.s32.totalorder %s31, 0
      %p297 = por %p295, %p296
      %p298 = scmp.ne.s32.totalorder %s290, %s292
      %p299 = scmp.eq.s32.totalorder %s36, 3
      %p300 = por %p298, %p299
      %p301 = scmp.ne.s32.totalorder %s292, %s293
      %p302 = scmp.eq.s32.totalorder %s36, 0
      %p303 = por %p301, %p302
      %p304 = scmp.ne.s32.totalorder %s292, %s293
      %p305 = scmp.eq.s32.totalorder %s37, 3
      %p306 = por %p304, %p305
      %p308 = scmp.ne.s32.totalorder %s293, %s307
      %p309 = scmp.eq.s32.totalorder %s37, 0
      %p310 = por %p308, %p309
      %s311 = ssub.s32 %s31, %s38
      %p312 = scmp.eq.s32.totalorder %s311, 0
      %s314 = sadd.s32 %s313, 1
      %s315 = scalar_select %p312, %s313, %s314
      %p318 = pneg %p312
      %p319 = scmp.eq.s32.totalorder %s31, 3
      %p320 = por %p318, %p319
      %p321 = scmp.ne.s32.totalorder %s313, %s316
      %p322 = scmp.eq.s32.totalorder %s31, 0
      %p323 = por %p321, %p322
      %p324 = scmp.ne.s32.totalorder %s313, %s316
      %p325 = scmp.eq.s32.totalorder %s36, 3
      %p326 = por %p324, %p325
      %p327 = scmp.ne.s32.totalorder %s316, %s317
      %p328 = scmp.eq.s32.totalorder %s36, 0
      %p329 = por %p327, %p328
      %p330 = scmp.ne.s32.totalorder %s316, %s317
      %p331 = scmp.eq.s32.totalorder %s37, 3
      %p332 = por %p330, %p331
      %p334 = scmp.ne.s32.totalorder %s317, %s333
      %p335 = scmp.eq.s32.totalorder %s37, 0
      %p336 = por %p334, %p335
      %p337 = scmp.le.s32.totalorder 1, %s31
      %p338 = scmp.lt.s32.totalorder %s31, 5
      %p339 = pnand %p337, %p338
      %p340 = pneg %p339
      // Predicated region
      $region9: #{net4_forward.7} parent=5 // pred_check
        _
      $region10: #{net4_forward.7} parent=5 // pred_check_branch
        %342 = sbr.rel (%p339) target = $region12
      $region11: #{net4_forward.7} parent=5 // pred_region
        %s343 = ssub.s32 %s31, 1
        // Predicated region
        $region13: #{net4_forward.7} parent=11 // pred_check
          %p344 = pneg %p130
        $region14: #{net4_forward.7} parent=11 // pred_check_branch
          %346 = sbr.rel (%p344) target = $region16
        $region15: #{net4_forward.7} parent=11 // pred_region
          %s348 = ssub.s32 16, 16
          %349 = vsyncadd [#allocation9], %s348
          %s351 = sshll.u32 [#allocation8], 4
          %s352 = int_to_ptr.vmem [resolvable:$true] %s351
          %354 = dma.hbm_to_vmem [thread:$0]  %s3, 16, %s352, [#allocation9]
        $region16: #{net4_forward.7} parent=11 // pred_fallthru
          _
        // Predicated region
        $region17: #{net4_forward.7} parent=11 // pred_check
          %p355 = pneg %p177
        $region18: #{net4_forward.7} parent=11 // pred_check_branch
          %357 = sbr.rel (%p355) target = $region20
        $region19: #{net4_forward.7} parent=11 // pred_region
          %s359 = ssub.s32 1024, 1024
          %360 = vsyncadd [#allocation6], %s359
          %s361 = sshll.u32 [#allocation11], 4
          %s362 = int_to_ptr.vmem [resolvable:$true] %s361
          %367 = dma.hbm_to_vmem [thread:$0]  %s5, 1024, %s362, [#allocation6], 128, 128, 8
        $region20: #{net4_forward.7} parent=11 // pred_fallthru
          _
        // Predicated region
        $region21: #{net4_forward.7} parent=11 // pred_check
          %p368 = pneg %p198
        $region22: #{net4_forward.7} parent=11 // pred_check_branch
          %370 = sbr.rel (%p368) target = $region24
        $region23: #{net4_forward.7} parent=11 // pred_region
          %s372 = ssub.s32 1024, 1024
          %373 = vsyncadd [#allocation9], %s372
          %s374 = sshll.u32 [#allocation12], 4
          %s375 = int_to_ptr.vmem [resolvable:$true] %s374
          %380 = dma.hbm_to_vmem [thread:$0]  %s6, 1024, %s375, [#allocation9], 128, 128, 8
        $region24: #{net4_forward.7} parent=11 // pred_fallthru
          _
        // Predicated region
        $region25: #{net4_forward.7} parent=11 // pred_check
          %p381 = pneg %p219
        $region26: #{net4_forward.7} parent=11 // pred_check_branch
          %383 = sbr.rel (%p381) target = $region28
        $region27: #{net4_forward.7} parent=11 // pred_region
          %s385 = ssub.s32 1024, 1024
          %386 = vsyncadd [#allocation14], %s385
          %s387 = sshll.u32 [#allocation13], 4
          %s388 = int_to_ptr.vmem [resolvable:$true] %s387
          %393 = dma.hbm_to_vmem [thread:$0]  %s7, 1024, %s388, [#allocation14], 128, 128, 8
        $region28: #{net4_forward.7} parent=11 // pred_fallthru
          _
        // Predicated region
        $region29: #{net4_forward.7} parent=11 // pred_check
          %p394 = pneg %p240
        $region30: #{net4_forward.7} parent=11 // pred_check_branch
          %396 = sbr.rel (%p394) target = $region32
        $region31: #{net4_forward.7} parent=11 // pred_region
          %s398 = ssub.s32 1024, 1024
          %399 = vsyncadd [#allocation14], %s398
          %s400 = sshll.u32 [#allocation15], 4
          %s401 = int_to_ptr.vmem [resolvable:$true] %s400
          %406 = dma.hbm_to_vmem [thread:$0]  %s8, 1024, %s401, [#allocation14], 128, 128, 8
        $region32: #{net4_forward.7} parent=11 // pred_fallthru
          _
        // Predicated region
        $region33: #{net4_forward.7} parent=11 // pred_check
          %p407 = pneg %p261
        $region34: #{net4_forward.7} parent=11 // pred_check_branch
          %409 = sbr.rel (%p407) target = $region36
        $region35: #{net4_forward.7} parent=11 // pred_region
          %s411 = ssub.s32 16, 16
          %412 = vsyncadd [#allocation17], %s411
          %s414 = sshll.u32 [#allocation16], 4
          %s415 = int_to_ptr.vmem [resolvable:$true] %s414
          %417 = dma.hbm_to_vmem [thread:$0]  %s9, 16, %s415, [#allocation17]
        $region36: #{net4_forward.7} parent=11 // pred_fallthru
          _
        // Predicated region
        $region37: #{net4_forward.7} parent=11 // pred_check
          %p418 = pneg %p282
        $region38: #{net4_forward.7} parent=11 // pred_check_branch
          %420 = sbr.rel (%p418) target = $region40
        $region39: #{net4_forward.7} parent=11 // pred_region
          %s422 = ssub.s32 1024, 1024
          %423 = vsyncadd [#allocation17], %s422
          %s424 = sshll.u32 [#allocation18], 4
          %s425 = int_to_ptr.vmem [resolvable:$true] %s424
          %430 = dma.hbm_to_vmem [thread:$0]  %s10, 1024, %s425, [#allocation17], 128, 128, 8
        $region40: #{net4_forward.7} parent=11 // pred_fallthru
          _
        // Predicated region
        $region41: #{net4_forward.7} parent=11 // pred_check
          %p431 = pneg %p303
        $region42: #{net4_forward.7} parent=11 // pred_check_branch
          %433 = sbr.rel (%p431) target = $region44
        $region43: #{net4_forward.7} parent=11 // pred_region
          %s435 = ssub.s32 16, 16
          %436 = vsyncadd [#allocation20], %s435
          %s438 = sshll.u32 [#allocation19], 4
          %s439 = int_to_ptr.vmem [resolvable:$true] %s438
          %441 = dma.hbm_to_vmem [thread:$0]  %s11, 16, %s439, [#allocation20]
        $region44: #{net4_forward.7} parent=11 // pred_fallthru
          _
      $region12: #{net4_forward.7} parent=5 // pred_fallthru
        _
      %p442 = scmp.lt.s32.totalorder %s31, 4
      // Predicated region
      $region45: #{net4_forward.7} parent=5 // pred_check
        %p443 = pneg %p442
      $region46: #{net4_forward.7} parent=5 // pred_check_branch
        %445 = sbr.rel (%p443) target = $region48
      $region47: #{net4_forward.7} parent=5 // pred_region
        // Predicated region
        $region49: #{net4_forward.7} parent=47 // pred_check
          %p446 = pneg %p51
        $region50: #{net4_forward.7} parent=47 // pred_check_branch
          %448 = sbr.rel (%p446) target = $region52
        $region51: #{net4_forward.7} parent=47 // pred_region
          %s449 = sand.u32 %s31, 1
          %s450 = scalar_lea.sflag [#allocation3], %s449
          %s451 = sand.u32 %s41, 1
          %s452 = smul.addr %s451, 8
          %s453 = scalar_lea.vmem [#allocation2], %s452
          %s455 = ssub.s32 128, 128
          %456 = vsyncadd %s450, %s455
          %s457 = smul.addr %s31, 128
          %s458 = scalar_lea.hbm %s0, %s457
          %s460 = sshll.u32 %s453, 4
          %s461 = int_to_ptr.vmem [resolvable:$true] %s460
          %463 = dma.hbm_to_vmem [thread:$0]  %s458, 128, %s461, %s450
        $region52: #{net4_forward.7} parent=47 // pred_fallthru
          _
        // Predicated region
        $region53: #{net4_forward.7} parent=47 // pred_check
          %p464 = pneg %p77
        $region54: #{net4_forward.7} parent=47 // pred_check_branch
          %466 = sbr.rel (%p464) target = $region56
        $region55: #{net4_forward.7} parent=47 // pred_region
          %s467 = sand.u32 %s31, 1
          %s468 = scalar_lea.sflag [#allocation6], %s467
          %s469 = sand.u32 %s67, 1
          %s470 = smul.addr %s469, 8
          %s471 = scalar_lea.vmem [#allocation5], %s470
          %s473 = ssub.s32 128, 128
          %474 = vsyncadd %s468, %s473
          %s475 = smul.addr %s31, 128
          %s476 = scalar_lea.hbm %s1, %s475
          %s478 = sshll.u32 %s471, 4
          %s479 = int_to_ptr.vmem [resolvable:$true] %s478
          %481 = dma.hbm_to_vmem [thread:$0]  %s476, 128, %s479, %s468
        $region56: #{net4_forward.7} parent=47 // pred_fallthru
          _
        // Predicated region
        $region57: #{net4_forward.7} parent=47 // pred_check
          %p482 = pneg %p103
        $region58: #{net4_forward.7} parent=47 // pred_check_branch
          %484 = sbr.rel (%p482) target = $region60
        $region59: #{net4_forward.7} parent=47 // pred_region
          %s485 = sand.u32 %s31, 1
          %s486 = scalar_lea.sflag [#allocation6], %s485
          %s487 = sand.u32 %s93, 1
          %s488 = smul.addr %s487, 8
          %s489 = scalar_lea.vmem [#allocation7], %s488
          %s491 = ssub.s32 128, 128
          %492 = vsyncadd %s486, %s491
          %s493 = smul.addr %s31, 128
          %s494 = scalar_lea.hbm %s2, %s493
          %s496 = sshll.u32 %s489, 4
          %s497 = int_to_ptr.vmem [resolvable:$true] %s496
          %499 = dma.hbm_to_vmem [thread:$0]  %s494, 128, %s497, %s486
        $region60: #{net4_forward.7} parent=47 // pred_fallthru
          _
        // Predicated region
        $region61: #{net4_forward.7} parent=47 // pred_check
          %p500 = pneg %p150
        $region62: #{net4_forward.7} parent=47 // pred_check_branch
          %502 = sbr.rel (%p500) target = $region64
        $region63: #{net4_forward.7} parent=47 // pred_region
          %s503 = sand.u32 %s31, 1
          %s504 = scalar_lea.sflag [#allocation3], %s503
          %s505 = sand.u32 %s140, 1
          %s506 = smul.addr %s505, 8
          %s507 = scalar_lea.vmem [#allocation10], %s506
          %s509 = ssub.s32 128, 128
          %510 = vsyncadd %s504, %s509
          %s511 = smul.addr %s31, 128
          %s512 = scalar_lea.hbm %s4, %s511
          %s514 = sshll.u32 %s507, 4
          %s515 = int_to_ptr.vmem [resolvable:$true] %s514
          %517 = dma.hbm_to_vmem [thread:$0]  %s512, 128, %s515, %s504
        $region64: #{net4_forward.7} parent=47 // pred_fallthru
          _
      $region48: #{net4_forward.7} parent=5 // pred_fallthru
        _
      %p518 = scmp.le.s32.totalorder 1, %s31
      %p519 = scmp.lt.s32.totalorder %s31, 5
      %p520 = pnand %p518, %p519
      %p521 = pneg %p520
      // Predicated region
      $region65: #{net4_forward.7} parent=5 // pred_check
        _
      $region66: #{net4_forward.7} parent=5 // pred_check_branch
        %523 = sbr.rel (%p520) target = $region68
      $region67: #{net4_forward.7} parent=5 // pred_region
        %s524 = ssub.s32 %s31, 1
        %s525 = sand.u32 %s36, 1
        %s526 = scalar_lea.sflag [#allocation3], %s525
        %s527 = sand.u32 %s44, 1
        %s528 = smul.addr %s527, 8
        %s529 = scalar_lea.vmem [#allocation2], %s528
        // Predicated region
        $region69: #{net4_forward.7} parent=67 // pred_check
          %p530 = pneg %p57
        $region70: #{net4_forward.7} parent=67 // pred_check_branch
          %532 = sbr.rel (%p530) target = $region72
        $region71: #{net4_forward.7} parent=67 // pred_region
          %533 = dma.done %s526, 128
        $region72: #{net4_forward.7} parent=67 // pred_fallthru
          _
        %s534 = sand.u32 %s36, 1
        %s535 = scalar_lea.sflag [#allocation6], %s534
        %s536 = sand.u32 %s70, 1
        %s537 = smul.addr %s536, 8
        %s538 = scalar_lea.vmem [#allocation5], %s537
        // Predicated region
        $region73: #{net4_forward.7} parent=67 // pred_check
          %p539 = pneg %p83
        $region74: #{net4_forward.7} parent=67 // pred_check_branch
          %541 = sbr.rel (%p539) target = $region76
        $region75: #{net4_forward.7} parent=67 // pred_region
          %542 = dma.done %s535, 128
        $region76: #{net4_forward.7} parent=67 // pred_fallthru
          _
        %s543 = sand.u32 %s36, 1
        %s544 = scalar_lea.sflag [#allocation6], %s543
        %s545 = sand.u32 %s96, 1
        %s546 = smul.addr %s545, 8
        %s547 = scalar_lea.vmem [#allocation7], %s546
        // Predicated region
        $region77: #{net4_forward.7} parent=67 // pred_check
          %p548 = pneg %p109
        $region78: #{net4_forward.7} parent=67 // pred_check_branch
          %550 = sbr.rel (%p548) target = $region80
        $region79: #{net4_forward.7} parent=67 // pred_region
          %551 = dma.done %s544, 128
        $region80: #{net4_forward.7} parent=67 // pred_fallthru
          _
        // Predicated region
        $region81: #{net4_forward.7} parent=67 // pred_check
          %p552 = pneg %p130
        $region82: #{net4_forward.7} parent=67 // pred_check_branch
          %554 = sbr.rel (%p552) target = $region84
        $region83: #{net4_forward.7} parent=67 // pred_region
          %555 = dma.done [#allocation9], 16
        $region84: #{net4_forward.7} parent=67 // pred_fallthru
          _
        %s556 = sand.u32 %s36, 1
        %s557 = scalar_lea.sflag [#allocation3], %s556
        %s558 = sand.u32 %s143, 1
        %s559 = smul.addr %s558, 8
        %s560 = scalar_lea.vmem [#allocation10], %s559
        // Predicated region
        $region85: #{net4_forward.7} parent=67 // pred_check
          %p561 = pneg %p156
        $region86: #{net4_forward.7} parent=67 // pred_check_branch
          %563 = sbr.rel (%p561) target = $region88
        $region87: #{net4_forward.7} parent=67 // pred_region
          %564 = dma.done %s557, 128
        $region88: #{net4_forward.7} parent=67 // pred_fallthru
          _
        // Predicated region
        $region89: #{net4_forward.7} parent=67 // pred_check
          %p565 = pneg %p177
        $region90: #{net4_forward.7} parent=67 // pred_check_branch
          %567 = sbr.rel (%p565) target = $region92
        $region91: #{net4_forward.7} parent=67 // pred_region
          %568 = dma.done [#allocation6], 1024
        $region92: #{net4_forward.7} parent=67 // pred_fallthru
          _
        // Predicated region
        $region93: #{net4_forward.7} parent=67 // pred_check
          %p569 = pneg %p198
        $region94: #{net4_forward.7} parent=67 // pred_check_branch
          %571 = sbr.rel (%p569) target = $region96
        $region95: #{net4_forward.7} parent=67 // pred_region
          %572 = dma.done [#allocation9], 1024
        $region96: #{net4_forward.7} parent=67 // pred_fallthru
          _
        // Predicated region
        $region97: #{net4_forward.7} parent=67 // pred_check
          %p573 = pneg %p219
        $region98: #{net4_forward.7} parent=67 // pred_check_branch
          %575 = sbr.rel (%p573) target = $region100
        $region99: #{net4_forward.7} parent=67 // pred_region
          %576 = dma.done [#allocation14], 1024
        $region100: #{net4_forward.7} parent=67 // pred_fallthru
          _
        // Predicated region
        $region101: #{net4_forward.7} parent=67 // pred_check
          %p577 = pneg %p240
        $region102: #{net4_forward.7} parent=67 // pred_check_branch
          %579 = sbr.rel (%p577) target = $region104
        $region103: #{net4_forward.7} parent=67 // pred_region
          %580 = dma.done [#allocation14], 1024
        $region104: #{net4_forward.7} parent=67 // pred_fallthru
          _
        // Predicated region
        $region105: #{net4_forward.7} parent=67 // pred_check
          %p581 = pneg %p261
        $region106: #{net4_forward.7} parent=67 // pred_check_branch
          %583 = sbr.rel (%p581) target = $region108
        $region107: #{net4_forward.7} parent=67 // pred_region
          %584 = dma.done [#allocation17], 16
        $region108: #{net4_forward.7} parent=67 // pred_fallthru
          _
        // Predicated region
        $region109: #{net4_forward.7} parent=67 // pred_check
          %p585 = pneg %p282
        $region110: #{net4_forward.7} parent=67 // pred_check_branch
          %587 = sbr.rel (%p585) target = $region112
        $region111: #{net4_forward.7} parent=67 // pred_region
          %588 = dma.done [#allocation17], 1024
        $region112: #{net4_forward.7} parent=67 // pred_fallthru
          _
        // Predicated region
        $region113: #{net4_forward.7} parent=67 // pred_check
          %p589 = pneg %p303
        $region114: #{net4_forward.7} parent=67 // pred_check_branch
          %591 = sbr.rel (%p589) target = $region116
        $region115: #{net4_forward.7} parent=67 // pred_region
          %592 = dma.done [#allocation20], 16
        $region116: #{net4_forward.7} parent=67 // pred_fallthru
          _
        %s593 = sand.u32 %s36, 1
        %s594 = scalar_lea.sflag [#allocation3], %s593
        %s595 = sand.u32 %s44, 1
        %s596 = smul.addr %s595, 8
        %s597 = scalar_lea.vmem [#allocation2], %s596
        %p598 = pneg %p57
        %p599 = pneg %p54
        %s600 = sand.u32 %s36, 1
        %s601 = scalar_lea.sflag [#allocation6], %s600
        %s602 = sand.u32 %s70, 1
        %s603 = smul.addr %s602, 8
        %s604 = scalar_lea.vmem [#allocation5], %s603
        %p605 = pneg %p83
        %p606 = pneg %p80
        %s607 = sand.u32 %s36, 1
        %s608 = scalar_lea.sflag [#allocation6], %s607
        %s609 = sand.u32 %s96, 1
        %s610 = smul.addr %s609, 8
        %s611 = scalar_lea.vmem [#allocation7], %s610
        %p612 = pneg %p109
        %p613 = pneg %p106
        %p614 = pneg %p130
        %p615 = pneg %p127
        %s616 = sand.u32 %s36, 1
        %s617 = scalar_lea.sflag [#allocation3], %s616
        %s618 = sand.u32 %s143, 1
        %s619 = smul.addr %s618, 8
        %s620 = scalar_lea.vmem [#allocation10], %s619
        %p621 = pneg %p156
        %p622 = pneg %p153
        %p623 = pneg %p177
        %p624 = pneg %p174
        %p625 = pneg %p198
        %p626 = pneg %p195
        %p627 = pneg %p219
        %p628 = pneg %p216
        %p629 = pneg %p240
        %p630 = pneg %p237
        %p631 = pneg %p261
        %p632 = pneg %p258
        %p633 = pneg %p282
        %p634 = pneg %p279
        %p635 = pneg %p303
        %p636 = pneg %p300
        %p637 = pneg %p329
        %p638 = pneg %p326
        %s639 = sand.u32 %s316, 1
        %s640 = scalar_lea.sflag [#allocation4], %s639
        %s641 = sand.u32 %s316, 1
        %s642 = smul.addr %s641, 8
        %s643 = scalar_lea.vmem [#allocation21], %s642
        %v644 = vld [vmem:[%s529] sm:$0xff]
        %v645 = vld [vmem:[#allocation11] sm:$0xff]
        %v646 = vld [vmem:[#allocation11 + $0x8] sm:$0xff]
        %v647 = vld [vmem:[#allocation11 + $0x10] sm:$0xff]
        %v648 = vld [vmem:[#allocation11 + $0x18] sm:$0xff]
        %v649 = vld [vmem:[#allocation11 + $0x20] sm:$0xff]
        %v650 = vld [vmem:[#allocation11 + $0x28] sm:$0xff]
        %v651 = vld [vmem:[#allocation11 + $0x30] sm:$0xff]
        %v652 = vld [vmem:[#allocation11 + $0x38] sm:$0xff]
        %v653 = vld [vmem:[%s538] sm:$0xff]
        %v654 = vld [vmem:[#allocation12] sm:$0xff]
        %v655 = vld [vmem:[#allocation12 + $0x8] sm:$0xff]
        %v656 = vld [vmem:[#allocation12 + $0x10] sm:$0xff]
        %v657 = vld [vmem:[#allocation12 + $0x18] sm:$0xff]
        %v658 = vld [vmem:[#allocation12 + $0x20] sm:$0xff]
        %v659 = vld [vmem:[#allocation12 + $0x28] sm:$0xff]
        %v660 = vld [vmem:[#allocation12 + $0x30] sm:$0xff]
        %v661 = vld [vmem:[#allocation12 + $0x38] sm:$0xff]
        %vm662 = vcmask 523264
        %v664 = vsel %vm662, %v653, 0
        %666 = vmatprep.subr.mxu0 0.0
        %667 = vmatpush1.msra.mxu0 %v654
        %668 = vmatprep.subr.mxu0 0.0
        %669 = vmatpush1.msra.mxu0 %v655
        %670 = vmatprep.subr.mxu0 0.0
        %671 = vmatpush1.msra.mxu0 %v656
        %672 = vmatprep.subr.mxu0 0.0
        %673 = vmatpush1.msra.mxu0 %v657
        %674 = vmatprep.subr.mxu0 0.0
        %675 = vmatpush1.msra.mxu0 %v658
        %676 = vmatprep.subr.mxu0 0.0
        %677 = vmatpush1.msra.mxu0 %v659
        %678 = vmatprep.subr.mxu0 0.0
        %679 = vmatpush1.msra.mxu0 %v660
        %680 = vmatprep.subr.mxu0 0.0
        %681 = vmatpush1.msra.mxu0 %v661
        %682 = vmatprep.subr.mxu0 0.0
        %683 = vmatpush1.msra.mxu0 0.0
        %684 = vmatprep.subr.mxu0 0.0
        %685 = vmatpush1.msra.mxu0 0.0
        %686 = vmatprep.subr.mxu0 0.0
        %687 = vmatpush1.msra.mxu0 0.0
        %688 = vmatprep.subr.mxu0 0.0
        %689 = vmatpush1.msra.mxu0 0.0
        %690 = vmatprep.subr.mxu0 0.0
        %691 = vmatpush1.msra.mxu0 0.0
        %692 = vmatprep.subr.mxu0 0.0
        %693 = vmatpush1.msra.mxu0 0.0
        %694 = vmatprep.subr.mxu0 0.0
        %695 = vmatpush1.msra.mxu0 0.0
        %696 = vmatprep.subr.mxu0 0.0
        %697 = vmatpush1.msra.mxu0 0.0
        %698 = vmatprep.subr.mxu0 0.0
        %699 = vmatpush1.msra.mxu0 0.0
        %700 = vmatprep.subr.mxu0 0.0
        %701 = vmatpush1.msra.mxu0 0.0
        %702 = vmatprep.subr.mxu0 0.0
        %703 = vmatpush1.msra.mxu0 0.0
        %704 = vmatprep.subr.mxu0 0.0
        %705 = vmatpush1.msra.mxu0 0.0
        %706 = vmatprep.subr.mxu0 0.0
        %707 = vmatpush1.msra.mxu0 0.0
        %708 = vmatprep.subr.mxu0 0.0
        %709 = vmatpush1.msra.mxu0 0.0
        %710 = vmatprep.subr.mxu0 0.0
        %711 = vmatpush1.msra.mxu0 0.0
        %712 = vmatprep.subr.mxu0 0.0
        %713 = vmatpush1.msra.mxu0 0.0
        %714 = vmatprep.subr.mxu0 0.0
        %715 = vmatpush1.msra.mxu0 0.0
        %716 = vmatprep.subr.mxu0 0.0
        %717 = vmatpush1.msra.mxu0 0.0
        %718 = vmatprep.subr.mxu0 0.0
        %719 = vmatpush1.msra.mxu0 0.0
        %720 = vmatprep.subr.mxu0 0.0
        %721 = vmatpush1.msra.mxu0 0.0
        %722 = vmatprep.subr.mxu0 0.0
        %723 = vmatpush1.msra.mxu0 0.0
        %724 = vmatprep.subr.mxu0 0.0
        %725 = vmatpush1.msra.mxu0 0.0
        %726 = vmatprep.subr.mxu0 0.0
        %727 = vmatpush1.msra.mxu0 0.0
        %728 = vmatprep.subr.mxu0 0.0
        %729 = vmatpush1.msra.mxu0 0.0
        %730 = vmatprep.mubr.f32.mxu0 0.0
        %731 = vmatmul.mubr.f32.gmra.mrb[0].mxu0 %v664
        %v732 = vpop.f32.mrb[0].mxu0
        %v733 = vadd.f32 0.0, %v732
        %v734 = vpop.f32.mrb[0].mxu0
        %735 = vdwg.mxu0
        %v737 = vsel %vm662, %v644, 0
        %739 = vmatprep.subr.mxu0 0.0
        %740 = vmatpush1.msra.mxu0 %v645
        %741 = vmatprep.subr.mxu0 0.0
        %742 = vmatpush1.msra.mxu0 %v646
        %743 = vmatprep.subr.mxu0 0.0
        %744 = vmatpush1.msra.mxu0 %v647
        %745 = vmatprep.subr.mxu0 0.0
        %746 = vmatpush1.msra.mxu0 %v648
        %747 = vmatprep.subr.mxu0 0.0
        %748 = vmatpush1.msra.mxu0 %v649
        %749 = vmatprep.subr.mxu0 0.0
        %750 = vmatpush1.msra.mxu0 %v650
        %751 = vmatprep.subr.mxu0 0.0
        %752 = vmatpush1.msra.mxu0 %v651
        %753 = vmatprep.subr.mxu0 0.0
        %754 = vmatpush1.msra.mxu0 %v652
        %755 = vmatprep.subr.mxu0 0.0
        %756 = vmatpush1.msra.mxu0 0.0
        %757 = vmatprep.subr.mxu0 0.0
        %758 = vmatpush1.msra.mxu0 0.0
        %759 = vmatprep.subr.mxu0 0.0
        %760 = vmatpush1.msra.mxu0 0.0
        %761 = vmatprep.subr.mxu0 0.0
        %762 = vmatpush1.msra.mxu0 0.0
        %763 = vmatprep.subr.mxu0 0.0
        %764 = vmatpush1.msra.mxu0 0.0
        %765 = vmatprep.subr.mxu0 0.0
        %766 = vmatpush1.msra.mxu0 0.0
        %767 = vmatprep.subr.mxu0 0.0
        %768 = vmatpush1.msra.mxu0 0.0
        %769 = vmatprep.subr.mxu0 0.0
        %770 = vmatpush1.msra.mxu0 0.0
        %771 = vmatprep.subr.mxu0 0.0
        %772 = vmatpush1.msra.mxu0 0.0
        %773 = vmatprep.subr.mxu0 0.0
        %774 = vmatpush1.msra.mxu0 0.0
        %775 = vmatprep.subr.mxu0 0.0
        %776 = vmatpush1.msra.mxu0 0.0
        %777 = vmatprep.subr.mxu0 0.0
        %778 = vmatpush1.msra.mxu0 0.0
        %779 = vmatprep.subr.mxu0 0.0
        %780 = vmatpush1.msra.mxu0 0.0
        %781 = vmatprep.subr.mxu0 0.0
        %782 = vmatpush1.msra.mxu0 0.0
        %783 = vmatprep.subr.mxu0 0.0
        %784 = vmatpush1.msra.mxu0 0.0
        %785 = vmatprep.subr.mxu0 0.0
        %786 = vmatpush1.msra.mxu0 0.0
        %787 = vmatprep.subr.mxu0 0.0
        %788 = vmatpush1.msra.mxu0 0.0
        %789 = vmatprep.subr.mxu0 0.0
        %790 = vmatpush1.msra.mxu0 0.0
        %791 = vmatprep.subr.mxu0 0.0
        %792 = vmatpush1.msra.mxu0 0.0
        %793 = vmatprep.subr.mxu0 0.0
        %794 = vmatpush1.msra.mxu0 0.0
        %795 = vmatprep.subr.mxu0 0.0
        %796 = vmatpush1.msra.mxu0 0.0
        %797 = vmatprep.subr.mxu0 0.0
        %798 = vmatpush1.msra.mxu0 0.0
        %799 = vmatprep.subr.mxu0 0.0
        %800 = vmatpush1.msra.mxu0 0.0
        %801 = vmatprep.subr.mxu0 0.0
        %802 = vmatpush1.msra.mxu0 0.0
        %803 = vmatprep.mubr.f32.mxu0 0.0
        %804 = vmatmul.mubr.f32.gmra.mrb[0].mxu0 %v737
        %v805 = vpop.f32.mrb[0].mxu0
        %v806 = vadd.f32 %v733, %v805
        %v807 = vpop.f32.mrb[0].mxu0
        %808 = vdwg.mxu0
        %v809 = vld [vmem:[%s547] sm:$0xff]
        %v810 = vld [vmem:[#allocation13] sm:$0xff]
        %v811 = vld [vmem:[#allocation13 + $0x8] sm:$0xff]
        %v812 = vld [vmem:[#allocation13 + $0x10] sm:$0xff]
        %v813 = vld [vmem:[#allocation13 + $0x18] sm:$0xff]
        %v814 = vld [vmem:[#allocation13 + $0x20] sm:$0xff]
        %v815 = vld [vmem:[#allocation13 + $0x28] sm:$0xff]
        %v816 = vld [vmem:[#allocation13 + $0x30] sm:$0xff]
        %v817 = vld [vmem:[#allocation13 + $0x38] sm:$0xff]
        %v819 = vsel %vm662, %v809, 0
        %821 = vmatprep.subr.mxu0 0.0
        %822 = vmatpush1.msra.mxu0 %v810
        %823 = vmatprep.subr.mxu0 0.0
        %824 = vmatpush1.msra.mxu0 %v811
        %825 = vmatprep.subr.mxu0 0.0
        %826 = vmatpush1.msra.mxu0 %v812
        %827 = vmatprep.subr.mxu0 0.0
        %828 = vmatpush1.msra.mxu0 %v813
        %829 = vmatprep.subr.mxu0 0.0
        %830 = vmatpush1.msra.mxu0 %v814
        %831 = vmatprep.subr.mxu0 0.0
        %832 = vmatpush1.msra.mxu0 %v815
        %833 = vmatprep.subr.mxu0 0.0
        %834 = vmatpush1.msra.mxu0 %v816
        %835 = vmatprep.subr.mxu0 0.0
        %836 = vmatpush1.msra.mxu0 %v817
        %837 = vmatprep.subr.mxu0 0.0
        %838 = vmatpush1.msra.mxu0 0.0
        %839 = vmatprep.subr.mxu0 0.0
        %840 = vmatpush1.msra.mxu0 0.0
        %841 = vmatprep.subr.mxu0 0.0
        %842 = vmatpush1.msra.mxu0 0.0
        %843 = vmatprep.subr.mxu0 0.0
        %844 = vmatpush1.msra.mxu0 0.0
        %845 = vmatprep.subr.mxu0 0.0
        %846 = vmatpush1.msra.mxu0 0.0
        %847 = vmatprep.subr.mxu0 0.0
        %848 = vmatpush1.msra.mxu0 0.0
        %849 = vmatprep.subr.mxu0 0.0
        %850 = vmatpush1.msra.mxu0 0.0
        %851 = vmatprep.subr.mxu0 0.0
        %852 = vmatpush1.msra.mxu0 0.0
        %853 = vmatprep.subr.mxu0 0.0
        %854 = vmatpush1.msra.mxu0 0.0
        %855 = vmatprep.subr.mxu0 0.0
        %856 = vmatpush1.msra.mxu0 0.0
        %857 = vmatprep.subr.mxu0 0.0
        %858 = vmatpush1.msra.mxu0 0.0
        %859 = vmatprep.subr.mxu0 0.0
        %860 = vmatpush1.msra.mxu0 0.0
        %861 = vmatprep.subr.mxu0 0.0
        %862 = vmatpush1.msra.mxu0 0.0
        %863 = vmatprep.subr.mxu0 0.0
        %864 = vmatpush1.msra.mxu0 0.0
        %865 = vmatprep.subr.mxu0 0.0
        %866 = vmatpush1.msra.mxu0 0.0
        %867 = vmatprep.subr.mxu0 0.0
        %868 = vmatpush1.msra.mxu0 0.0
        %869 = vmatprep.subr.mxu0 0.0
        %870 = vmatpush1.msra.mxu0 0.0
        %871 = vmatprep.subr.mxu0 0.0
        %872 = vmatpush1.msra.mxu0 0.0
        %873 = vmatprep.subr.mxu0 0.0
        %874 = vmatpush1.msra.mxu0 0.0
        %875 = vmatprep.subr.mxu0 0.0
        %876 = vmatpush1.msra.mxu0 0.0
        %877 = vmatprep.subr.mxu0 0.0
        %878 = vmatpush1.msra.mxu0 0.0
        %879 = vmatprep.subr.mxu0 0.0
        %880 = vmatpush1.msra.mxu0 0.0
        %881 = vmatprep.subr.mxu0 0.0
        %882 = vmatpush1.msra.mxu0 0.0
        %883 = vmatprep.subr.mxu0 0.0
        %884 = vmatpush1.msra.mxu0 0.0
        %885 = vmatprep.mubr.f32.mxu0 0.0
        %886 = vmatmul.mubr.f32.gmra.mrb[0].mxu0 %v819
        %v887 = vpop.f32.mrb[0].mxu0
        %v888 = vadd.f32 0.0, %v887
        %v889 = vpop.f32.mrb[0].mxu0
        %890 = vdwg.mxu0
        %v891 = vadd.f32 %v806, %v888
        %v892 = vld [vmem:[#allocation8] sm:$0x1]
        %v893 = vld [vmem:[#allocation15] sm:$0xff]
        %v894 = vld [vmem:[#allocation15 + $0x8] sm:$0xff]
        %v895 = vld [vmem:[#allocation15 + $0x10] sm:$0xff]
        %v896 = vld [vmem:[#allocation15 + $0x18] sm:$0xff]
        %v897 = vld [vmem:[#allocation15 + $0x20] sm:$0xff]
        %v898 = vld [vmem:[#allocation15 + $0x28] sm:$0xff]
        %v899 = vld [vmem:[#allocation15 + $0x30] sm:$0xff]
        %v900 = vld [vmem:[#allocation15 + $0x38] sm:$0xff]
        %v902 = vsel %vm662, %v892, 0
        %904 = vmatprep.subr.mxu0 0.0
        %905 = vmatpush1.msra.mxu0 %v893
        %906 = vmatprep.subr.mxu0 0.0
        %907 = vmatpush1.msra.mxu0 %v894
        %908 = vmatprep.subr.mxu0 0.0
        %909 = vmatpush1.msra.mxu0 %v895
        %910 = vmatprep.subr.mxu0 0.0
        %911 = vmatpush1.msra.mxu0 %v896
        %912 = vmatprep.subr.mxu0 0.0
        %913 = vmatpush1.msra.mxu0 %v897
        %914 = vmatprep.subr.mxu0 0.0
        %915 = vmatpush1.msra.mxu0 %v898
        %916 = vmatprep.subr.mxu0 0.0
        %917 = vmatpush1.msra.mxu0 %v899
        %918 = vmatprep.subr.mxu0 0.0
        %919 = vmatpush1.msra.mxu0 %v900
        %920 = vmatprep.subr.mxu0 0.0
        %921 = vmatpush1.msra.mxu0 0.0
        %922 = vmatprep.subr.mxu0 0.0
        %923 = vmatpush1.msra.mxu0 0.0
        %924 = vmatprep.subr.mxu0 0.0
        %925 = vmatpush1.msra.mxu0 0.0
        %926 = vmatprep.subr.mxu0 0.0
        %927 = vmatpush1.msra.mxu0 0.0
        %928 = vmatprep.subr.mxu0 0.0
        %929 = vmatpush1.msra.mxu0 0.0
        %930 = vmatprep.subr.mxu0 0.0
        %931 = vmatpush1.msra.mxu0 0.0
        %932 = vmatprep.subr.mxu0 0.0
        %933 = vmatpush1.msra.mxu0 0.0
        %934 = vmatprep.subr.mxu0 0.0
        %935 = vmatpush1.msra.mxu0 0.0
        %936 = vmatprep.subr.mxu0 0.0
        %937 = vmatpush1.msra.mxu0 0.0
        %938 = vmatprep.subr.mxu0 0.0
        %939 = vmatpush1.msra.mxu0 0.0
        %940 = vmatprep.subr.mxu0 0.0
        %941 = vmatpush1.msra.mxu0 0.0
        %942 = vmatprep.subr.mxu0 0.0
        %943 = vmatpush1.msra.mxu0 0.0
        %944 = vmatprep.subr.mxu0 0.0
        %945 = vmatpush1.msra.mxu0 0.0
        %946 = vmatprep.subr.mxu0 0.0
        %947 = vmatpush1.msra.mxu0 0.0
        %948 = vmatprep.subr.mxu0 0.0
        %949 = vmatpush1.msra.mxu0 0.0
        %950 = vmatprep.subr.mxu0 0.0
        %951 = vmatpush1.msra.mxu0 0.0
        %952 = vmatprep.subr.mxu0 0.0
        %953 = vmatpush1.msra.mxu0 0.0
        %954 = vmatprep.subr.mxu0 0.0
        %955 = vmatpush1.msra.mxu0 0.0
        %956 = vmatprep.subr.mxu0 0.0
        %957 = vmatpush1.msra.mxu0 0.0
        %958 = vmatprep.subr.mxu0 0.0
        %959 = vmatpush1.msra.mxu0 0.0
        %960 = vmatprep.subr.mxu0 0.0
        %961 = vmatpush1.msra.mxu0 0.0
        %962 = vmatprep.subr.mxu0 0.0
        %963 = vmatpush1.msra.mxu0 0.0
        %964 = vmatprep.subr.mxu0 0.0
        %965 = vmatpush1.msra.mxu0 0.0
        %966 = vmatprep.subr.mxu0 0.0
        %967 = vmatpush1.msra.mxu0 0.0
        %968 = vmatprep.mubr.f32.mxu0 0.0
        %969 = vmatmul.mubr.f32.gmra.mrb[0].mxu0 %v902
        %v970 = vpop.f32.mrb[0].mxu0
        %v971 = vadd.f32 0.0, %v970
        %v972 = vpop.f32.mrb[0].mxu0
        %973 = vdwg.mxu0
        %v974 = vlaneseq
        %v975 = vshrl.u32 %v974, 7
        %v976 = vsub.s32 0, %v975
        %v977 = vrot.slane %v971, %v976
        %v978 = vadd.f32 %v891, %v977
        %v979 = vld [vmem:[#allocation16] sm:$0x1]
        %v981 = vlaneseq
        %v982 = vshrl.u32 %v981, 7
        %v983 = vsub.s32 0, %v982
        %v984 = vrot.slane %v979, %v983
        %v986 = vadd.f32 %v978, %v984
        %v987 = vmax.f32 %v986, 0.0
        %v988 = vld [vmem:[#allocation18] sm:$0xff]
        %v989 = vld [vmem:[#allocation18 + $0x8] sm:$0xff]
        %v990 = vld [vmem:[#allocation18 + $0x10] sm:$0xff]
        %v991 = vld [vmem:[#allocation18 + $0x18] sm:$0xff]
        %v992 = vld [vmem:[#allocation18 + $0x20] sm:$0xff]
        %v993 = vld [vmem:[#allocation18 + $0x28] sm:$0xff]
        %v994 = vld [vmem:[#allocation18 + $0x30] sm:$0xff]
        %v995 = vld [vmem:[#allocation18 + $0x38] sm:$0xff]
        %v996 = vld [vmem:[#allocation19] sm:$0x1]
        %v998 = vlaneseq
        %v999 = vshrl.u32 %v998, 7
        %v1000 = vsub.s32 0, %v999
        %v1001 = vrot.slane %v996, %v1000
        %v1004 = vsel %vm662, %v987, 0
        %1006 = vmatprep.subr.mxu0 0.0
        %1007 = vmatpush1.msra.mxu0 %v988
        %1008 = vmatprep.subr.mxu0 0.0
        %1009 = vmatpush1.msra.mxu0 %v989
        %1010 = vmatprep.subr.mxu0 0.0
        %1011 = vmatpush1.msra.mxu0 %v990
        %1012 = vmatprep.subr.mxu0 0.0
        %1013 = vmatpush1.msra.mxu0 %v991
        %1014 = vmatprep.subr.mxu0 0.0
        %1015 = vmatpush1.msra.mxu0 %v992
        %1016 = vmatprep.subr.mxu0 0.0
        %1017 = vmatpush1.msra.mxu0 %v993
        %1018 = vmatprep.subr.mxu0 0.0
        %1019 = vmatpush1.msra.mxu0 %v994
        %1020 = vmatprep.subr.mxu0 0.0
        %1021 = vmatpush1.msra.mxu0 %v995
        %1022 = vmatprep.subr.mxu0 0.0
        %1023 = vmatpush1.msra.mxu0 0.0
        %1024 = vmatprep.subr.mxu0 0.0
        %1025 = vmatpush1.msra.mxu0 0.0
        %1026 = vmatprep.subr.mxu0 0.0
        %1027 = vmatpush1.msra.mxu0 0.0
        %1028 = vmatprep.subr.mxu0 0.0
        %1029 = vmatpush1.msra.mxu0 0.0
        %1030 = vmatprep.subr.mxu0 0.0
        %1031 = vmatpush1.msra.mxu0 0.0
        %1032 = vmatprep.subr.mxu0 0.0
        %1033 = vmatpush1.msra.mxu0 0.0
        %1034 = vmatprep.subr.mxu0 0.0
        %1035 = vmatpush1.msra.mxu0 0.0
        %1036 = vmatprep.subr.mxu0 0.0
        %1037 = vmatpush1.msra.mxu0 0.0
        %1038 = vmatprep.subr.mxu0 0.0
        %1039 = vmatpush1.msra.mxu0 0.0
        %1040 = vmatprep.subr.mxu0 0.0
        %1041 = vmatpush1.msra.mxu0 0.0
        %1042 = vmatprep.subr.mxu0 0.0
        %1043 = vmatpush1.msra.mxu0 0.0
        %1044 = vmatprep.subr.mxu0 0.0
        %1045 = vmatpush1.msra.mxu0 0.0
        %1046 = vmatprep.subr.mxu0 0.0
        %1047 = vmatpush1.msra.mxu0 0.0
        %1048 = vmatprep.subr.mxu0 0.0
        %1049 = vmatpush1.msra.mxu0 0.0
        %1050 = vmatprep.subr.mxu0 0.0
        %1051 = vmatpush1.msra.mxu0 0.0
        %1052 = vmatprep.subr.mxu0 0.0
        %1053 = vmatpush1.msra.mxu0 0.0
        %1054 = vmatprep.subr.mxu0 0.0
        %1055 = vmatpush1.msra.mxu0 0.0
        %1056 = vmatprep.subr.mxu0 0.0
        %1057 = vmatpush1.msra.mxu0 0.0
        %1058 = vmatprep.subr.mxu0 0.0
        %1059 = vmatpush1.msra.mxu0 0.0
        %1060 = vmatprep.subr.mxu0 0.0
        %1061 = vmatpush1.msra.mxu0 0.0
        %1062 = vmatprep.subr.mxu0 0.0
        %1063 = vmatpush1.msra.mxu0 0.0
        %1064 = vmatprep.subr.mxu0 0.0
        %1065 = vmatpush1.msra.mxu0 0.0
        %1066 = vmatprep.subr.mxu0 0.0
        %1067 = vmatpush1.msra.mxu0 0.0
        %1068 = vmatprep.subr.mxu0 0.0
        %1069 = vmatpush1.msra.mxu0 0.0
        %1070 = vmatprep.mubr.f32.mxu0 0.0
        %1071 = vmatmul.mubr.f32.gmra.mrb[0].mxu0 %v1004
        %v1072 = vpop.f32.mrb[0].mxu0
        %v1073 = vadd.f32 %v1001, %v1072
        %v1074 = vpop.f32.mrb[0].mxu0
        %1075 = vdwg.mxu0
        %v1076 = vld [vmem:[%s560] sm:$0xff]
        %1078 = vset.pattern.permute.xlu0 1
        %1079 = vperm.xlu0 %1078, %v1076
        %v1080 = vpop.permute.xlu0 %1079
        %v1082 = vmul.f32 %v1073, %v1080
        %1083 = vset.pattern.permute.xlu0 0
        %1084 = vperm.xlu0 %1083, %v1076
        %v1085 = vpop.permute.xlu0 %1084
        %v1087 = vsub.f32 %v1085, %v1082
        %1089 = vrot.lane.b32.xlu0 %v1087, 125
        %v1090 = vpop.permute.xlu0 %1089
        %v1092 = vmul.f32 %v1073, %v1090
        %vm1093 = vcmask 23552
        %1094 = vst.msk [vmem:[%s643] sm:$0xff] %vm1093, %v1092
        %s1095 = sand.u32 %s316, 1
        %s1096 = scalar_lea.sflag [#allocation4], %s1095
        %s1097 = sand.u32 %s316, 1
        %s1098 = smul.addr %s1097, 8
        %s1099 = scalar_lea.vmem [#allocation21], %s1098
        // Predicated region
        $region117: #{net4_forward.7} parent=67 // pred_check
          %p1100 = pneg %p326
        $region118: #{net4_forward.7} parent=67 // pred_check_branch
          %1102 = sbr.rel (%p1100) target = $region120
        $region119: #{net4_forward.7} parent=67 // pred_region
          %s1104 = ssub.s32 128, 128
          %1105 = vsyncadd %s1096, %s1104
          %s1106 = smul.addr %s36, 128
          %s1107 = scalar_lea.hbm %s12, %s1106
          %s1109 = sshll.u32 %s1099, 4
          %s1110 = int_to_ptr.vmem [resolvable:$true] %s1109
          %1112 = dma.vmem_to_hbm [thread:$0]  %s1110, 128, %s1107, %s1096
        $region120: #{net4_forward.7} parent=67 // pred_fallthru
          _
      $region68: #{net4_forward.7} parent=5 // pred_fallthru
        _
      %p1113 = scmp.le.s32.totalorder 2, %s31
      // Predicated region
      $region121: #{net4_forward.7} parent=5 // pred_check
        %p1114 = pneg %p1113
      $region122: #{net4_forward.7} parent=5 // pred_check_branch
        %1116 = sbr.rel (%p1114) target = $region124
      $region123: #{net4_forward.7} parent=5 // pred_region
        %s1117 = ssub.s32 %s31, 2
        // Predicated region
        $region125: #{net4_forward.7} parent=123 // pred_check
          %p1118 = pneg %p332
        $region126: #{net4_forward.7} parent=123 // pred_check_branch
          %1120 = sbr.rel (%p1118) target = $region128
        $region127: #{net4_forward.7} parent=123 // pred_region
          %s1121 = sand.u32 %s317, 1
          %s1122 = scalar_lea.sflag [#allocation4], %s1121
          %s1123 = sand.u32 %s317, 1
          %s1124 = smul.addr %s1123, 8
          %s1125 = scalar_lea.vmem [#allocation21], %s1124
          %1126 = dma.done %s1122, 128
        $region128: #{net4_forward.7} parent=123 // pred_fallthru
          _
      $region124: #{net4_forward.7} parent=5 // pred_fallthru
        _
    $region6: #{net4_forward.7} parent=1 // loop_footer
      %s35 = sadd.s32 1, %s31
    $region7: #{net4_forward.7} parent=1 // loop_footer_branch
      %30 = sbr.rel target = $region3
    $region8: #{net4_forward.7} parent=1 // loop_exit
      _
    %1127 = vsyncpa [#allocation3], 1
    %s1128 = scalar_lea.sflag [#allocation3], 1
    %1129 = vsyncpa %s1128, 1
    %1130 = vsyncpa [#allocation6], 1
    %s1131 = scalar_lea.sflag [#allocation6], 1
    %1132 = vsyncpa %s1131, 1
    %1133 = vsyncpa [#allocation9], 1
    %1134 = vsyncpa [#allocation14], 1
    %1135 = vsyncpa [#allocation17], 1
    %1136 = vsyncpa [#allocation20], 1
    %1137 = vsyncpa [#allocation4], 1
    %s1138 = scalar_lea.sflag [#allocation4], 1
    %1139 = vsyncpa %s1138, 1

</llo_original>
